<compile_context>
chip_gen: v6e
topology: v6e:2x2x1
jax: 0.10.0
libtpu: 0.0.40
codegen_flags: <defaults>
</compile_context>

<pallas_src>
import functools

import jax
import jax.numpy as jnp
from jax.experimental import pallas as pl
from jax.experimental.pallas import tpu as pltpu

_BN_EPS = 1e-5
_LANE = 128


def _round_up(x, m):
    return (x + m - 1) // m * m


def _pad_last(a, to):
    pad = to - a.shape[-1]
    if pad == 0:
        return a
    return jnp.pad(a, [(0, 0)] * (a.ndim - 1) + [(0, pad)])


# --------------------------------------------------------------------------------------
# Small helpers: single-buffered weight spec (probed), compiler params, MXU K grouping.
# --------------------------------------------------------------------------------------
@functools.lru_cache(maxsize=None)
def _buffered_single_supported():
    """Probe once whether pipeline_mode=pl.Buffered(1) works (and is numerically sane)
    for a grid-invariant operand; fall back to the default (double-buffered) spec."""
    try:
        w_spec = pl.BlockSpec((8, 128), lambda i: (0, 0), pipeline_mode=pl.Buffered(1))

        def k(x_ref, w_ref, o_ref):
            o_ref[...] = x_ref[...] + w_ref[...]

        f = pl.pallas_call(
            k,
            out_shape=jax.ShapeDtypeStruct((16, 128), jnp.float32),
            grid=(2,),
            in_specs=[pl.BlockSpec((8, 128), lambda i: (i, 0)), w_spec],
            out_specs=pl.BlockSpec((8, 128), lambda i: (i, 0)),
        )
        res = jax.block_until_ready(
            f(jnp.zeros((16, 128), jnp.float32), jnp.ones((8, 128), jnp.float32)))
        return bool(jnp.all(res == 1.0))
    except Exception:
        return False


def _const_spec(shape):
    """BlockSpec for a grid-invariant operand (weights): single-buffered when possible."""
    ndim = len(shape)
    index_map = lambda i: (0,) * ndim
    if _buffered_single_supported():
        return pl.BlockSpec(shape, index_map, pipeline_mode=pl.Buffered(1))
    return pl.BlockSpec(shape, index_map)


def _compiler_params(block_bytes):
    # Explicit scoped-VMEM limit (review item): ~2x the live block footprint for
    # double-buffering plus slack, clamped to [16 MiB, 64 MiB] (v7x physical per-TC).
    limit = int(min(max(2 * int(block_bytes) + (4 << 20), 16 << 20), 64 << 20))
    return pltpu.CompilerParams(dimension_semantics=("parallel",),
                                vmem_limit_bytes=limit)


def _taps_per_matmul(cp):
    # MXU K-depth per pass = taps * cp.  v6e/v7x MXUs are 256 deep -> pair taps when
    # cp == 128; v5e's 128-deep MXU is already full per tap; cp >= 256 fills any
    # generation per tap (and keeps VPU copy traffic minimal).
    if cp >= 256:
        return 1
    try:
        if "v5" in jax.devices()[0].device_kind.lower():
            return 1
    except Exception:
        pass
    return 2


# --------------------------------------------------------------------------------------
# 3x3 conv (stride 1, pad 1, no bias) with fused BN-stats outputs.  One image per grid
# step; persistent VMEM halo scratch; per-tap / tap-pair accumulating MXU matmuls with
# bf16 operands and an f32 accumulator.
# --------------------------------------------------------------------------------------
def _zero_border(xscr, H, W):
    cp = xscr.shape[-1]
    zrow = jnp.zeros((1, W + 2, cp), xscr.dtype)
    zcol = jnp.zeros((H + 2, 1, cp), xscr.dtype)
    xscr[0:1, :, :] = zrow
    xscr[H + 1:H + 2, :, :] = zrow
    xscr[:, 0:1, :] = zcol
    xscr[:, W + 1:W + 2, :] = zcol


def _conv3x3_mm(xscr, w_ref, o_ref, sum_ref, ssq_ref, *, H, W, taps_per_mm):
    cp = xscr.shape[-1]
    cop = w_ref.shape[-1]
    m = H * W
    taps = [(kh, kw) for kh in range(3) for kw in range(3)]
    acc = jnp.zeros((m, cop), jnp.float32)
    t = 0
    while t < 9:
        g = min(taps_per_mm, 9 - t)
        parts = [xscr[kh:kh + H, kw:kw + W, :].reshape(m, cp)
                 for kh, kw in taps[t:t + g]]
        lhs = parts[0] if g == 1 else jnp.concatenate(parts, axis=-1)
        acc = acc + jnp.dot(lhs, w_ref[t * cp:(t + g) * cp, :],
                            preferred_element_type=jnp.float32)
        t += g
    # BN statistics from the f32 accumulator (before the bf16 cast of the output).
    sum_ref[...] = jnp.sum(acc, axis=0).reshape(1, 1, cop)
    ssq_ref[...] = jnp.sum(acc * acc, axis=0).reshape(1, 1, cop)
    o_ref[0] = acc.reshape(H, W, cop).astype(o_ref.dtype)


def _conv1_kernel(x_ref, w_ref, o_ref, sum_ref, ssq_ref, xscr, *, H, W, taps_per_mm):
    _zero_border(xscr, H, W)
    xscr[1:H + 1, 1:W + 1, :] = x_ref[0]
    _conv3x3_mm(xscr, w_ref, o_ref, sum_ref, ssq_ref, H=H, W=W, taps_per_mm=taps_per_mm)


def _conv1_proj_kernel(x_ref, w_ref, wsc_ref, o_ref, sum_ref, ssq_ref, scs_ref, scq_ref,
                       xscr, *, H, W, taps_per_mm):
    _zero_border(xscr, H, W)
    xscr[1:H + 1, 1:W + 1, :] = x_ref[0]
    # Shortcut 1x1 BN statistics, computed here because x is already resident in VMEM
    # (the full csc tensor never hits HBM; the residual kernel recomputes the matmul).
    cp = x_ref.shape[-1]
    cop = wsc_ref.shape[-1]
    sc = jnp.dot(x_ref[0].reshape(H * W, cp), wsc_ref[...],
                 preferred_element_type=jnp.float32)
    scs_ref[...] = jnp.sum(sc, axis=0).reshape(1, 1, cop)
    scq_ref[...] = jnp.sum(sc * sc, axis=0).reshape(1, 1, cop)
    _conv3x3_mm(xscr, w_ref, o_ref, sum_ref, ssq_ref, H=H, W=W, taps_per_mm=taps_per_mm)


def _conv2_kernel(x_ref, s_ref, b_ref, w_ref, o_ref, sum_ref, ssq_ref, xscr,
                  *, H, W, taps_per_mm):
    _zero_border(xscr, H, W)
    # Fused bn1-affine + ReLU applied while writing conv2's input into the halo scratch.
    xv = x_ref[0].astype(jnp.float32) * s_ref[...] + b_ref[...]
    xscr[1:H + 1, 1:W + 1, :] = jnp.maximum(xv, 0.0).astype(xscr.dtype)
    _conv3x3_mm(xscr, w_ref, o_ref, sum_ref, ssq_ref, H=H, W=W, taps_per_mm=taps_per_mm)


def conv3x3_pallas(x, w9, scale=None, bias=None, wsc=None):
    """x: (N,H,W,Cp) bf16 (Cp multiple of 128); w9: (9*Cp, Cop) bf16.
    scale/bias: optional (1,Cp) f32 affine+ReLU fused onto the input (conv2).
    wsc: optional (Cp, Cop) bf16 -- also emit 1x1-shortcut BN stats (conv1, proj path).
    Returns (conv_out_bf16, sum, sumsq[, sc_sum, sc_sumsq])."""
    n, h, w, cp = x.shape
    cop = w9.shape[-1]
    taps_per_mm = _taps_per_matmul(cp)

    x_spec = pl.BlockSpec((1, h, w, cp), lambda i: (i, 0, 0, 0))
    o_spec = pl.BlockSpec((1, h, w, cop), lambda i: (i, 0, 0, 0))
    stat_spec = pl.BlockSpec((1, 1, cop), lambda i: (i, 0, 0))
    vec_spec = pl.BlockSpec((1, cp), lambda i: (0, 0))
    w_spec = _const_spec((9 * cp, cop))
    o_shape = jax.ShapeDtypeStruct((n, h, w, cop), x.dtype)
    stat_shape = jax.ShapeDtypeStruct((n, 1, cop), jnp.float32)
    scratch = [pltpu.VMEM((h + 2, w + 2, cp), x.dtype)]

    itm = x.dtype.itemsize
    est = (h * w * (cp + cop) * itm                      # x block + out block
           + 9 * cp * cop * w9.dtype.itemsize            # 3x3 weights
           + (h + 2) * (w + 2) * cp * itm                # halo scratch
           + h * w * cop * 4)                            # f32 accumulator
    if wsc is not None:
        est += cp * cop * wsc.dtype.itemsize + h * w * cop * 4
    params = _compiler_params(est)

    if scale is not None:
        kern = functools.partial(_conv2_kernel, H=h, W=w, taps_per_mm=taps_per_mm)
        return pl.pallas_call(
            kern, out_shape=(o_shape, stat_shape, stat_shape), grid=(n,),
            in_specs=[x_spec, vec_spec, vec_spec, w_spec],
            out_specs=(o_spec, stat_spec, stat_spec),
            scratch_shapes=scratch, compiler_params=params,
        )(x, scale, bias, w9)

    if wsc is not None:
        kern = functools.partial(_conv1_proj_kernel, H=h, W=w, taps_per_mm=taps_per_mm)
        return pl.pallas_call(
            kern,
            out_shape=(o_shape, stat_shape, stat_shape, stat_shape, stat_shape),
            grid=(n,),
            in_specs=[x_spec, w_spec, _const_spec((cp, cop))],
            out_specs=(o_spec, stat_spec, stat_spec, stat_spec, stat_spec),
            scratch_shapes=scratch, compiler_params=params,
        )(x, w9, wsc)

    kern = functools.partial(_conv1_kernel, H=h, W=w, taps_per_mm=taps_per_mm)
    return pl.pallas_call(
        kern, out_shape=(o_shape, stat_shape, stat_shape), grid=(n,),
        in_specs=[x_spec, w_spec],
        out_specs=(o_spec, stat_spec, stat_spec),
        scratch_shapes=scratch, compiler_params=params,
    )(x, w9)


# --------------------------------------------------------------------------------------
# Fused residual epilogues: bn2-affine + shortcut + ReLU.  The projection variant
# recomputes the cheap 1x1 matmul in VMEM (x is read here anyway) so csc never lives
# in HBM; the identity variant skips the shortcut affine entirely.
# --------------------------------------------------------------------------------------
def _residual_id_kernel(c2_ref, s2_ref, b2_ref, x_ref, o_ref):
    main = c2_ref[0].astype(jnp.float32) * s2_ref[...] + b2_ref[...]
    o_ref[0] = jnp.maximum(main + x_ref[0].astype(jnp.float32), 0.0)


def _residual_proj_kernel(c2_ref, s2_ref, b2_ref, x_ref, wsc_ref, ss_ref, bs_ref, o_ref,
                          *, H, W):
    cp = x_ref.shape[-1]
    cop = c2_ref.shape[-1]
    main = c2_ref[0].astype(jnp.float32) * s2_ref[...] + b2_ref[...]
    sc = jnp.dot(x_ref[0].reshape(H * W, cp), wsc_ref[...],
                 preferred_element_type=jnp.float32).reshape(H, W, cop)
    o_ref[0] = jnp.maximum(main + sc * ss_ref[...] + bs_ref[...], 0.0)


def residual_pallas(c2, s2, b2, x, wsc=None, ss=None, bs=None):
    n, h, w, cop = c2.shape
    cp = x.shape[-1]
    img_c2 = pl.BlockSpec((1, h, w, cop), lambda i: (i, 0, 0, 0))
    img_x = pl.BlockSpec((1, h, w, cp), lambda i: (i, 0, 0, 0))
    vec = pl.BlockSpec((1, cop), lambda i: (0, 0))
    o_spec = pl.BlockSpec((1, h, w, cop), lambda i: (i, 0, 0, 0))
    out_shape = jax.ShapeDtypeStruct((n, h, w, cop), jnp.float32)

    est = (h * w * cop * c2.dtype.itemsize + h * w * cp * x.dtype.itemsize
           + h * w * cop * 4)
    if wsc is not None:
        est += cp * cop * wsc.dtype.itemsize + h * w * cop * 4
    params = _compiler_params(est)

    if wsc is None:
        return pl.pallas_call(
            _residual_id_kernel, out_shape=out_shape, grid=(n,),
            in_specs=[img_c2, vec, vec, img_x], out_specs=o_spec,
            compiler_params=params,
        )(c2, s2, b2, x)

    kern = functools.partial(_residual_proj_kernel, H=h, W=w)
    return pl.pallas_call(
        kern, out_shape=out_shape, grid=(n,),
        in_specs=[img_c2, vec, vec, img_x, _const_spec((cp, cop)), vec, vec],
        out_specs=o_spec, compiler_params=params,
    )(c2, s2, b2, x, wsc, ss, bs)


# --------------------------------------------------------------------------------------
# Glue: fold training-mode BatchNorm (batch mean / biased var) into per-channel affine
# from the tiny per-image (sum, sumsq) partials emitted by the conv kernels (all f32).
# --------------------------------------------------------------------------------------
def _fold_bn(sums, ssqs, count, gamma_p, beta_p, eps=_BN_EPS):
    s = jnp.sum(sums, axis=(0, 1))
    ss = jnp.sum(ssqs, axis=(0, 1))
    mean = s / count
    var = jnp.maximum(ss / count - mean * mean, 0.0)   # biased, like PyTorch BN forward
    scale = gamma_p * jax.lax.rsqrt(var + eps)
    bias = beta_p - mean * scale
    return scale.reshape(1, -1), bias.reshape(1, -1)


# --------------------------------------------------------------------------------------
# The Block module
# --------------------------------------------------------------------------------------
class PallasBlock:
    expansion = 1

    def __init__(self, key, in_planes, planes, stride=1):
        if stride != 1:
            # TODO(synk): strided 3x3/1x1 convs (downsampling Blocks) not implemented.
            raise NotImplementedError("PallasBlock currently supports stride=1 only")
        self.in_planes, self.planes, self.stride = in_planes, planes, stride
        self.cin_p = _round_up(in_planes, _LANE)
        self.cout_p = _round_up(planes, _LANE)

        ks = jax.random.split(key, 9)
        self.w1 = 0.2 * jax.random.normal(ks[0], (3, 3, in_planes, planes), jnp.float32)
        self.g1 = 1.0 + 0.1 * jax.random.normal(ks[1], (planes,), jnp.float32)
        self.b1 = 0.1 * jax.random.normal(ks[2], (planes,), jnp.float32)
        self.w2 = 0.2 * jax.random.normal(ks[3], (3, 3, planes, planes), jnp.float32)
        self.g2 = 1.0 + 0.1 * jax.random.normal(ks[4], (planes,), jnp.float32)
        self.b2 = 0.1 * jax.random.normal(ks[5], (planes,), jnp.float32)
        self.has_proj = (stride != 1) or (in_planes != planes)
        if self.has_proj:
            self.wsc = 0.2 * jax.random.normal(ks[6], (in_planes, planes), jnp.float32)
            self.gsc = 1.0 + 0.1 * jax.random.normal(ks[7], (planes,), jnp.float32)
            self.bsc = 0.1 * jax.random.normal(ks[8], (planes,), jnp.float32)

        # Lane-padded (multiple-of-128 channels), bf16 parameter copies for the kernels.
        # gamma/beta padded with 0 => padded channels map to exactly 0 through BN/ReLU.
        w1p = jnp.pad(self.w1, ((0, 0), (0, 0),
                                (0, self.cin_p - in_planes),
                                (0, self.cout_p - planes)))
        self.w1_p = w1p.reshape(9 * self.cin_p, self.cout_p).astype(jnp.bfloat16)
        w2p = jnp.pad(self.w2, ((0, 0), (0, 0),
                                (0, self.cout_p - planes),
                                (0, self.cout_p - planes)))
        self.w2_p = w2p.reshape(9 * self.cout_p, self.cout_p).astype(jnp.bfloat16)
        self.g1_p = _pad_last(self.g1, self.cout_p)
        self.b1_p = _pad_last(self.b1, self.cout_p)
        self.g2_p = _pad_last(self.g2, self.cout_p)
        self.b2_p = _pad_last(self.b2, self.cout_p)
        if self.has_proj:
            self.wsc_p = jnp.pad(self.wsc, ((0, self.cin_p - in_planes),
                                            (0, self.cout_p - planes))
                                 ).astype(jnp.bfloat16)
            self.gsc_p = _pad_last(self.gsc, self.cout_p)
            self.bsc_p = _pad_last(self.bsc, self.cout_p)

    def __call__(self, x_nchw):
        n, _, h, w = x_nchw.shape
        count = n * h * w
        # NCHW -> NHWC, lane pad, cast to bf16 once at the block boundary.
        x = jnp.transpose(x_nchw, (0, 2, 3, 1)).astype(jnp.float32)
        x_p = _pad_last(x, self.cin_p).astype(jnp.bfloat16)

        # conv1 (+ shortcut 1x1 stats when projecting): o1/csc never re-read from HBM.
        if self.has_proj:
            c1, s1, q1, scs_s, scs_q = conv3x3_pallas(x_p, self.w1_p, wsc=self.wsc_p)
        else:
            c1, s1, q1 = conv3x3_pallas(x_p, self.w1_p)
        sc1, bi1 = _fold_bn(s1, q1, count, self.g1_p, self.b1_p)

        # conv2 with bn1-affine + ReLU fused onto its input; emits stats for bn2.
        c2, s2, q2 = conv3x3_pallas(c1, self.w2_p, scale=sc1, bias=bi1)
        sc2, bi2 = _fold_bn(s2, q2, count, self.g2_p, self.b2_p)

        if self.has_proj:
            scs, bis = _fold_bn(scs_s, scs_q, count, self.gsc_p, self.bsc_p)
            out = residual_pallas(c2, sc2, bi2, x_p, self.wsc_p, scs, bis)
        else:
            # Identity shortcut (cin_p == cout_p; padded channels of x are zero).
            out = residual_pallas(c2, sc2, bi2, x_p)

        out = out[..., :self.planes]                  # drop lane padding
        return jnp.transpose(out, (0, 3, 1, 2))       # NHWC -> NCHW, f32

    # Pure-JAX f32 reference (same params, same math) used for the correctness check.
    def reference(self, x_nchw):
        def conv(x, w):
            return jax.lax.conv_general_dilated(
                x, w, (1, 1), "SAME",
                dimension_numbers=("NHWC", "HWIO", "NHWC"),
                precision=jax.lax.Precision.HIGHEST)

        def bn(c, g, b):
            m = c.mean((0, 1, 2))
            v = jnp.square(c - m).mean((0, 1, 2))
            return (c - m) * g * jax.lax.rsqrt(v + _BN_EPS) + b

        x = jnp.transpose(x_nchw, (0, 2, 3, 1)).astype(jnp.float32)
        o1 = jnp.maximum(bn(conv(x, self.w1), self.g1, self.b1), 0.0)
        main = bn(conv(o1, self.w2), self.g2, self.b2)
        if self.has_proj:
            short = bn(conv(x, self.wsc.reshape(1, 1, self.in_planes, self.planes)),
                       self.gsc, self.bsc)
        else:
            short = x
        out = jnp.maximum(main + short, 0.0)
        return jnp.transpose(out, (0, 3, 1, 2))


if __name__ == "__main__":
    key = jax.random.PRNGKey(0)
    kx, kp1, kp2 = jax.random.split(key, 3)
    N, H, W = 2, 16, 16

    # Case 1: projection shortcut (in_planes != planes).
    CIN, PLANES = 4, 8
    x = jax.random.normal(kx, (N, CIN, H, W), jnp.float32)
    blk = PallasBlock(kp1, CIN, PLANES, stride=1)
    out = jax.block_until_ready(blk(x))
    ref = jax.block_until_ready(blk.reference(x))
    assert out.shape == (N, PLANES, H, W), out.shape
    # Tolerance accounts for bf16 MXU operands / bf16 HBM intermediates vs the f32
    # HIGHEST-precision reference (per review: bf16 with f32 accumulation).
    err = float(jnp.max(jnp.abs(out - ref)))
    assert err < 7.5e-2, f"projection block: max abs err vs reference = {err}"

    # Case 2: identity shortcut (in_planes == planes).
    blk2 = PallasBlock(kp2, PLANES, PLANES, stride=1)
    x2 = jax.random.normal(kx, (N, PLANES, H, W), jnp.float32)
    out2 = jax.block_until_ready(blk2(x2))
    ref2 = jax.block_until_ready(blk2.reference(x2))
    assert out2.shape == (N, PLANES, H, W), out2.shape
    err2 = float(jnp.max(jnp.abs(out2 - ref2)))
    assert err2 < 7.5e-2, f"identity block: max abs err vs reference = {err2}"

    print("KERNEL_OK")
</pallas_src>

<mosaic_0001>
module attributes {stable_mosaic.version = 11 : i64} {
  func.func @k(%arg0: i32, %arg1: memref<8x128xf32, #tpu.memory_space<vmem>>, %arg2: memref<8x128xf32, #tpu.memory_space<vmem>>, %arg3: memref<8x128xf32, #tpu.memory_space<vmem>>) attributes {dimension_semantics = [#tpu.dimension_semantics<arbitrary>], iteration_bounds = array<i64: 2>, scalar_prefetch = 0 : i64, scratch_operands = 0 : i64, tpu.core_type = #tpu.core_type<tc>, window_params = [{transform_indices = @transform_0, window_bounds = array<i64: 8, 128>}, {pipeline_mode = #tpu.pipeline_mode<synchronous>, transform_indices = @transform_1, window_bounds = array<i64: 8, 128>}, {transform_indices = @transform_2, window_bounds = array<i64: 8, 128>}]} {
    %c0 = arith.constant 0 : index
    %c0_0 = arith.constant 0 : index
    %0 = vector.load %arg1[%c0, %c0_0] : memref<8x128xf32, #tpu.memory_space<vmem>>, vector<8x128xf32>
    %c0_1 = arith.constant 0 : index
    %c0_2 = arith.constant 0 : index
    %1 = vector.load %arg2[%c0_1, %c0_2] : memref<8x128xf32, #tpu.memory_space<vmem>>, vector<8x128xf32>
    %2 = arith.addf %0, %1 : vector<8x128xf32>
    %c0_3 = arith.constant 0 : index
    %c0_4 = arith.constant 0 : index
    %3 = vector.load %arg3[%c0_3, %c0_4] : memref<8x128xf32, #tpu.memory_space<vmem>>, vector<8x128xf32>
    tpu.vector_store %arg3[%c0_3, %c0_4], %2 {strides = array<i32>} : memref<8x128xf32, #tpu.memory_space<vmem>>, vector<8x128xf32>,
    return
  }
  func.func @transform_0(%arg0: i32) -> (i32, i32) {
    %c0_i32 = arith.constant 0 : i32
    %c0_i32_0 = arith.constant 0 : i32
    return %arg0, %c0_i32 : i32, i32
  }
  func.func @transform_1(%arg0: i32) -> (i32, i32) {
    %c0_i32 = arith.constant 0 : i32
    %c0_i32_0 = arith.constant 0 : i32
    %c0_i32_1 = arith.constant 0 : i32
    return %c0_i32, %c0_i32_0 : i32, i32
  }
  func.func @transform_2(%arg0: i32) -> (i32, i32) {
    %c0_i32 = arith.constant 0 : i32
    %c0_i32_0 = arith.constant 0 : i32
    return %arg0, %c0_i32 : i32, i32
  }
}

module attributes {stable_mosaic.version = 11 : i64} {
  func.func @_conv1_proj_kernel(%arg0: i32, %arg1: memref<1x16x16x128xbf16, #tpu.memory_space<vmem>>, %arg2: memref<1152x128xbf16, #tpu.memory_space<vmem>>, %arg3: memref<128x128xbf16, #tpu.memory_space<vmem>>, %arg4: memref<1x16x16x128xbf16, #tpu.memory_space<vmem>>, %arg5: memref<1x1x128xf32, #tpu.memory_space<vmem>>, %arg6: memref<1x1x128xf32, #tpu.memory_space<vmem>>, %arg7: memref<1x1x128xf32, #tpu.memory_space<vmem>>, %arg8: memref<1x1x128xf32, #tpu.memory_space<vmem>>, %arg9: memref<18x18x128xbf16, #tpu.memory_space<vmem>>) attributes {dimension_semantics = [#tpu.dimension_semantics<parallel>], iteration_bounds = array<i64: 2>, scalar_prefetch = 0 : i64, scratch_operands = 1 : i64, tpu.core_type = #tpu.core_type<tc>, window_params = [{transform_indices = @transform_0, window_bounds = array<i64: 1, 16, 16, 128>}, {pipeline_mode = #tpu.pipeline_mode<synchronous>, transform_indices = @transform_1, window_bounds = array<i64: 1152, 128>}, {pipeline_mode = #tpu.pipeline_mode<synchronous>, transform_indices = @transform_2, window_bounds = array<i64: 128, 128>}, {transform_indices = @transform_3, window_bounds = array<i64: 1, 16, 16, 128>}, {transform_indices = @transform_4, window_bounds = array<i64: 1, 1, 128>}, {transform_indices = @transform_5, window_bounds = array<i64: 1, 1, 128>}, {transform_indices = @transform_6, window_bounds = array<i64: 1, 1, 128>}, {transform_indices = @transform_7, window_bounds = array<i64: 1, 1, 128>}]} {
    %cst = arith.constant 0.000000e+00 : bf16
    %0 = vector.broadcast %cst : bf16 to vector<1x18x128xbf16>
    %cst_0 = arith.constant 0.000000e+00 : bf16
    %1 = vector.broadcast %cst_0 : bf16 to vector<18x1x128xbf16>
    %c0 = arith.constant 0 : index
    %c0_1 = arith.constant 0 : index
    %c0_2 = arith.constant 0 : index
    %2 = vector.load %arg9[%c0, %c0_1, %c0_2] : memref<18x18x128xbf16, #tpu.memory_space<vmem>>, vector<1x18x128xbf16>
    tpu.vector_store %arg9[%c0, %c0_1, %c0_2], %0 {strides = array<i32>} : memref<18x18x128xbf16, #tpu.memory_space<vmem>>, vector<1x18x128xbf16>,
    %c17 = arith.constant 17 : index
    %c0_3 = arith.constant 0 : index
    %c0_4 = arith.constant 0 : index
    %3 = vector.load %arg9[%c17, %c0_3, %c0_4] : memref<18x18x128xbf16, #tpu.memory_space<vmem>>, vector<1x18x128xbf16>
    tpu.vector_store %arg9[%c17, %c0_3, %c0_4], %0 {strides = array<i32>} : memref<18x18x128xbf16, #tpu.memory_space<vmem>>, vector<1x18x128xbf16>,
    %c0_5 = arith.constant 0 : index
    %c0_6 = arith.constant 0 : index
    %c0_7 = arith.constant 0 : index
    %4 = vector.load %arg9[%c0_5, %c0_6, %c0_7] : memref<18x18x128xbf16, #tpu.memory_space<vmem>>, vector<18x1x128xbf16>
    tpu.vector_store %arg9[%c0_5, %c0_6, %c0_7], %1 {strides = array<i32>} : memref<18x18x128xbf16, #tpu.memory_space<vmem>>, vector<18x1x128xbf16>,
    %c0_8 = arith.constant 0 : index
    %c17_9 = arith.constant 17 : index
    %c0_10 = arith.constant 0 : index
    %5 = vector.load %arg9[%c0_8, %c17_9, %c0_10] : memref<18x18x128xbf16, #tpu.memory_space<vmem>>, vector<18x1x128xbf16>
    tpu.vector_store %arg9[%c0_8, %c17_9, %c0_10], %1 {strides = array<i32>} : memref<18x18x128xbf16, #tpu.memory_space<vmem>>, vector<18x1x128xbf16>,
    %c0_11 = arith.constant 0 : index
    %c0_12 = arith.constant 0 : index
    %c0_13 = arith.constant 0 : index
    %c0_14 = arith.constant 0 : index
    %6 = vector.load %arg1[%c0_11, %c0_12, %c0_13, %c0_14] : memref<1x16x16x128xbf16, #tpu.memory_space<vmem>>, vector<1x16x16x128xbf16>
    %7 = vector.shape_cast %6 : vector<1x16x16x128xbf16> to vector<16x16x128xbf16>
    %c1 = arith.constant 1 : index
    %c1_15 = arith.constant 1 : index
    %c0_16 = arith.constant 0 : index
    %8 = vector.load %arg9[%c1, %c1_15, %c0_16] : memref<18x18x128xbf16, #tpu.memory_space<vmem>>, vector<16x16x128xbf16>
    tpu.vector_store %arg9[%c1, %c1_15, %c0_16], %7 {strides = array<i32>} : memref<18x18x128xbf16, #tpu.memory_space<vmem>>, vector<16x16x128xbf16>,
    %c0_17 = arith.constant 0 : index
    %c0_18 = arith.constant 0 : index
    %c0_19 = arith.constant 0 : index
    %c0_20 = arith.constant 0 : index
    %9 = vector.load %arg1[%c0_17, %c0_18, %c0_19, %c0_20] : memref<1x16x16x128xbf16, #tpu.memory_space<vmem>>, vector<1x16x16x128xbf16>
    %10 = vector.shape_cast %9 : vector<1x16x16x128xbf16> to vector<16x16x128xbf16>
    %11 = vector.shape_cast %10 : vector<16x16x128xbf16> to vector<256x128xbf16>
    %c0_21 = arith.constant 0 : index
    %c0_22 = arith.constant 0 : index
    %12 = vector.load %arg3[%c0_21, %c0_22] : memref<128x128xbf16, #tpu.memory_space<vmem>>, vector<128x128xbf16>
    %cst_23 = arith.constant dense<0.000000e+00> : vector<256x128xf32>
    %13 = tpu.matmul %11, %12, %cst_23 {dimension_numbers = #tpu.dot_dimension_numbers<[1], [0], [0], [1], [0, 0, 1, 1], [], []>} : vector<256x128xbf16>, vector<128x128xbf16>, vector<256x128xf32> -> vector<256x128xf32>
    %cst_24 = arith.constant dense<0.000000e+00> : vector<128xf32>
    %14 = vector.multi_reduction <add>, %13, %cst_24 [0] : vector<256x128xf32> to vector<128xf32>
    %15 = vector.shape_cast %14 : vector<128xf32> to vector<1x1x128xf32>
    %c0_25 = arith.constant 0 : index
    %c0_26 = arith.constant 0 : index
    %c0_27 = arith.constant 0 : index
    %16 = vector.load %arg7[%c0_25, %c0_26, %c0_27] : memref<1x1x128xf32, #tpu.memory_space<vmem>>, vector<1x1x128xf32>
    tpu.vector_store %arg7[%c0_25, %c0_26, %c0_27], %15 {strides = array<i32>} : memref<1x1x128xf32, #tpu.memory_space<vmem>>, vector<1x1x128xf32>,
    %17 = arith.mulf %13, %13 : vector<256x128xf32>
    %cst_28 = arith.constant dense<0.000000e+00> : vector<128xf32>
    %18 = vector.multi_reduction <add>, %17, %cst_28 [0] : vector<256x128xf32> to vector<128xf32>
    %19 = vector.shape_cast %18 : vector<128xf32> to vector<1x1x128xf32>
    %c0_29 = arith.constant 0 : index
    %c0_30 = arith.constant 0 : index
    %c0_31 = arith.constant 0 : index
    %20 = vector.load %arg8[%c0_29, %c0_30, %c0_31] : memref<1x1x128xf32, #tpu.memory_space<vmem>>, vector<1x1x128xf32>
    tpu.vector_store %arg8[%c0_29, %c0_30, %c0_31], %19 {strides = array<i32>} : memref<1x1x128xf32, #tpu.memory_space<vmem>>, vector<1x1x128xf32>,
    %cst_32 = arith.constant 0.000000e+00 : f32
    %21 = vector.broadcast %cst_32 : f32 to vector<256x128xf32>
    %c0_33 = arith.constant 0 : index
    %c0_34 = arith.constant 0 : index
    %c0_35 = arith.constant 0 : index
    %22 = vector.load %arg9[%c0_33, %c0_34, %c0_35] : memref<18x18x128xbf16, #tpu.memory_space<vmem>>, vector<16x16x128xbf16>
    %23 = vector.shape_cast %22 : vector<16x16x128xbf16> to vector<256x128xbf16>
    %c0_36 = arith.constant 0 : index
    %c1_37 = arith.constant 1 : index
    %c0_38 = arith.constant 0 : index
    %24 = vector.load %arg9[%c0_36, %c1_37, %c0_38] : memref<18x18x128xbf16, #tpu.memory_space<vmem>>, vector<16x16x128xbf16>
    %25 = vector.shape_cast %24 : vector<16x16x128xbf16> to vector<256x128xbf16>
    %26 = tpu.concatenate %23, %25 in 1 : vector<256x128xbf16>, vector<256x128xbf16> -> vector<256x256xbf16>
    %c0_39 = arith.constant 0 : index
    %c0_40 = arith.constant 0 : index
    %27 = vector.load %arg2[%c0_39, %c0_40] : memref<1152x128xbf16, #tpu.memory_space<vmem>>, vector<256x128xbf16>
    %cst_41 = arith.constant dense<0.000000e+00> : vector<256x128xf32>
    %28 = tpu.matmul %26, %27, %cst_41 {dimension_numbers = #tpu.dot_dimension_numbers<[1], [0], [0], [1], [0, 0, 1, 1], [], []>} : vector<256x256xbf16>, vector<256x128xbf16>, vector<256x128xf32> -> vector<256x128xf32>
    %29 = arith.addf %21, %28 : vector<256x128xf32>
    %c0_42 = arith.constant 0 : index
    %c2 = arith.constant 2 : index
    %c0_43 = arith.constant 0 : index
    %30 = vector.load %arg9[%c0_42, %c2, %c0_43] : memref<18x18x128xbf16, #tpu.memory_space<vmem>>, vector<16x16x128xbf16>
    %31 = vector.shape_cast %30 : vector<16x16x128xbf16> to vector<256x128xbf16>
    %c1_44 = arith.constant 1 : index
    %c0_45 = arith.constant 0 : index
    %c0_46 = arith.constant 0 : index
    %32 = vector.load %arg9[%c1_44, %c0_45, %c0_46] : memref<18x18x128xbf16, #tpu.memory_space<vmem>>, vector<16x16x128xbf16>
    %33 = vector.shape_cast %32 : vector<16x16x128xbf16> to vector<256x128xbf16>
    %34 = tpu.concatenate %31, %33 in 1 : vector<256x128xbf16>, vector<256x128xbf16> -> vector<256x256xbf16>
    %c256 = arith.constant 256 : index
    %c0_47 = arith.constant 0 : index
    %35 = vector.load %arg2[%c256, %c0_47] : memref<1152x128xbf16, #tpu.memory_space<vmem>>, vector<256x128xbf16>
    %cst_48 = arith.constant dense<0.000000e+00> : vector<256x128xf32>
    %36 = tpu.matmul %34, %35, %cst_48 {dimension_numbers = #tpu.dot_dimension_numbers<[1], [0], [0], [1], [0, 0, 1, 1], [], []>} : vector<256x256xbf16>, vector<256x128xbf16>, vector<256x128xf32> -> vector<256x128xf32>
    %37 = arith.addf %29, %36 : vector<256x128xf32>
    %c1_49 = arith.constant 1 : index
    %c1_50 = arith.constant 1 : index
    %c0_51 = arith.constant 0 : index
    %38 = vector.load %arg9[%c1_49, %c1_50, %c0_51] : memref<18x18x128xbf16, #tpu.memory_space<vmem>>, vector<16x16x128xbf16>
    %39 = vector.shape_cast %38 : vector<16x16x128xbf16> to vector<256x128xbf16>
    %c1_52 = arith.constant 1 : index
    %c2_53 = arith.constant 2 : index
    %c0_54 = arith.constant 0 : index
    %40 = vector.load %arg9[%c1_52, %c2_53, %c0_54] : memref<18x18x128xbf16, #tpu.memory_space<vmem>>, vector<16x16x128xbf16>
    %41 = vector.shape_cast %40 : vector<16x16x128xbf16> to vector<256x128xbf16>
    %42 = tpu.concatenate %39, %41 in 1 : vector<256x128xbf16>, vector<256x128xbf16> -> vector<256x256xbf16>
    %c512 = arith.constant 512 : index
    %c0_55 = arith.constant 0 : index
    %43 = vector.load %arg2[%c512, %c0_55] : memref<1152x128xbf16, #tpu.memory_space<vmem>>, vector<256x128xbf16>
    %cst_56 = arith.constant dense<0.000000e+00> : vector<256x128xf32>
    %44 = tpu.matmul %42, %43, %cst_56 {dimension_numbers = #tpu.dot_dimension_numbers<[1], [0], [0], [1], [0, 0, 1, 1], [], []>} : vector<256x256xbf16>, vector<256x128xbf16>, vector<256x128xf32> -> vector<256x128xf32>
    %45 = arith.addf %37, %44 : vector<256x128xf32>
    %c2_57 = arith.constant 2 : index
    %c0_58 = arith.constant 0 : index
    %c0_59 = arith.constant 0 : index
    %46 = vector.load %arg9[%c2_57, %c0_58, %c0_59] : memref<18x18x128xbf16, #tpu.memory_space<vmem>>, vector<16x16x128xbf16>
    %47 = vector.shape_cast %46 : vector<16x16x128xbf16> to vector<256x128xbf16>
    %c2_60 = arith.constant 2 : index
    %c1_61 = arith.constant 1 : index
    %c0_62 = arith.constant 0 : index
    %48 = vector.load %arg9[%c2_60, %c1_61, %c0_62] : memref<18x18x128xbf16, #tpu.memory_space<vmem>>, vector<16x16x128xbf16>
    %49 = vector.shape_cast %48 : vector<16x16x128xbf16> to vector<256x128xbf16>
    %50 = tpu.concatenate %47, %49 in 1 : vector<256x128xbf16>, vector<256x128xbf16> -> vector<256x256xbf16>
    %c768 = arith.constant 768 : index
    %c0_63 = arith.constant 0 : index
    %51 = vector.load %arg2[%c768, %c0_63] : memref<1152x128xbf16, #tpu.memory_space<vmem>>, vector<256x128xbf16>
    %cst_64 = arith.constant dense<0.000000e+00> : vector<256x128xf32>
    %52 = tpu.matmul %50, %51, %cst_64 {dimension_numbers = #tpu.dot_dimension_numbers<[1], [0], [0], [1], [0, 0, 1, 1], [], []>} : vector<256x256xbf16>, vector<256x128xbf16>, vector<256x128xf32> -> vector<256x128xf32>
    %53 = arith.addf %45, %52 : vector<256x128xf32>
    %c2_65 = arith.constant 2 : index
    %c2_66 = arith.constant 2 : index
    %c0_67 = arith.constant 0 : index
    %54 = vector.load %arg9[%c2_65, %c2_66, %c0_67] : memref<18x18x128xbf16, #tpu.memory_space<vmem>>, vector<16x16x128xbf16>
    %55 = vector.shape_cast %54 : vector<16x16x128xbf16> to vector<256x128xbf16>
    %c1024 = arith.constant 1024 : index
    %c0_68 = arith.constant 0 : index
    %56 = vector.load %arg2[%c1024, %c0_68] : memref<1152x128xbf16, #tpu.memory_space<vmem>>, vector<128x128xbf16>
    %cst_69 = arith.constant dense<0.000000e+00> : vector<256x128xf32>
    %57 = tpu.matmul %55, %56, %cst_69 {dimension_numbers = #tpu.dot_dimension_numbers<[1], [0], [0], [1], [0, 0, 1, 1], [], []>} : vector<256x128xbf16>, vector<128x128xbf16>, vector<256x128xf32> -> vector<256x128xf32>
    %58 = arith.addf %53, %57 : vector<256x128xf32>
    %cst_70 = arith.constant dense<0.000000e+00> : vector<128xf32>
    %59 = vector.multi_reduction <add>, %58, %cst_70 [0] : vector<256x128xf32> to vector<128xf32>
    %60 = vector.shape_cast %59 : vector<128xf32> to vector<1x1x128xf32>
    %c0_71 = arith.constant 0 : index
    %c0_72 = arith.constant 0 : index
    %c0_73 = arith.constant 0 : index
    %61 = vector.load %arg5[%c0_71, %c0_72, %c0_73] : memref<1x1x128xf32, #tpu.memory_space<vmem>>, vector<1x1x128xf32>
    tpu.vector_store %arg5[%c0_71, %c0_72, %c0_73], %60 {strides = array<i32>} : memref<1x1x128xf32, #tpu.memory_space<vmem>>, vector<1x1x128xf32>,
    %62 = arith.mulf %58, %58 : vector<256x128xf32>
    %cst_74 = arith.constant dense<0.000000e+00> : vector<128xf32>
    %63 = vector.multi_reduction <add>, %62, %cst_74 [0] : vector<256x128xf32> to vector<128xf32>
    %64 = vector.shape_cast %63 : vector<128xf32> to vector<1x1x128xf32>
    %c0_75 = arith.constant 0 : index
    %c0_76 = arith.constant 0 : index
    %c0_77 = arith.constant 0 : index
    %65 = vector.load %arg6[%c0_75, %c0_76, %c0_77] : memref<1x1x128xf32, #tpu.memory_space<vmem>>, vector<1x1x128xf32>
    tpu.vector_store %arg6[%c0_75, %c0_76, %c0_77], %64 {strides = array<i32>} : memref<1x1x128xf32, #tpu.memory_space<vmem>>, vector<1x1x128xf32>,
    %66 = vector.shape_cast %58 : vector<256x128xf32> to vector<16x16x128xf32>
    %67 = arith.truncf %66 : vector<16x16x128xf32> to vector<16x16x128xbf16>
    %c0_78 = arith.constant 0 : index
    %c0_79 = arith.constant 0 : index
    %c0_80 = arith.constant 0 : index
    %c0_81 = arith.constant 0 : index
    %68 = vector.load %arg4[%c0_78, %c0_79, %c0_80, %c0_81] : memref<1x16x16x128xbf16, #tpu.memory_space<vmem>>, vector<1x16x16x128xbf16>
    %69 = vector.shape_cast %68 : vector<1x16x16x128xbf16> to vector<16x16x128xbf16>
    %70 = vector.shape_cast %67 : vector<16x16x128xbf16> to vector<1x16x16x128xbf16>
    tpu.vector_store %arg4[%c0_78, %c0_79, %c0_80, %c0_81], %70 {strides = array<i32>} : memref<1x16x16x128xbf16, #tpu.memory_space<vmem>>, vector<1x16x16x128xbf16>,
    return
  }
  func.func @transform_0(%arg0: i32) -> (i32, i32, i32, i32) {
    %c0_i32 = arith.constant 0 : i32
    %c0_i32_0 = arith.constant 0 : i32
    %c0_i32_1 = arith.constant 0 : i32
    %c0_i32_2 = arith.constant 0 : i32
    return %arg0, %c0_i32, %c0_i32_0, %c0_i32_1 : i32, i32, i32, i32
  }
  func.func @transform_1(%arg0: i32) -> (i32, i32) {
    %c0_i32 = arith.constant 0 : i32
    %c0_i32_0 = arith.constant 0 : i32
    %c0_i32_1 = arith.constant 0 : i32
    return %c0_i32, %c0_i32_0 : i32, i32
  }
  func.func @transform_2(%arg0: i32) -> (i32, i32) {
    %c0_i32 = arith.constant 0 : i32
    %c0_i32_0 = arith.constant 0 : i32
    %c0_i32_1 = arith.constant 0 : i32
    return %c0_i32, %c0_i32_0 : i32, i32
  }
  func.func @transform_3(%arg0: i32) -> (i32, i32, i32, i32) {
    %c0_i32 = arith.constant 0 : i32
    %c0_i32_0 = arith.constant 0 : i32
    %c0_i32_1 = arith.constant 0 : i32
    %c0_i32_2 = arith.constant 0 : i32
    return %arg0, %c0_i32, %c0_i32_0, %c0_i32_1 : i32, i32, i32, i32
  }
  func.func @transform_4(%arg0: i32) -> (i32, i32, i32) {
    %c0_i32 = arith.constant 0 : i32
    %c0_i32_0 = arith.constant 0 : i32
    %c0_i32_1 = arith.constant 0 : i32
    return %arg0, %c0_i32, %c0_i32_0 : i32, i32, i32
  }
  func.func @transform_5(%arg0: i32) -> (i32, i32, i32) {
    %c0_i32 = arith.constant 0 : i32
    %c0_i32_0 = arith.constant 0 : i32
    %c0_i32_1 = arith.constant 0 : i32
    return %arg0, %c0_i32, %c0_i32_0 : i32, i32, i32
  }
  func.func @transform_6(%arg0: i32) -> (i32, i32, i32) {
    %c0_i32 = arith.constant 0 : i32
    %c0_i32_0 = arith.constant 0 : i32
    %c0_i32_1 = arith.constant 0 : i32
    return %arg0, %c0_i32, %c0_i32_0 : i32, i32, i32
  }
  func.func @transform_7(%arg0: i32) -> (i32, i32, i32) {
    %c0_i32 = arith.constant 0 : i32
    %c0_i32_0 = arith.constant 0 : i32
    %c0_i32_1 = arith.constant 0 : i32
    return %arg0, %c0_i32, %c0_i32_0 : i32, i32, i32
  }
}

</mosaic_0001>

<llo_original>
// kernel: tpu_custom_call.1
$region0: #{tpu_custom_call.1}
  #allocation0 [shape = 'u32[]', space=smem, size = 0x4, offset = 0x4, fixed_abs, tag = 'smem constant byte address 0x4 - core index']
  #allocation1 [shape = 'u32[144,128]{1,0:T(1,128)}', space=vmem, size = 0x12000, scoped, tag = 'internal scratch']
  %s0 = inlined_call_operand.hbm [shape: f32[16,128], index: 0, kind: input, shape index: {}]
  %s1 = inlined_call_operand.hbm [shape: f32[8,128], index: 1, kind: input, shape index: {}]
  %s2 = inlined_call_operand.hbm [shape: f32[16,128], index: 2, kind: output, shape index: {}]
  %s3 = sld [smem:[#allocation0]]
  $region49: #{tpu_custom_call.1} parent=0
    _
  %s5 = ssub.s32 1, %s3
  %s6 = scalar_select 0, %s5, %s3
  $region1: #{tpu_custom_call.1} parent=0
    #allocation2 [shape = 'u8[8192]{0}', space=vmem, size = 0x2000, scoped, tag = 'input window, operand 0']
    #allocation3 [shape = 's32[2]{0}', space=sflag, size = 0x8, scoped, tag = 'scoped memory for tpu_custom_call.1']
    #allocation4 [shape = 's32[2]{0}', space=sflag, size = 0x8, scoped, tag = 'scoped memory for tpu_custom_call.1']
    #allocation5 [shape = 'u8[4096]{0}', space=vmem, size = 0x1000, scoped, tag = 'input window, operand 1, single buffered']
    #allocation6 [shape = 's32[1]{0}', space=sflag, size = 0x4, scoped, tag = 'scoped memory for tpu_custom_call.1']
    #allocation7 [shape = 'u8[8192]{0}', space=vmem, size = 0x2000, scoped, tag = 'output window, operand 0']
    %7 = vsyncpa [#allocation3], 0
    %s8 = scalar_lea.sflag [#allocation3], 1
    %9 = vsyncpa %s8, 0
    %10 = vsyncpa [#allocation6], 0
    %11 = vsyncpa [#allocation4], 0
    %s12 = scalar_lea.sflag [#allocation4], 1
    %13 = vsyncpa %s12, 0
    loop: start=0, step=1, limit=4
    $region2: #{tpu_custom_call.1} parent=1 // loop_pre_header
      _
    $region3: #{tpu_custom_call.1} parent=1 // loop_header
      %s15 = sphi 0, %s19
      %p16 = scmp.ge.s32.totalorder %s15, 4
      %s25 = sphi 0, %s27
      %s28 = sphi 0, %s25
      %s29 = sphi 0, %s28
      %s45 = sphi 0, %s29
      %s49 = sphi 0, %s49
      %s51 = sphi 0, %s49
      %s52 = sphi 0, %s51
      %s66 = sphi 0, %s52
      %s72 = sphi 0, %s74
      %s75 = sphi 0, %s72
      %s76 = sphi 0, %s75
      %s92 = sphi 0, %s76
    $region4: #{tpu_custom_call.1} parent=1 // loop_header_branch
      %18 = sbr.rel (%p16) target = $region8
    $region5: #{tpu_custom_call.1} parent=1 // loop_body
      %s20 = ssub.s32 %s15, 1
      %s21 = ssub.s32 %s15, 2
      %s22 = sadd.s32 %s15, 1
      %s23 = ssub.s32 %s15, %s22
      %p24 = scmp.eq.s32.totalorder %s23, 0
      %s26 = sadd.s32 %s25, 1
      %s27 = scalar_select %p24, %s25, %s26
      %p30 = pneg %p24
      %p31 = scmp.eq.s32.totalorder %s15, 1
      %p32 = por %p30, %p31
      %p33 = scmp.ne.s32.totalorder %s25, %s28
      %p34 = scmp.eq.s32.totalorder %s15, 0
      %p35 = por %p33, %p34
      %p36 = scmp.ne.s32.totalorder %s25, %s28
      %p37 = scmp.eq.s32.totalorder %s20, 1
      %p38 = por %p36, %p37
      %p39 = scmp.ne.s32.totalorder %s28, %s29
      %p40 = scmp.eq.s32.totalorder %s20, 0
      %p41 = por %p39, %p40
      %p42 = scmp.ne.s32.totalorder %s28, %s29
      %p43 = scmp.eq.s32.totalorder %s21, 1
      %p44 = por %p42, %p43
      %p46 = scmp.ne.s32.totalorder %s29, %s45
      %p47 = scmp.eq.s32.totalorder %s21, 0
      %p48 = por %p46, %p47
      %s50 = sadd.s32 %s49, 1
      %p53 = scmp.eq.s32.totalorder %s15, 1
      %p54 = scmp.ne.s32.totalorder %s49, %s51
      %p55 = scmp.eq.s32.totalorder %s15, 0
      %p56 = por %p54, %p55
      %p57 = scmp.ne.s32.totalorder %s49, %s51
      %p58 = scmp.eq.s32.totalorder %s20, 1
      %p59 = por %p57, %p58
      %p60 = scmp.ne.s32.totalorder %s51, %s52
      %p61 = scmp.eq.s32.totalorder %s20, 0
      %p62 = por %p60, %p61
      %p63 = scmp.ne.s32.totalorder %s51, %s52
      %p64 = scmp.eq.s32.totalorder %s21, 1
      %p65 = por %p63, %p64
      %p67 = scmp.ne.s32.totalorder %s52, %s66
      %p68 = scmp.eq.s32.totalorder %s21, 0
      %p69 = por %p67, %p68
      %s70 = ssub.s32 %s15, %s22
      %p71 = scmp.eq.s32.totalorder %s70, 0
      %s73 = sadd.s32 %s72, 1
      %s74 = scalar_select %p71, %s72, %s73
      %p77 = pneg %p71
      %p78 = scmp.eq.s32.totalorder %s15, 1
      %p79 = por %p77, %p78
      %p80 = scmp.ne.s32.totalorder %s72, %s75
      %p81 = scmp.eq.s32.totalorder %s15, 0
      %p82 = por %p80, %p81
      %p83 = scmp.ne.s32.totalorder %s72, %s75
      %p84 = scmp.eq.s32.totalorder %s20, 1
      %p85 = por %p83, %p84
      %p86 = scmp.ne.s32.totalorder %s75, %s76
      %p87 = scmp.eq.s32.totalorder %s20, 0
      %p88 = por %p86, %p87
      %p89 = scmp.ne.s32.totalorder %s75, %s76
      %p90 = scmp.eq.s32.totalorder %s21, 1
      %p91 = por %p89, %p90
      %p93 = scmp.ne.s32.totalorder %s76, %s92
      %p94 = scmp.eq.s32.totalorder %s21, 0
      %p95 = por %p93, %p94
      %p96 = scmp.le.s32.totalorder 1, %s15
      %p97 = scmp.lt.s32.totalorder %s15, 3
      %p98 = pnand %p96, %p97
      %p99 = pneg %p98
      // Predicated region
      $region9: #{tpu_custom_call.1} parent=5 // pred_check
        _
      $region10: #{tpu_custom_call.1} parent=5 // pred_check_branch
        %101 = sbr.rel (%p98) target = $region12
      $region11: #{tpu_custom_call.1} parent=5 // pred_region
        %s102 = ssub.s32 %s15, 1
        // Predicated region
        $region13: #{tpu_custom_call.1} parent=11 // pred_check
          %p103 = pneg %p62
        $region14: #{tpu_custom_call.1} parent=11 // pred_check_branch
          %105 = sbr.rel (%p103) target = $region16
        $region15: #{tpu_custom_call.1} parent=11 // pred_region
          %s107 = ssub.s32 128, 128
          %108 = vsyncadd [#allocation6], %s107
          %s110 = sshll.u32 [#allocation5], 4
          %s111 = int_to_ptr.vmem [resolvable:$true] %s110
          %113 = dma.hbm_to_vmem [thread:$0]  %s1, 128, %s111, [#allocation6]
        $region16: #{tpu_custom_call.1} parent=11 // pred_fallthru
          _
      $region12: #{tpu_custom_call.1} parent=5 // pred_fallthru
        _
      %p114 = scmp.lt.s32.totalorder %s15, 2
      // Predicated region
      $region17: #{tpu_custom_call.1} parent=5 // pred_check
        %p115 = pneg %p114
      $region18: #{tpu_custom_call.1} parent=5 // pred_check_branch
        %117 = sbr.rel (%p115) target = $region20
      $region19: #{tpu_custom_call.1} parent=5 // pred_region
        // Predicated region
        $region21: #{tpu_custom_call.1} parent=19 // pred_check
          %p118 = pneg %p35
        $region22: #{tpu_custom_call.1} parent=19 // pred_check_branch
          %120 = sbr.rel (%p118) target = $region24
        $region23: #{tpu_custom_call.1} parent=19 // pred_region
          %s121 = sand.u32 %s25, 1
          %s122 = scalar_lea.sflag [#allocation3], %s121
          %s123 = sand.u32 %s25, 1
          %s124 = smul.addr %s123, 8
          %s125 = scalar_lea.vmem [#allocation2], %s124
          %s127 = ssub.s32 128, 128
          %128 = vsyncadd %s122, %s127
          %s129 = smul.addr %s15, 128
          %s130 = scalar_lea.hbm %s0, %s129
          %s132 = sshll.u32 %s125, 4
          %s133 = int_to_ptr.vmem [resolvable:$true] %s132
          %135 = dma.hbm_to_vmem [thread:$0]  %s130, 128, %s133, %s122
        $region24: #{tpu_custom_call.1} parent=19 // pred_fallthru
          _
      $region20: #{tpu_custom_call.1} parent=5 // pred_fallthru
        _
      %p136 = scmp.le.s32.totalorder 1, %s15
      %p137 = scmp.lt.s32.totalorder %s15, 3
      %p138 = pnand %p136, %p137
      %p139 = pneg %p138
      // Predicated region
      $region25: #{tpu_custom_call.1} parent=5 // pred_check
        _
      $region26: #{tpu_custom_call.1} parent=5 // pred_check_branch
        %141 = sbr.rel (%p138) target = $region28
      $region27: #{tpu_custom_call.1} parent=5 // pred_region
        %s142 = ssub.s32 %s15, 1
        %s143 = sand.u32 %s28, 1
        %s144 = scalar_lea.sflag [#allocation3], %s143
        %s145 = sand.u32 %s28, 1
        %s146 = smul.addr %s145, 8
        %s147 = scalar_lea.vmem [#allocation2], %s146
        // Predicated region
        $region29: #{tpu_custom_call.1} parent=27 // pred_check
          %p148 = pneg %p41
        $region30: #{tpu_custom_call.1} parent=27 // pred_check_branch
          %150 = sbr.rel (%p148) target = $region32
        $region31: #{tpu_custom_call.1} parent=27 // pred_region
          %151 = dma.done %s144, 128
        $region32: #{tpu_custom_call.1} parent=27 // pred_fallthru
          _
        // Predicated region
        $region33: #{tpu_custom_call.1} parent=27 // pred_check
          %p152 = pneg %p62
        $region34: #{tpu_custom_call.1} parent=27 // pred_check_branch
          %154 = sbr.rel (%p152) target = $region36
        $region35: #{tpu_custom_call.1} parent=27 // pred_region
          %155 = dma.done [#allocation6], 128
        $region36: #{tpu_custom_call.1} parent=27 // pred_fallthru
          _
        %s156 = sand.u32 %s28, 1
        %s157 = scalar_lea.sflag [#allocation3], %s156
        %s158 = sand.u32 %s28, 1
        %s159 = smul.addr %s158, 8
        %s160 = scalar_lea.vmem [#allocation2], %s159
        %p161 = pneg %p41
        %p162 = pneg %p38
        %p163 = pneg %p62
        %p164 = pneg %p59
        %p165 = pneg %p88
        %p166 = pneg %p85
        %s167 = sand.u32 %s75, 1
        %s168 = scalar_lea.sflag [#allocation4], %s167
        %s169 = sand.u32 %s75, 1
        %s170 = smul.addr %s169, 8
        %s171 = scalar_lea.vmem [#allocation7], %s170
        %v172 = vld [vmem:[%s147] sm:$0xff]
        %v173 = vld [vmem:[#allocation5] sm:$0xff]
        %v174 = vadd.f32 %v172, %v173
        %175 = vst [vmem:[%s171] sm:$0xff] %v174
        %s176 = sand.u32 %s75, 1
        %s177 = scalar_lea.sflag [#allocation4], %s176
        %s178 = sand.u32 %s75, 1
        %s179 = smul.addr %s178, 8
        %s180 = scalar_lea.vmem [#allocation7], %s179
        // Predicated region
        $region37: #{tpu_custom_call.1} parent=27 // pred_check
          %p181 = pneg %p85
        $region38: #{tpu_custom_call.1} parent=27 // pred_check_branch
          %183 = sbr.rel (%p181) target = $region40
        $region39: #{tpu_custom_call.1} parent=27 // pred_region
          %s185 = ssub.s32 128, 128
          %186 = vsyncadd %s177, %s185
          %s187 = smul.addr %s20, 128
          %s188 = scalar_lea.hbm %s2, %s187
          %s190 = sshll.u32 %s180, 4
          %s191 = int_to_ptr.vmem [resolvable:$true] %s190
          %193 = dma.vmem_to_hbm [thread:$0]  %s191, 128, %s188, %s177
        $region40: #{tpu_custom_call.1} parent=27 // pred_fallthru
          _
      $region28: #{tpu_custom_call.1} parent=5 // pred_fallthru
        _
      %p194 = scmp.le.s32.totalorder 2, %s15
      // Predicated region
      $region41: #{tpu_custom_call.1} parent=5 // pred_check
        %p195 = pneg %p194
      $region42: #{tpu_custom_call.1} parent=5 // pred_check_branch
        %197 = sbr.rel (%p195) target = $region44
      $region43: #{tpu_custom_call.1} parent=5 // pred_region
        %s198 = ssub.s32 %s15, 2
        // Predicated region
        $region45: #{tpu_custom_call.1} parent=43 // pred_check
          %p199 = pneg %p91
        $region46: #{tpu_custom_call.1} parent=43 // pred_check_branch
          %201 = sbr.rel (%p199) target = $region48
        $region47: #{tpu_custom_call.1} parent=43 // pred_region
          %s202 = sand.u32 %s76, 1
          %s203 = scalar_lea.sflag [#allocation4], %s202
          %s204 = sand.u32 %s76, 1
          %s205 = smul.addr %s204, 8
          %s206 = scalar_lea.vmem [#allocation7], %s205
          %207 = dma.done %s203, 128
        $region48: #{tpu_custom_call.1} parent=43 // pred_fallthru
          _
      $region44: #{tpu_custom_call.1} parent=5 // pred_fallthru
        _
    $region6: #{tpu_custom_call.1} parent=1 // loop_footer
      %s19 = sadd.s32 1, %s15
    $region7: #{tpu_custom_call.1} parent=1 // loop_footer_branch
      %14 = sbr.rel target = $region3
    $region8: #{tpu_custom_call.1} parent=1 // loop_exit
      _
    %208 = vsyncpa [#allocation3], 1
    %s209 = scalar_lea.sflag [#allocation3], 1
    %210 = vsyncpa %s209, 1
    %211 = vsyncpa [#allocation6], 1
    %212 = vsyncpa [#allocation4], 1
    %s213 = scalar_lea.sflag [#allocation4], 1
    %214 = vsyncpa %s213, 1

// kernel: tpu_custom_call.1
$region0: #{tpu_custom_call.1}
  #allocation0 [shape = 'u32[]', space=smem, size = 0x4, offset = 0x4, fixed_abs, tag = 'smem constant byte address 0x4 - core index']
  #allocation1 [shape = 'u32[144,128]{1,0:T(1,128)}', space=vmem, size = 0x12000, scoped, tag = 'internal scratch']
  #allocation2 [shape = 'bf16[18,18,128]{2,1,0:T(8,128)(2,1)}', space=vmem, size = 0x1b000, scoped, tag = 'scratch operand']
  %s0 = inlined_call_operand.hbm [shape: bf16[2,16,16,128], index: 0, kind: input, shape index: {}]
  %s1 = inlined_call_operand.hbm [shape: bf16[1152,128], index: 1, kind: input, shape index: {}]
  %s2 = inlined_call_operand.hbm [shape: bf16[128,128], index: 2, kind: input, shape index: {}]
  %s3 = inlined_call_operand.hbm [shape: bf16[2,16,16,128], index: 3, kind: output, shape index: {0}]
  %s4 = inlined_call_operand.hbm [shape: f32[2,1,128], index: 4, kind: output, shape index: {1}]
  %s5 = inlined_call_operand.hbm [shape: f32[2,1,128], index: 5, kind: output, shape index: {2}]
  %s6 = inlined_call_operand.hbm [shape: f32[2,1,128], index: 6, kind: output, shape index: {3}]
  %s7 = inlined_call_operand.hbm [shape: f32[2,1,128], index: 7, kind: output, shape index: {4}]
  %8 = xla_tuple %s3, %s4, %s5, %s6, %s7
  %s9 = sld [smem:[#allocation0]]
  $region89: #{tpu_custom_call.1} parent=0
    _
  %s11 = ssub.s32 1, %s9
  %s12 = scalar_select 0, %s11, %s9
  $region1: #{tpu_custom_call.1} parent=0
    #allocation3 [shape = 'u8[131072]{0}', space=vmem, size = 0x20000, scoped, tag = 'input window, operand 0']
    #allocation4 [shape = 's32[2]{0}', space=sflag, size = 0x8, scoped, tag = 'scoped memory for tpu_custom_call.1']
    #allocation5 [shape = 's32[2]{0}', space=sflag, size = 0x8, scoped, tag = 'scoped memory for tpu_custom_call.1']
    #allocation6 [shape = 'u8[294912]{0}', space=vmem, size = 0x48000, scoped, tag = 'input window, operand 1, single buffered']
    #allocation7 [shape = 's32[1]{0}', space=sflag, size = 0x4, scoped, tag = 'scoped memory for tpu_custom_call.1']
    #allocation8 [shape = 'u8[32768]{0}', space=vmem, size = 0x8000, scoped, tag = 'input window, operand 2, single buffered']
    #allocation9 [shape = 'u8[131072]{0}', space=vmem, size = 0x20000, scoped, tag = 'output window, operand 0']
    #allocation10 [shape = 'u8[1024]{0}', space=vmem, size = 0x400, scoped, tag = 'output window, operand 1']
    #allocation11 [shape = 's32[2]{0}', space=sflag, size = 0x8, scoped, tag = 'scoped memory for tpu_custom_call.1']
    #allocation12 [shape = 'u8[1024]{0}', space=vmem, size = 0x400, scoped, tag = 'output window, operand 2']
    #allocation13 [shape = 'u8[1024]{0}', space=vmem, size = 0x400, scoped, tag = 'output window, operand 3']
    #allocation14 [shape = 's32[2]{0}', space=sflag, size = 0x8, scoped, tag = 'scoped memory for tpu_custom_call.1']
    #allocation15 [shape = 'u8[1024]{0}', space=vmem, size = 0x400, scoped, tag = 'output window, operand 4']
    %13 = vsyncpa [#allocation4], 0
    %s14 = scalar_lea.sflag [#allocation4], 1
    %15 = vsyncpa %s14, 0
    %16 = vsyncpa [#allocation7], 0
    %17 = vsyncpa [#allocation5], 0
    %s18 = scalar_lea.sflag [#allocation5], 1
    %19 = vsyncpa %s18, 0
    %20 = vsyncpa [#allocation11], 0
    %s21 = scalar_lea.sflag [#allocation11], 1
    %22 = vsyncpa %s21, 0
    %23 = vsyncpa [#allocation14], 0
    %s24 = scalar_lea.sflag [#allocation14], 1
    %25 = vsyncpa %s24, 0
    loop: start=0, step=1, limit=4
    $region2: #{tpu_custom_call.1} parent=1 // loop_pre_header
      _
    $region3: #{tpu_custom_call.1} parent=1 // loop_header
      %s27 = sphi 0, %s31
      %p28 = scmp.ge.s32.totalorder %s27, 4
      %s37 = sphi 0, %s39
      %s40 = sphi 0, %s37
      %s41 = sphi 0, %s40
      %s57 = sphi 0, %s41
      %s61 = sphi 0, %s61
      %s63 = sphi 0, %s61
      %s64 = sphi 0, %s63
      %s78 = sphi 0, %s64
      %s82 = sphi 0, %s82
      %s84 = sphi 0, %s82
      %s85 = sphi 0, %s84
      %s99 = sphi 0, %s85
      %s105 = sphi 0, %s107
      %s108 = sphi 0, %s105
      %s109 = sphi 0, %s108
      %s125 = sphi 0, %s109
      %s131 = sphi 0, %s133
      %s134 = sphi 0, %s131
      %s135 = sphi 0, %s134
      %s151 = sphi 0, %s135
      %s157 = sphi 0, %s159
      %s160 = sphi 0, %s157
      %s161 = sphi 0, %s160
      %s177 = sphi 0, %s161
      %s183 = sphi 0, %s185
      %s186 = sphi 0, %s183
      %s187 = sphi 0, %s186
      %s203 = sphi 0, %s187
      %s209 = sphi 0, %s211
      %s212 = sphi 0, %s209
      %s213 = sphi 0, %s212
      %s229 = sphi 0, %s213
    $region4: #{tpu_custom_call.1} parent=1 // loop_header_branch
      %30 = sbr.rel (%p28) target = $region8
    $region5: #{tpu_custom_call.1} parent=1 // loop_body
      %s32 = ssub.s32 %s27, 1
      %s33 = ssub.s32 %s27, 2
      %s34 = sadd.s32 %s27, 1
      %s35 = ssub.s32 %s27, %s34
      %p36 = scmp.eq.s32.totalorder %s35, 0
      %s38 = sadd.s32 %s37, 1
      %s39 = scalar_select %p36, %s37, %s38
      %p42 = pneg %p36
      %p43 = scmp.eq.s32.totalorder %s27, 1
      %p44 = por %p42, %p43
      %p45 = scmp.ne.s32.totalorder %s37, %s40
      %p46 = scmp.eq.s32.totalorder %s27, 0
      %p47 = por %p45, %p46
      %p48 = scmp.ne.s32.totalorder %s37, %s40
      %p49 = scmp.eq.s32.totalorder %s32, 1
      %p50 = por %p48, %p49
      %p51 = scmp.ne.s32.totalorder %s40, %s41
      %p52 = scmp.eq.s32.totalorder %s32, 0
      %p53 = por %p51, %p52
      %p54 = scmp.ne.s32.totalorder %s40, %s41
      %p55 = scmp.eq.s32.totalorder %s33, 1
      %p56 = por %p54, %p55
      %p58 = scmp.ne.s32.totalorder %s41, %s57
      %p59 = scmp.eq.s32.totalorder %s33, 0
      %p60 = por %p58, %p59
      %s62 = sadd.s32 %s61, 1
      %p65 = scmp.eq.s32.totalorder %s27, 1
      %p66 = scmp.ne.s32.totalorder %s61, %s63
      %p67 = scmp.eq.s32.totalorder %s27, 0
      %p68 = por %p66, %p67
      %p69 = scmp.ne.s32.totalorder %s61, %s63
      %p70 = scmp.eq.s32.totalorder %s32, 1
      %p71 = por %p69, %p70
      %p72 = scmp.ne.s32.totalorder %s63, %s64
      %p73 = scmp.eq.s32.totalorder %s32, 0
      %p74 = por %p72, %p73
      %p75 = scmp.ne.s32.totalorder %s63, %s64
      %p76 = scmp.eq.s32.totalorder %s33, 1
      %p77 = por %p75, %p76
      %p79 = scmp.ne.s32.totalorder %s64, %s78
      %p80 = scmp.eq.s32.totalorder %s33, 0
      %p81 = por %p79, %p80
      %s83 = sadd.s32 %s82, 1
      %p86 = scmp.eq.s32.totalorder %s27, 1
      %p87 = scmp.ne.s32.totalorder %s82, %s84
      %p88 = scmp.eq.s32.totalorder %s27, 0
      %p89 = por %p87, %p88
      %p90 = scmp.ne.s32.totalorder %s82, %s84
      %p91 = scmp.eq.s32.totalorder %s32, 1
      %p92 = por %p90, %p91
      %p93 = scmp.ne.s32.totalorder %s84, %s85
      %p94 = scmp.eq.s32.totalorder %s32, 0
      %p95 = por %p93, %p94
      %p96 = scmp.ne.s32.totalorder %s84, %s85
      %p97 = scmp.eq.s32.totalorder %s33, 1
      %p98 = por %p96, %p97
      %p100 = scmp.ne.s32.totalorder %s85, %s99
      %p101 = scmp.eq.s32.totalorder %s33, 0
      %p102 = por %p100, %p101
      %s103 = ssub.s32 %s27, %s34
      %p104 = scmp.eq.s32.totalorder %s103, 0
      %s106 = sadd.s32 %s105, 1
      %s107 = scalar_select %p104, %s105, %s106
      %p110 = pneg %p104
      %p111 = scmp.eq.s32.totalorder %s27, 1
      %p112 = por %p110, %p111
      %p113 = scmp.ne.s32.totalorder %s105, %s108
      %p114 = scmp.eq.s32.totalorder %s27, 0
      %p115 = por %p113, %p114
      %p116 = scmp.ne.s32.totalorder %s105, %s108
      %p117 = scmp.eq.s32.totalorder %s32, 1
      %p118 = por %p116, %p117
      %p119 = scmp.ne.s32.totalorder %s108, %s109
      %p120 = scmp.eq.s32.totalorder %s32, 0
      %p121 = por %p119, %p120
      %p122 = scmp.ne.s32.totalorder %s108, %s109
      %p123 = scmp.eq.s32.totalorder %s33, 1
      %p124 = por %p122, %p123
      %p126 = scmp.ne.s32.totalorder %s109, %s125
      %p127 = scmp.eq.s32.totalorder %s33, 0
      %p128 = por %p126, %p127
      %s129 = ssub.s32 %s27, %s34
      %p130 = scmp.eq.s32.totalorder %s129, 0
      %s132 = sadd.s32 %s131, 1
      %s133 = scalar_select %p130, %s131, %s132
      %p136 = pneg %p130
      %p137 = scmp.eq.s32.totalorder %s27, 1
      %p138 = por %p136, %p137
      %p139 = scmp.ne.s32.totalorder %s131, %s134
      %p140 = scmp.eq.s32.totalorder %s27, 0
      %p141 = por %p139, %p140
      %p142 = scmp.ne.s32.totalorder %s131, %s134
      %p143 = scmp.eq.s32.totalorder %s32, 1
      %p144 = por %p142, %p143
      %p145 = scmp.ne.s32.totalorder %s134, %s135
      %p146 = scmp.eq.s32.totalorder %s32, 0
      %p147 = por %p145, %p146
      %p148 = scmp.ne.s32.totalorder %s134, %s135
      %p149 = scmp.eq.s32.totalorder %s33, 1
      %p150 = por %p148, %p149
      %p152 = scmp.ne.s32.totalorder %s135, %s151
      %p153 = scmp.eq.s32.totalorder %s33, 0
      %p154 = por %p152, %p153
      %s155 = ssub.s32 %s27, %s34
      %p156 = scmp.eq.s32.totalorder %s155, 0
      %s158 = sadd.s32 %s157, 1
      %s159 = scalar_select %p156, %s157, %s158
      %p162 = pneg %p156
      %p163 = scmp.eq.s32.totalorder %s27, 1
      %p164 = por %p162, %p163
      %p165 = scmp.ne.s32.totalorder %s157, %s160
      %p166 = scmp.eq.s32.totalorder %s27, 0
      %p167 = por %p165, %p166
      %p168 = scmp.ne.s32.totalorder %s157, %s160
      %p169 = scmp.eq.s32.totalorder %s32, 1
      %p170 = por %p168, %p169
      %p171 = scmp.ne.s32.totalorder %s160, %s161
      %p172 = scmp.eq.s32.totalorder %s32, 0
      %p173 = por %p171, %p172
      %p174 = scmp.ne.s32.totalorder %s160, %s161
      %p175 = scmp.eq.s32.totalorder %s33, 1
      %p176 = por %p174, %p175
      %p178 = scmp.ne.s32.totalorder %s161, %s177
      %p179 = scmp.eq.s32.totalorder %s33, 0
      %p180 = por %p178, %p179
      %s181 = ssub.s32 %s27, %s34
      %p182 = scmp.eq.s32.totalorder %s181, 0
      %s184 = sadd.s32 %s183, 1
      %s185 = scalar_select %p182, %s183, %s184
      %p188 = pneg %p182
      %p189 = scmp.eq.s32.totalorder %s27, 1
      %p190 = por %p188, %p189
      %p191 = scmp.ne.s32.totalorder %s183, %s186
      %p192 = scmp.eq.s32.totalorder %s27, 0
      %p193 = por %p191, %p192
      %p194 = scmp.ne.s32.totalorder %s183, %s186
      %p195 = scmp.eq.s32.totalorder %s32, 1
      %p196 = por %p194, %p195
      %p197 = scmp.ne.s32.totalorder %s186, %s187
      %p198 = scmp.eq.s32.totalorder %s32, 0
      %p199 = por %p197, %p198
      %p200 = scmp.ne.s32.totalorder %s186, %s187
      %p201 = scmp.eq.s32.totalorder %s33, 1
      %p202 = por %p200, %p201
      %p204 = scmp.ne.s32.totalorder %s187, %s203
      %p205 = scmp.eq.s32.totalorder %s33, 0
      %p206 = por %p204, %p205
      %s207 = ssub.s32 %s27, %s34
      %p208 = scmp.eq.s32.totalorder %s207, 0
      %s210 = sadd.s32 %s209, 1
      %s211 = scalar_select %p208, %s209, %s210
      %p214 = pneg %p208
      %p215 = scmp.eq.s32.totalorder %s27, 1
      %p216 = por %p214, %p215
      %p217 = scmp.ne.s32.totalorder %s209, %s212
      %p218 = scmp.eq.s32.totalorder %s27, 0
      %p219 = por %p217, %p218
      %p220 = scmp.ne.s32.totalorder %s209, %s212
      %p221 = scmp.eq.s32.totalorder %s32, 1
      %p222 = por %p220, %p221
      %p223 = scmp.ne.s32.totalorder %s212, %s213
      %p224 = scmp.eq.s32.totalorder %s32, 0
      %p225 = por %p223, %p224
      %p226 = scmp.ne.s32.totalorder %s212, %s213
      %p227 = scmp.eq.s32.totalorder %s33, 1
      %p228 = por %p226, %p227
      %p230 = scmp.ne.s32.totalorder %s213, %s229
      %p231 = scmp.eq.s32.totalorder %s33, 0
      %p232 = por %p230, %p231
      %p233 = scmp.le.s32.totalorder 1, %s27
      %p234 = scmp.lt.s32.totalorder %s27, 3
      %p235 = pnand %p233, %p234
      %p236 = pneg %p235
      // Predicated region
      $region9: #{tpu_custom_call.1} parent=5 // pred_check
        _
      $region10: #{tpu_custom_call.1} parent=5 // pred_check_branch
        %238 = sbr.rel (%p235) target = $region12
      $region11: #{tpu_custom_call.1} parent=5 // pred_region
        %s239 = ssub.s32 %s27, 1
        // Predicated region
        $region13: #{tpu_custom_call.1} parent=11 // pred_check
          %p240 = pneg %p74
        $region14: #{tpu_custom_call.1} parent=11 // pred_check_branch
          %242 = sbr.rel (%p240) target = $region16
        $region15: #{tpu_custom_call.1} parent=11 // pred_region
          %s244 = ssub.s32 9216, 9216
          %245 = vsyncadd [#allocation7], %s244
          %s246 = sshll.u32 [#allocation6], 4
          %s247 = int_to_ptr.vmem [resolvable:$true] %s246
          %252 = dma.hbm_to_vmem [thread:$0]  %s1, 9216, %s247, [#allocation7], 64, 64, 4
        $region16: #{tpu_custom_call.1} parent=11 // pred_fallthru
          _
        // Predicated region
        $region17: #{tpu_custom_call.1} parent=11 // pred_check
          %p253 = pneg %p95
        $region18: #{tpu_custom_call.1} parent=11 // pred_check_branch
          %255 = sbr.rel (%p253) target = $region20
        $region19: #{tpu_custom_call.1} parent=11 // pred_region
          %s257 = ssub.s32 1024, 1024
          %258 = vsyncadd [#allocation7], %s257
          %s259 = sshll.u32 [#allocation8], 4
          %s260 = int_to_ptr.vmem [resolvable:$true] %s259
          %265 = dma.hbm_to_vmem [thread:$0]  %s2, 1024, %s260, [#allocation7], 64, 64, 4
        $region20: #{tpu_custom_call.1} parent=11 // pred_fallthru
          _
      $region12: #{tpu_custom_call.1} parent=5 // pred_fallthru
        _
      %p266 = scmp.lt.s32.totalorder %s27, 2
      // Predicated region
      $region21: #{tpu_custom_call.1} parent=5 // pred_check
        %p267 = pneg %p266
      $region22: #{tpu_custom_call.1} parent=5 // pred_check_branch
        %269 = sbr.rel (%p267) target = $region24
      $region23: #{tpu_custom_call.1} parent=5 // pred_region
        // Predicated region
        $region25: #{tpu_custom_call.1} parent=23 // pred_check
          %p270 = pneg %p47
        $region26: #{tpu_custom_call.1} parent=23 // pred_check_branch
          %272 = sbr.rel (%p270) target = $region28
        $region27: #{tpu_custom_call.1} parent=23 // pred_region
          %s273 = sand.u32 %s37, 1
          %s274 = scalar_lea.sflag [#allocation4], %s273
          %s275 = sand.u32 %s37, 1
          %s276 = smul.addr %s275, 128
          %s277 = scalar_lea.vmem [#allocation3], %s276
          %s279 = ssub.s32 2048, 2048
          %280 = vsyncadd %s274, %s279
          %s281 = smul.addr %s27, 32
          %s282 = smul.addr %s281, 64
          %s283 = scalar_lea.hbm %s0, %s282
          %s284 = sshll.u32 %s277, 4
          %s285 = int_to_ptr.vmem [resolvable:$true] %s284
          %290 = dma.hbm_to_vmem [thread:$0]  %s283, 2048, %s285, %s274, 64, 64, 4
        $region28: #{tpu_custom_call.1} parent=23 // pred_fallthru
          _
      $region24: #{tpu_custom_call.1} parent=5 // pred_fallthru
        _
      %p291 = scmp.le.s32.totalorder 1, %s27
      %p292 = scmp.lt.s32.totalorder %s27, 3
      %p293 = pnand %p291, %p292
      %p294 = pneg %p293
      // Predicated region
      $region29: #{tpu_custom_call.1} parent=5 // pred_check
        _
      $region30: #{tpu_custom_call.1} parent=5 // pred_check_branch
        %296 = sbr.rel (%p293) target = $region32
      $region31: #{tpu_custom_call.1} parent=5 // pred_region
        %s297 = ssub.s32 %s27, 1
        %s298 = sand.u32 %s40, 1
        %s299 = scalar_lea.sflag [#allocation4], %s298
        %s300 = sand.u32 %s40, 1
        %s301 = smul.addr %s300, 128
        %s302 = scalar_lea.vmem [#allocation3], %s301
        // Predicated region
        $region33: #{tpu_custom_call.1} parent=31 // pred_check
          %p303 = pneg %p53
        $region34: #{tpu_custom_call.1} parent=31 // pred_check_branch
          %305 = sbr.rel (%p303) target = $region36
        $region35: #{tpu_custom_call.1} parent=31 // pred_region
          %306 = dma.done %s299, 2048
        $region36: #{tpu_custom_call.1} parent=31 // pred_fallthru
          _
        // Predicated region
        $region37: #{tpu_custom_call.1} parent=31 // pred_check
          %p307 = pneg %p74
        $region38: #{tpu_custom_call.1} parent=31 // pred_check_branch
          %309 = sbr.rel (%p307) target = $region40
        $region39: #{tpu_custom_call.1} parent=31 // pred_region
          %310 = dma.done [#allocation7], 9216
        $region40: #{tpu_custom_call.1} parent=31 // pred_fallthru
          _
        // Predicated region
        $region41: #{tpu_custom_call.1} parent=31 // pred_check
          %p311 = pneg %p95
        $region42: #{tpu_custom_call.1} parent=31 // pred_check_branch
          %313 = sbr.rel (%p311) target = $region44
        $region43: #{tpu_custom_call.1} parent=31 // pred_region
          %314 = dma.done [#allocation7], 1024
        $region44: #{tpu_custom_call.1} parent=31 // pred_fallthru
          _
        %s315 = sand.u32 %s40, 1
        %s316 = scalar_lea.sflag [#allocation4], %s315
        %s317 = sand.u32 %s40, 1
        %s318 = smul.addr %s317, 128
        %s319 = scalar_lea.vmem [#allocation3], %s318
        %p320 = pneg %p53
        %p321 = pneg %p50
        %p322 = pneg %p74
        %p323 = pneg %p71
        %p324 = pneg %p95
        %p325 = pneg %p92
        %p326 = pneg %p121
        %p327 = pneg %p118
        %s328 = sand.u32 %s108, 1
        %s329 = scalar_lea.sflag [#allocation5], %s328
        %s330 = sand.u32 %s108, 1
        %s331 = smul.addr %s330, 128
        %s332 = scalar_lea.vmem [#allocation9], %s331
        %p333 = pneg %p147
        %p334 = pneg %p144
        %s335 = sand.u32 %s32, 1
        %s336 = scalar_lea.sflag [#allocation11], %s335
        %s337 = sand.u32 %s134, 1
        %s338 = scalar_lea.vmem [#allocation10], %s337
        %p339 = pneg %p173
        %p340 = pneg %p170
        %s341 = sand.u32 %s32, 1
        %s342 = scalar_lea.sflag [#allocation11], %s341
        %s343 = sand.u32 %s160, 1
        %s344 = scalar_lea.vmem [#allocation12], %s343
        %p345 = pneg %p199
        %p346 = pneg %p196
        %s347 = sand.u32 %s32, 1
        %s348 = scalar_lea.sflag [#allocation14], %s347
        %s349 = sand.u32 %s186, 1
        %s350 = scalar_lea.vmem [#allocation13], %s349
        %p351 = pneg %p225
        %p352 = pneg %p222
        %s353 = sand.u32 %s32, 1
        %s354 = scalar_lea.sflag [#allocation14], %s353
        %s355 = sand.u32 %s212, 1
        %s356 = scalar_lea.vmem [#allocation15], %s355
        %358 = vst [vmem:[#allocation2] sm:$0xf] 0
        %359 = vst [vmem:[#allocation2 + $0x4] sm:$0xf] 0
        %360 = vst [vmem:[#allocation2 + $0x8] sm:$0x1] 0
        %s361 = scalar_lea.vmem [#allocation2], 204
        %362 = vst [vmem:[%s361] sm:$0xf] 0
        %363 = vst [vmem:[%s361 + $0x4] sm:$0xf] 0
        %364 = vst [vmem:[%s361 + $0x8] sm:$0x1] 0
        %vm365 = vcmask 1040384
        %vm366 = vsmask.f32 256
        %vm367 = vmand %vm365, %vm366
        %v368 = vld [vmem:[#allocation2] sm:$0x1]
        %v369 = vsel %vm367, 0, %v368
        %370 = vst [vmem:[#allocation2] sm:$0x1] %v369
        %v371 = vld [vmem:[#allocation2 + $0xc] sm:$0x1]
        %v372 = vsel %vm367, 0, %v371
        %373 = vst [vmem:[#allocation2 + $0xc] sm:$0x1] %v372
        %v374 = vld [vmem:[#allocation2 + $0x18] sm:$0x1]
        %v375 = vsel %vm367, 0, %v374
        %376 = vst [vmem:[#allocation2 + $0x18] sm:$0x1] %v375
        %v377 = vld [vmem:[#allocation2 + $0x24] sm:$0x1]
        %v378 = vsel %vm367, 0, %v377
        %379 = vst [vmem:[#allocation2 + $0x24] sm:$0x1] %v378
        %v380 = vld [vmem:[#allocation2 + $0x30] sm:$0x1]
        %v381 = vsel %vm367, 0, %v380
        %382 = vst [vmem:[#allocation2 + $0x30] sm:$0x1] %v381
        %v383 = vld [vmem:[#allocation2 + $0x3c] sm:$0x1]
        %v384 = vsel %vm367, 0, %v383
        %385 = vst [vmem:[#allocation2 + $0x3c] sm:$0x1] %v384
        %v386 = vld [vmem:[#allocation2 + $0x48] sm:$0x1]
        %v387 = vsel %vm367, 0, %v386
        %388 = vst [vmem:[#allocation2 + $0x48] sm:$0x1] %v387
        %v389 = vld [vmem:[#allocation2 + $0x54] sm:$0x1]
        %v390 = vsel %vm367, 0, %v389
        %391 = vst [vmem:[#allocation2 + $0x54] sm:$0x1] %v390
        %v392 = vld [vmem:[#allocation2 + $0x60] sm:$0x1]
        %v393 = vsel %vm367, 0, %v392
        %394 = vst [vmem:[#allocation2 + $0x60] sm:$0x1] %v393
        %v395 = vld [vmem:[#allocation2 + $0x6c] sm:$0x1]
        %v396 = vsel %vm367, 0, %v395
        %397 = vst [vmem:[#allocation2 + $0x6c] sm:$0x1] %v396
        %v398 = vld [vmem:[#allocation2 + $0x78] sm:$0x1]
        %v399 = vsel %vm367, 0, %v398
        %400 = vst [vmem:[#allocation2 + $0x78] sm:$0x1] %v399
        %v401 = vld [vmem:[#allocation2 + $0x84] sm:$0x1]
        %v402 = vsel %vm367, 0, %v401
        %403 = vst [vmem:[#allocation2 + $0x84] sm:$0x1] %v402
        %v404 = vld [vmem:[#allocation2 + $0x90] sm:$0x1]
        %v405 = vsel %vm367, 0, %v404
        %406 = vst [vmem:[#allocation2 + $0x90] sm:$0x1] %v405
        %v407 = vld [vmem:[#allocation2 + $0x9c] sm:$0x1]
        %v408 = vsel %vm367, 0, %v407
        %409 = vst [vmem:[#allocation2 + $0x9c] sm:$0x1] %v408
        %v410 = vld [vmem:[#allocation2 + $0xa8] sm:$0x1]
        %v411 = vsel %vm367, 0, %v410
        %412 = vst [vmem:[#allocation2 + $0xa8] sm:$0x1] %v411
        %v413 = vld [vmem:[#allocation2 + $0xb4] sm:$0x1]
        %v414 = vsel %vm367, 0, %v413
        %415 = vst [vmem:[#allocation2 + $0xb4] sm:$0x1] %v414
        %v416 = vld [vmem:[#allocation2 + $0xc0] sm:$0x1]
        %v417 = vsel %vm367, 0, %v416
        %418 = vst [vmem:[#allocation2 + $0xc0] sm:$0x1] %v417
        %v419 = vld [vmem:[#allocation2 + $0xcc] sm:$0x1]
        %v420 = vsel %vm367, 0, %v419
        %421 = vst [vmem:[#allocation2 + $0xcc] sm:$0x1] %v420
        %vm422 = vsmask.f32 7938
        %vm423 = vmand %vm365, %vm422
        %v424 = vld [vmem:[#allocation2 + $0x8] sm:$0x1]
        %v425 = vsel %vm423, 0, %v424
        %426 = vst [vmem:[#allocation2 + $0x8] sm:$0x1] %v425
        %v427 = vld [vmem:[#allocation2 + $0x14] sm:$0x1]
        %v428 = vsel %vm423, 0, %v427
        %429 = vst [vmem:[#allocation2 + $0x14] sm:$0x1] %v428
        %v430 = vld [vmem:[#allocation2 + $0x20] sm:$0x1]
        %v431 = vsel %vm423, 0, %v430
        %432 = vst [vmem:[#allocation2 + $0x20] sm:$0x1] %v431
        %v433 = vld [vmem:[#allocation2 + $0x2c] sm:$0x1]
        %v434 = vsel %vm423, 0, %v433
        %435 = vst [vmem:[#allocation2 + $0x2c] sm:$0x1] %v434
        %v436 = vld [vmem:[#allocation2 + $0x38] sm:$0x1]
        %v437 = vsel %vm423, 0, %v436
        %438 = vst [vmem:[#allocation2 + $0x38] sm:$0x1] %v437
        %v439 = vld [vmem:[#allocation2 + $0x44] sm:$0x1]
        %v440 = vsel %vm423, 0, %v439
        %441 = vst [vmem:[#allocation2 + $0x44] sm:$0x1] %v440
        %v442 = vld [vmem:[#allocation2 + $0x50] sm:$0x1]
        %v443 = vsel %vm423, 0, %v442
        %444 = vst [vmem:[#allocation2 + $0x50] sm:$0x1] %v443
        %v445 = vld [vmem:[#allocation2 + $0x5c] sm:$0x1]
        %v446 = vsel %vm423, 0, %v445
        %447 = vst [vmem:[#allocation2 + $0x5c] sm:$0x1] %v446
        %v448 = vld [vmem:[#allocation2 + $0x68] sm:$0x1]
        %v449 = vsel %vm423, 0, %v448
        %450 = vst [vmem:[#allocation2 + $0x68] sm:$0x1] %v449
        %v451 = vld [vmem:[#allocation2 + $0x74] sm:$0x1]
        %v452 = vsel %vm423, 0, %v451
        %453 = vst [vmem:[#allocation2 + $0x74] sm:$0x1] %v452
        %v454 = vld [vmem:[#allocation2 + $0x80] sm:$0x1]
        %v455 = vsel %vm423, 0, %v454
        %456 = vst [vmem:[#allocation2 + $0x80] sm:$0x1] %v455
        %v457 = vld [vmem:[#allocation2 + $0x8c] sm:$0x1]
        %v458 = vsel %vm423, 0, %v457
        %459 = vst [vmem:[#allocation2 + $0x8c] sm:$0x1] %v458
        %v460 = vld [vmem:[#allocation2 + $0x98] sm:$0x1]
        %v461 = vsel %vm423, 0, %v460
        %462 = vst [vmem:[#allocation2 + $0x98] sm:$0x1] %v461
        %v463 = vld [vmem:[#allocation2 + $0xa4] sm:$0x1]
        %v464 = vsel %vm423, 0, %v463
        %465 = vst [vmem:[#allocation2 + $0xa4] sm:$0x1] %v464
        %v466 = vld [vmem:[#allocation2 + $0xb0] sm:$0x1]
        %v467 = vsel %vm423, 0, %v466
        %468 = vst [vmem:[#allocation2 + $0xb0] sm:$0x1] %v467
        %v469 = vld [vmem:[#allocation2 + $0xbc] sm:$0x1]
        %v470 = vsel %vm423, 0, %v469
        %471 = vst [vmem:[#allocation2 + $0xbc] sm:$0x1] %v470
        %v472 = vld [vmem:[#allocation2 + $0xc8] sm:$0x1]
        %v473 = vsel %vm423, 0, %v472
        %474 = vst [vmem:[#allocation2 + $0xc8] sm:$0x1] %v473
        %v475 = vld [vmem:[#allocation2 + $0xd4] sm:$0x1]
        %v476 = vsel %vm423, 0, %v475
        %477 = vst [vmem:[#allocation2 + $0xd4] sm:$0x1] %v476
        %v478 = vld [vmem:[%s302] sm:$0xf]
        %v479 = vld [vmem:[%s302 + $0x4] sm:$0xf]
        %v480 = vld [vmem:[%s302 + $0x8] sm:$0xf]
        %v481 = vld [vmem:[%s302 + $0xc] sm:$0xf]
        %v482 = vld [vmem:[%s302 + $0x10] sm:$0xf]
        %v483 = vld [vmem:[%s302 + $0x14] sm:$0xf]
        %v484 = vld [vmem:[%s302 + $0x18] sm:$0xf]
        %v485 = vld [vmem:[%s302 + $0x1c] sm:$0xf]
        %v486 = vld [vmem:[%s302 + $0x20] sm:$0xf]
        %v487 = vld [vmem:[%s302 + $0x24] sm:$0xf]
        %v488 = vld [vmem:[%s302 + $0x28] sm:$0xf]
        %v489 = vld [vmem:[%s302 + $0x2c] sm:$0xf]
        %v490 = vld [vmem:[%s302 + $0x30] sm:$0xf]
        %v491 = vld [vmem:[%s302 + $0x34] sm:$0xf]
        %v492 = vld [vmem:[%s302 + $0x38] sm:$0xf]
        %v493 = vld [vmem:[%s302 + $0x3c] sm:$0xf]
        %v494 = vld [vmem:[%s302 + $0x40] sm:$0xf]
        %v495 = vld [vmem:[%s302 + $0x44] sm:$0xf]
        %v496 = vld [vmem:[%s302 + $0x48] sm:$0xf]
        %v497 = vld [vmem:[%s302 + $0x4c] sm:$0xf]
        %v498 = vld [vmem:[%s302 + $0x50] sm:$0xf]
        %v499 = vld [vmem:[%s302 + $0x54] sm:$0xf]
        %v500 = vld [vmem:[%s302 + $0x58] sm:$0xf]
        %v501 = vld [vmem:[%s302 + $0x5c] sm:$0xf]
        %v502 = vld [vmem:[%s302 + $0x60] sm:$0xf]
        %v503 = vld [vmem:[%s302 + $0x64] sm:$0xf]
        %v504 = vld [vmem:[%s302 + $0x68] sm:$0xf]
        %v505 = vld [vmem:[%s302 + $0x6c] sm:$0xf]
        %v506 = vld [vmem:[%s302 + $0x70] sm:$0xf]
        %v507 = vld [vmem:[%s302 + $0x74] sm:$0xf]
        %v508 = vld [vmem:[%s302 + $0x78] sm:$0xf]
        %v509 = vld [vmem:[%s302 + $0x7c] sm:$0xf]
        %vm510 = vsmask.f32 4368
        %vm511 = vmor %vm366, %vm510
        %v513 = vshrl.u32 %v478, 16
        %v515 = vrot.slane %v513, 7
        %v516 = vshll.u32 %v478, 16
        %v518 = vor.u32 %v515, %v516
        %v519 = vrot.slane %v515, 4
        %v521 = vshrl.u32 %v479, 16
        %v523 = vrot.slane %v521, 7
        %v524 = vshll.u32 %v479, 16
        %v526 = vor.u32 %v523, %v524
        %v527 = vsel %vm511, %v519, %v526
        %v528 = vrot.slane %v523, 4
        %v530 = vshrl.u32 %v480, 16
        %v532 = vrot.slane %v530, 7
        %v533 = vshll.u32 %v480, 16
        %v535 = vor.u32 %v532, %v533
        %v536 = vrot.slane %v532, 4
        %v538 = vshrl.u32 %v481, 16
        %v540 = vrot.slane %v538, 7
        %v541 = vshll.u32 %v481, 16
        %v543 = vor.u32 %v540, %v541
        %v544 = vsel %vm511, %v536, %v543
        %v545 = vrot.slane %v540, 4
        %v547 = vshrl.u32 %v482, 16
        %v549 = vrot.slane %v547, 7
        %v550 = vshll.u32 %v482, 16
        %v552 = vor.u32 %v549, %v550
        %v553 = vrot.slane %v549, 4
        %v555 = vshrl.u32 %v483, 16
        %v557 = vrot.slane %v555, 7
        %v558 = vshll.u32 %v483, 16
        %v560 = vor.u32 %v557, %v558
        %v561 = vsel %vm511, %v553, %v560
        %v562 = vrot.slane %v557, 4
        %v564 = vshrl.u32 %v484, 16
        %v566 = vrot.slane %v564, 7
        %v567 = vshll.u32 %v484, 16
        %v569 = vor.u32 %v566, %v567
        %v570 = vrot.slane %v566, 4
        %v572 = vshrl.u32 %v485, 16
        %v574 = vrot.slane %v572, 7
        %v575 = vshll.u32 %v485, 16
        %v577 = vor.u32 %v574, %v575
        %v578 = vsel %vm511, %v570, %v577
        %v579 = vrot.slane %v574, 4
        %v581 = vshrl.u32 %v486, 16
        %v583 = vrot.slane %v581, 7
        %v584 = vshll.u32 %v486, 16
        %v586 = vor.u32 %v583, %v584
        %v587 = vrot.slane %v583, 4
        %v589 = vshrl.u32 %v487, 16
        %v591 = vrot.slane %v589, 7
        %v592 = vshll.u32 %v487, 16
        %v594 = vor.u32 %v591, %v592
        %v595 = vsel %vm511, %v587, %v594
        %v596 = vrot.slane %v591, 4
        %v598 = vshrl.u32 %v488, 16
        %v600 = vrot.slane %v598, 7
        %v601 = vshll.u32 %v488, 16
        %v603 = vor.u32 %v600, %v601
        %v604 = vrot.slane %v600, 4
        %v606 = vshrl.u32 %v489, 16
        %v608 = vrot.slane %v606, 7
        %v609 = vshll.u32 %v489, 16
        %v611 = vor.u32 %v608, %v609
        %v612 = vsel %vm511, %v604, %v611
        %v613 = vrot.slane %v608, 4
        %v615 = vshrl.u32 %v490, 16
        %v617 = vrot.slane %v615, 7
        %v618 = vshll.u32 %v490, 16
        %v620 = vor.u32 %v617, %v618
        %v621 = vrot.slane %v617, 4
        %v623 = vshrl.u32 %v491, 16
        %v625 = vrot.slane %v623, 7
        %v626 = vshll.u32 %v491, 16
        %v628 = vor.u32 %v625, %v626
        %v629 = vsel %vm511, %v621, %v628
        %v630 = vrot.slane %v625, 4
        %v632 = vshrl.u32 %v492, 16
        %v634 = vrot.slane %v632, 7
        %v635 = vshll.u32 %v492, 16
        %v637 = vor.u32 %v634, %v635
        %v638 = vrot.slane %v634, 4
        %v640 = vshrl.u32 %v493, 16
        %v642 = vrot.slane %v640, 7
        %v643 = vshll.u32 %v493, 16
        %v645 = vor.u32 %v642, %v643
        %v646 = vsel %vm511, %v638, %v645
        %v647 = vrot.slane %v642, 4
        %v649 = vshrl.u32 %v494, 16
        %v651 = vrot.slane %v649, 7
        %v652 = vshll.u32 %v494, 16
        %v654 = vor.u32 %v651, %v652
        %v655 = vrot.slane %v651, 4
        %v657 = vshrl.u32 %v495, 16
        %v659 = vrot.slane %v657, 7
        %v660 = vshll.u32 %v495, 16
        %v662 = vor.u32 %v659, %v660
        %v663 = vsel %vm511, %v655, %v662
        %v664 = vrot.slane %v659, 4
        %v666 = vshrl.u32 %v496, 16
        %v668 = vrot.slane %v666, 7
        %v669 = vshll.u32 %v496, 16
        %v671 = vor.u32 %v668, %v669
        %v672 = vrot.slane %v668, 4
        %v674 = vshrl.u32 %v497, 16
        %v676 = vrot.slane %v674, 7
        %v677 = vshll.u32 %v497, 16
        %v679 = vor.u32 %v676, %v677
        %v680 = vsel %vm511, %v672, %v679
        %v681 = vrot.slane %v676, 4
        %v683 = vshrl.u32 %v498, 16
        %v685 = vrot.slane %v683, 7
        %v686 = vshll.u32 %v498, 16
        %v688 = vor.u32 %v685, %v686
        %v689 = vrot.slane %v685, 4
        %v691 = vshrl.u32 %v499, 16
        %v693 = vrot.slane %v691, 7
        %v694 = vshll.u32 %v499, 16
        %v696 = vor.u32 %v693, %v694
        %v697 = vsel %vm511, %v689, %v696
        %v698 = vrot.slane %v693, 4
        %v700 = vshrl.u32 %v500, 16
        %v702 = vrot.slane %v700, 7
        %v703 = vshll.u32 %v500, 16
        %v705 = vor.u32 %v702, %v703
        %v706 = vrot.slane %v702, 4
        %v708 = vshrl.u32 %v501, 16
        %v710 = vrot.slane %v708, 7
        %v711 = vshll.u32 %v501, 16
        %v713 = vor.u32 %v710, %v711
        %v714 = vsel %vm511, %v706, %v713
        %v715 = vrot.slane %v710, 4
        %v717 = vshrl.u32 %v502, 16
        %v719 = vrot.slane %v717, 7
        %v720 = vshll.u32 %v502, 16
        %v722 = vor.u32 %v719, %v720
        %v723 = vrot.slane %v719, 4
        %v725 = vshrl.u32 %v503, 16
        %v727 = vrot.slane %v725, 7
        %v728 = vshll.u32 %v503, 16
        %v730 = vor.u32 %v727, %v728
        %v731 = vsel %vm511, %v723, %v730
        %v732 = vrot.slane %v727, 4
        %v734 = vshrl.u32 %v504, 16
        %v736 = vrot.slane %v734, 7
        %v737 = vshll.u32 %v504, 16
        %v739 = vor.u32 %v736, %v737
        %v740 = vrot.slane %v736, 4
        %v742 = vshrl.u32 %v505, 16
        %v744 = vrot.slane %v742, 7
        %v745 = vshll.u32 %v505, 16
        %v747 = vor.u32 %v744, %v745
        %v748 = vsel %vm511, %v740, %v747
        %v749 = vrot.slane %v744, 4
        %v751 = vshrl.u32 %v506, 16
        %v753 = vrot.slane %v751, 7
        %v754 = vshll.u32 %v506, 16
        %v756 = vor.u32 %v753, %v754
        %v757 = vrot.slane %v753, 4
        %v759 = vshrl.u32 %v507, 16
        %v761 = vrot.slane %v759, 7
        %v762 = vshll.u32 %v507, 16
        %v764 = vor.u32 %v761, %v762
        %v765 = vsel %vm511, %v757, %v764
        %v766 = vrot.slane %v761, 4
        %v768 = vshrl.u32 %v508, 16
        %v770 = vrot.slane %v768, 7
        %v771 = vshll.u32 %v508, 16
        %v773 = vor.u32 %v770, %v771
        %v774 = vrot.slane %v770, 4
        %v776 = vshrl.u32 %v509, 16
        %v778 = vrot.slane %v776, 7
        %v779 = vshll.u32 %v509, 16
        %v781 = vor.u32 %v778, %v779
        %v782 = vsel %vm511, %v774, %v781
        %v783 = vrot.slane %v778, 4
        %s832 = scalar_lea.vmem [#allocation2], 12
        %vm833 = vcmask 1043456
        %vm834 = vmand %vm833, %vm422
        %v835 = vld [vmem:[%s832] sm:$0xf]
        %v836 = vsel %vm834, %v518, %v835
        %837 = vst [vmem:[%s832] sm:$0xf] %v836
        %838 = vst [vmem:[%s832 + $0x4] sm:$0xf] %v527
        %v839 = vld [vmem:[%s832 + $0x8] sm:$0x1]
        %v840 = vsel %vm367, %v528, %v839
        %841 = vst [vmem:[%s832 + $0x8] sm:$0x1] %v840
        %v842 = vld [vmem:[%s832 + $0xc] sm:$0xf]
        %v843 = vsel %vm834, %v535, %v842
        %844 = vst [vmem:[%s832 + $0xc] sm:$0xf] %v843
        %845 = vst [vmem:[%s832 + $0x10] sm:$0xf] %v544
        %v846 = vld [vmem:[%s832 + $0x14] sm:$0x1]
        %v847 = vsel %vm367, %v545, %v846
        %848 = vst [vmem:[%s832 + $0x14] sm:$0x1] %v847
        %v849 = vld [vmem:[%s832 + $0x18] sm:$0xf]
        %v850 = vsel %vm834, %v552, %v849
        %851 = vst [vmem:[%s832 + $0x18] sm:$0xf] %v850
        %852 = vst [vmem:[%s832 + $0x1c] sm:$0xf] %v561
        %v853 = vld [vmem:[%s832 + $0x20] sm:$0x1]
        %v854 = vsel %vm367, %v562, %v853
        %855 = vst [vmem:[%s832 + $0x20] sm:$0x1] %v854
        %v856 = vld [vmem:[%s832 + $0x24] sm:$0xf]
        %v857 = vsel %vm834, %v569, %v856
        %858 = vst [vmem:[%s832 + $0x24] sm:$0xf] %v857
        %859 = vst [vmem:[%s832 + $0x28] sm:$0xf] %v578
        %v860 = vld [vmem:[%s832 + $0x2c] sm:$0x1]
        %v861 = vsel %vm367, %v579, %v860
        %862 = vst [vmem:[%s832 + $0x2c] sm:$0x1] %v861
        %v863 = vld [vmem:[%s832 + $0x30] sm:$0xf]
        %v864 = vsel %vm834, %v586, %v863
        %865 = vst [vmem:[%s832 + $0x30] sm:$0xf] %v864
        %866 = vst [vmem:[%s832 + $0x34] sm:$0xf] %v595
        %v867 = vld [vmem:[%s832 + $0x38] sm:$0x1]
        %v868 = vsel %vm367, %v596, %v867
        %869 = vst [vmem:[%s832 + $0x38] sm:$0x1] %v868
        %v870 = vld [vmem:[%s832 + $0x3c] sm:$0xf]
        %v871 = vsel %vm834, %v603, %v870
        %872 = vst [vmem:[%s832 + $0x3c] sm:$0xf] %v871
        %873 = vst [vmem:[%s832 + $0x40] sm:$0xf] %v612
        %v874 = vld [vmem:[%s832 + $0x44] sm:$0x1]
        %v875 = vsel %vm367, %v613, %v874
        %876 = vst [vmem:[%s832 + $0x44] sm:$0x1] %v875
        %v877 = vld [vmem:[%s832 + $0x48] sm:$0xf]
        %v878 = vsel %vm834, %v620, %v877
        %879 = vst [vmem:[%s832 + $0x48] sm:$0xf] %v878
        %880 = vst [vmem:[%s832 + $0x4c] sm:$0xf] %v629
        %v881 = vld [vmem:[%s832 + $0x50] sm:$0x1]
        %v882 = vsel %vm367, %v630, %v881
        %883 = vst [vmem:[%s832 + $0x50] sm:$0x1] %v882
        %v884 = vld [vmem:[%s832 + $0x54] sm:$0xf]
        %v885 = vsel %vm834, %v637, %v884
        %886 = vst [vmem:[%s832 + $0x54] sm:$0xf] %v885
        %887 = vst [vmem:[%s832 + $0x58] sm:$0xf] %v646
        %v888 = vld [vmem:[%s832 + $0x5c] sm:$0x1]
        %v889 = vsel %vm367, %v647, %v888
        %890 = vst [vmem:[%s832 + $0x5c] sm:$0x1] %v889
        %v891 = vld [vmem:[%s832 + $0x60] sm:$0xf]
        %v892 = vsel %vm834, %v654, %v891
        %893 = vst [vmem:[%s832 + $0x60] sm:$0xf] %v892
        %894 = vst [vmem:[%s832 + $0x64] sm:$0xf] %v663
        %v895 = vld [vmem:[%s832 + $0x68] sm:$0x1]
        %v896 = vsel %vm367, %v664, %v895
        %897 = vst [vmem:[%s832 + $0x68] sm:$0x1] %v896
        %v898 = vld [vmem:[%s832 + $0x6c] sm:$0xf]
        %v899 = vsel %vm834, %v671, %v898
        %900 = vst [vmem:[%s832 + $0x6c] sm:$0xf] %v899
        %901 = vst [vmem:[%s832 + $0x70] sm:$0xf] %v680
        %v902 = vld [vmem:[%s832 + $0x74] sm:$0x1]
        %v903 = vsel %vm367, %v681, %v902
        %904 = vst [vmem:[%s832 + $0x74] sm:$0x1] %v903
        %v905 = vld [vmem:[%s832 + $0x78] sm:$0xf]
        %v906 = vsel %vm834, %v688, %v905
        %907 = vst [vmem:[%s832 + $0x78] sm:$0xf] %v906
        %908 = vst [vmem:[%s832 + $0x7c] sm:$0xf] %v697
        %v909 = vld [vmem:[%s832 + $0x80] sm:$0x1]
        %v910 = vsel %vm367, %v698, %v909
        %911 = vst [vmem:[%s832 + $0x80] sm:$0x1] %v910
        %v912 = vld [vmem:[%s832 + $0x84] sm:$0xf]
        %v913 = vsel %vm834, %v705, %v912
        %914 = vst [vmem:[%s832 + $0x84] sm:$0xf] %v913
        %915 = vst [vmem:[%s832 + $0x88] sm:$0xf] %v714
        %v916 = vld [vmem:[%s832 + $0x8c] sm:$0x1]
        %v917 = vsel %vm367, %v715, %v916
        %918 = vst [vmem:[%s832 + $0x8c] sm:$0x1] %v917
        %v919 = vld [vmem:[%s832 + $0x90] sm:$0xf]
        %v920 = vsel %vm834, %v722, %v919
        %921 = vst [vmem:[%s832 + $0x90] sm:$0xf] %v920
        %922 = vst [vmem:[%s832 + $0x94] sm:$0xf] %v731
        %v923 = vld [vmem:[%s832 + $0x98] sm:$0x1]
        %v924 = vsel %vm367, %v732, %v923
        %925 = vst [vmem:[%s832 + $0x98] sm:$0x1] %v924
        %v926 = vld [vmem:[%s832 + $0x9c] sm:$0xf]
        %v927 = vsel %vm834, %v739, %v926
        %928 = vst [vmem:[%s832 + $0x9c] sm:$0xf] %v927
        %929 = vst [vmem:[%s832 + $0xa0] sm:$0xf] %v748
        %v930 = vld [vmem:[%s832 + $0xa4] sm:$0x1]
        %v931 = vsel %vm367, %v749, %v930
        %932 = vst [vmem:[%s832 + $0xa4] sm:$0x1] %v931
        %v933 = vld [vmem:[%s832 + $0xa8] sm:$0xf]
        %v934 = vsel %vm834, %v756, %v933
        %935 = vst [vmem:[%s832 + $0xa8] sm:$0xf] %v934
        %936 = vst [vmem:[%s832 + $0xac] sm:$0xf] %v765
        %v937 = vld [vmem:[%s832 + $0xb0] sm:$0x1]
        %v938 = vsel %vm367, %v766, %v937
        %939 = vst [vmem:[%s832 + $0xb0] sm:$0x1] %v938
        %v940 = vld [vmem:[%s832 + $0xb4] sm:$0xf]
        %v941 = vsel %vm834, %v773, %v940
        %942 = vst [vmem:[%s832 + $0xb4] sm:$0xf] %v941
        %943 = vst [vmem:[%s832 + $0xb8] sm:$0xf] %v782
        %v944 = vld [vmem:[%s832 + $0xbc] sm:$0x1]
        %v945 = vsel %vm367, %v783, %v944
        %946 = vst [vmem:[%s832 + $0xbc] sm:$0x1] %v945
        %v947 = vld [vmem:[%s302] sm:$0xf]
        %v948 = vld [vmem:[%s302 + $0x4] sm:$0xf]
        %v949 = vld [vmem:[%s302 + $0x8] sm:$0xf]
        %v950 = vld [vmem:[%s302 + $0xc] sm:$0xf]
        %v951 = vld [vmem:[%s302 + $0x10] sm:$0xf]
        %v952 = vld [vmem:[%s302 + $0x14] sm:$0xf]
        %v953 = vld [vmem:[%s302 + $0x18] sm:$0xf]
        %v954 = vld [vmem:[%s302 + $0x1c] sm:$0xf]
        %v955 = vld [vmem:[%s302 + $0x20] sm:$0xf]
        %v956 = vld [vmem:[%s302 + $0x24] sm:$0xf]
        %v957 = vld [vmem:[%s302 + $0x28] sm:$0xf]
        %v958 = vld [vmem:[%s302 + $0x2c] sm:$0xf]
        %v959 = vld [vmem:[%s302 + $0x30] sm:$0xf]
        %v960 = vld [vmem:[%s302 + $0x34] sm:$0xf]
        %v961 = vld [vmem:[%s302 + $0x38] sm:$0xf]
        %v962 = vld [vmem:[%s302 + $0x3c] sm:$0xf]
        %v963 = vld [vmem:[%s302 + $0x40] sm:$0xf]
        %v964 = vld [vmem:[%s302 + $0x44] sm:$0xf]
        %v965 = vld [vmem:[%s302 + $0x48] sm:$0xf]
        %v966 = vld [vmem:[%s302 + $0x4c] sm:$0xf]
        %v967 = vld [vmem:[%s302 + $0x50] sm:$0xf]
        %v968 = vld [vmem:[%s302 + $0x54] sm:$0xf]
        %v969 = vld [vmem:[%s302 + $0x58] sm:$0xf]
        %v970 = vld [vmem:[%s302 + $0x5c] sm:$0xf]
        %v971 = vld [vmem:[%s302 + $0x60] sm:$0xf]
        %v972 = vld [vmem:[%s302 + $0x64] sm:$0xf]
        %v973 = vld [vmem:[%s302 + $0x68] sm:$0xf]
        %v974 = vld [vmem:[%s302 + $0x6c] sm:$0xf]
        %v975 = vld [vmem:[%s302 + $0x70] sm:$0xf]
        %v976 = vld [vmem:[%s302 + $0x74] sm:$0xf]
        %v977 = vld [vmem:[%s302 + $0x78] sm:$0xf]
        %v978 = vld [vmem:[%s302 + $0x7c] sm:$0xf]
        %v979 = vld [vmem:[#allocation8] sm:$0xf]
        %v980 = vld [vmem:[#allocation8 + $0x4] sm:$0xf]
        %v981 = vld [vmem:[#allocation8 + $0x8] sm:$0xf]
        %v982 = vld [vmem:[#allocation8 + $0xc] sm:$0xf]
        %v983 = vld [vmem:[#allocation8 + $0x10] sm:$0xf]
        %v984 = vld [vmem:[#allocation8 + $0x14] sm:$0xf]
        %v985 = vld [vmem:[#allocation8 + $0x18] sm:$0xf]
        %v986 = vld [vmem:[#allocation8 + $0x1c] sm:$0xf]
        %v987 = vld [vmem:[#allocation8 + $0x20] sm:$0xf]
        %v988 = vld [vmem:[#allocation8 + $0x24] sm:$0xf]
        %v989 = vld [vmem:[#allocation8 + $0x28] sm:$0xf]
        %v990 = vld [vmem:[#allocation8 + $0x2c] sm:$0xf]
        %v991 = vld [vmem:[#allocation8 + $0x30] sm:$0xf]
        %v992 = vld [vmem:[#allocation8 + $0x34] sm:$0xf]
        %v993 = vld [vmem:[#allocation8 + $0x38] sm:$0xf]
        %v994 = vld [vmem:[#allocation8 + $0x3c] sm:$0xf]
        %v1027 = vunpack.c.l.b16 %v947
        %v1028 = vunpack.c.l.b16 %v948
        %v1029 = vunpack.c.l.b16 %v949
        %v1030 = vunpack.c.l.b16 %v950
        %v1031 = vunpack.c.l.b16 %v951
        %v1032 = vunpack.c.l.b16 %v952
        %v1033 = vunpack.c.l.b16 %v953
        %v1034 = vunpack.c.l.b16 %v954
        %v1035 = vunpack.c.l.b16 %v955
        %v1036 = vunpack.c.l.b16 %v956
        %v1037 = vunpack.c.l.b16 %v957
        %v1038 = vunpack.c.l.b16 %v958
        %v1039 = vunpack.c.l.b16 %v959
        %v1040 = vunpack.c.l.b16 %v960
        %v1041 = vunpack.c.l.b16 %v961
        %v1042 = vunpack.c.l.b16 %v962
        %v1043 = vunpack.c.l.b16 %v963
        %v1044 = vunpack.c.l.b16 %v964
        %v1045 = vunpack.c.l.b16 %v965
        %v1046 = vunpack.c.l.b16 %v966
        %v1047 = vunpack.c.l.b16 %v967
        %v1048 = vunpack.c.l.b16 %v968
        %v1049 = vunpack.c.l.b16 %v969
        %v1050 = vunpack.c.l.b16 %v970
        %v1051 = vunpack.c.l.b16 %v971
        %v1052 = vunpack.c.l.b16 %v972
        %v1053 = vunpack.c.l.b16 %v973
        %v1054 = vunpack.c.l.b16 %v974
        %v1055 = vunpack.c.l.b16 %v975
        %v1056 = vunpack.c.l.b16 %v976
        %v1057 = vunpack.c.l.b16 %v977
        %v1058 = vunpack.c.l.b16 %v978
        %v1059 = vpack.c.b16 %v1028, %v1027
        %v1060 = vpack.c.b16 %v1030, %v1029
        %v1061 = vpack.c.b16 %v1032, %v1031
        %v1062 = vpack.c.b16 %v1034, %v1033
        %v1063 = vpack.c.b16 %v1036, %v1035
        %v1064 = vpack.c.b16 %v1038, %v1037
        %v1065 = vpack.c.b16 %v1040, %v1039
        %v1066 = vpack.c.b16 %v1042, %v1041
        %v1067 = vpack.c.b16 %v1044, %v1043
        %v1068 = vpack.c.b16 %v1046, %v1045
        %v1069 = vpack.c.b16 %v1048, %v1047
        %v1070 = vpack.c.b16 %v1050, %v1049
        %v1071 = vpack.c.b16 %v1052, %v1051
        %v1072 = vpack.c.b16 %v1054, %v1053
        %v1073 = vpack.c.b16 %v1056, %v1055
        %v1074 = vpack.c.b16 %v1058, %v1057
        %v1107 = vunpack.c.l.b16 %v979
        %v1108 = vunpack.c.l.b16 %v980
        %v1109 = vunpack.c.l.b16 %v981
        %v1110 = vunpack.c.l.b16 %v982
        %v1111 = vunpack.c.l.b16 %v983
        %v1112 = vunpack.c.l.b16 %v984
        %v1113 = vunpack.c.l.b16 %v985
        %v1114 = vunpack.c.l.b16 %v986
        %v1115 = vunpack.c.l.b16 %v987
        %v1116 = vunpack.c.l.b16 %v988
        %v1117 = vunpack.c.l.b16 %v989
        %v1118 = vunpack.c.l.b16 %v990
        %v1119 = vunpack.c.l.b16 %v991
        %v1120 = vunpack.c.l.b16 %v992
        %v1121 = vunpack.c.l.b16 %v993
        %v1122 = vunpack.c.l.b16 %v994
        %v1123 = vpack.c.b16 %v1108, %v1107
        %v1124 = vpack.c.b16 %v1110, %v1109
        %v1125 = vpack.c.b16 %v1112, %v1111
        %v1126 = vpack.c.b16 %v1114, %v1113
        %v1127 = vpack.c.b16 %v1116, %v1115
        %v1128 = vpack.c.b16 %v1118, %v1117
        %v1129 = vpack.c.b16 %v1120, %v1119
        %v1130 = vpack.c.b16 %v1122, %v1121
        %1139 = vmatprep.subr.bf16.mxu0 0
        %1140 = vmatpush1.bf16.msra.mxu0 %v1130
        %1141 = vmatprep.subr.bf16.mxu0 0
        %1142 = vmatpush1.bf16.msra.mxu0 %v1129
        %1143 = vmatprep.subr.bf16.mxu0 0
        %1144 = vmatpush1.bf16.msra.mxu0 %v1128
        %1145 = vmatprep.subr.bf16.mxu0 0
        %1146 = vmatpush1.bf16.msra.mxu0 %v1127
        %1147 = vmatprep.subr.bf16.mxu0 0
        %1148 = vmatpush1.bf16.msra.mxu0 %v1126
        %1149 = vmatprep.subr.bf16.mxu0 0
        %1150 = vmatpush1.bf16.msra.mxu0 %v1125
        %1151 = vmatprep.subr.bf16.mxu0 0
        %1152 = vmatpush1.bf16.msra.mxu0 %v1124
        %1153 = vmatprep.subr.bf16.mxu0 0
        %1154 = vmatpush1.bf16.msra.mxu0 %v1123
        %1155 = vmatprep.subr.bf16.mxu0 0
        %1156 = vmatpush2.bf16.msra.mxu0 0
        %1157 = vmatprep.subr.bf16.mxu0 0
        %1158 = vmatpush2.bf16.msra.mxu0 0
        %1159 = vmatprep.subr.bf16.mxu0 0
        %1160 = vmatpush2.bf16.msra.mxu0 0
        %1161 = vmatprep.subr.bf16.mxu0 0
        %1162 = vmatpush2.bf16.msra.mxu0 0
        %1163 = vmatprep.subr.bf16.mxu0 0
        %1164 = vmatpush2.bf16.msra.mxu0 0
        %1165 = vmatprep.subr.bf16.mxu0 0
        %1166 = vmatpush2.bf16.msra.mxu0 0
        %1167 = vmatprep.subr.bf16.mxu0 0
        %1168 = vmatpush2.bf16.msra.mxu0 0
        %1169 = vmatprep.subr.bf16.mxu0 0
        %1170 = vmatpush2.bf16.msra.mxu0 0
        %1171 = vmatprep.mubr.bf16.mxu0 0
        %1172 = vmatmul.mubr.bf16.gmra.mxu0 %v1059
        %v1173 = vpop.f32.mrf.mxu0
        %v1174 = vadd.f32 0.0, %v1173
        %v1175 = vpop.f32.mrf.mxu0
        %v1176 = vpop.f32.mrf.mxu0
        %v1177 = vadd.f32 0.0, %v1176
        %v1178 = vpop.f32.mrf.mxu0
        %1179 = vmatprep.mubr.bf16.mxu0 0
        %1180 = vmatmul.mubr.bf16.gmra.mxu0 %v1060
        %v1181 = vpop.f32.mrf.mxu0
        %v1182 = vadd.f32 0.0, %v1181
        %v1183 = vpop.f32.mrf.mxu0
        %v1184 = vpop.f32.mrf.mxu0
        %v1185 = vadd.f32 0.0, %v1184
        %v1186 = vpop.f32.mrf.mxu0
        %1187 = vmatprep.mubr.bf16.mxu0 0
        %1188 = vmatmul.mubr.bf16.gmra.mxu0 %v1061
        %v1189 = vpop.f32.mrf.mxu0
        %v1190 = vadd.f32 0.0, %v1189
        %v1191 = vpop.f32.mrf.mxu0
        %v1192 = vpop.f32.mrf.mxu0
        %v1193 = vadd.f32 0.0, %v1192
        %v1194 = vpop.f32.mrf.mxu0
        %1195 = vmatprep.mubr.bf16.mxu0 0
        %1196 = vmatmul.mubr.bf16.gmra.mxu0 %v1062
        %v1197 = vpop.f32.mrf.mxu0
        %v1198 = vadd.f32 0.0, %v1197
        %v1199 = vpop.f32.mrf.mxu0
        %v1200 = vpop.f32.mrf.mxu0
        %v1201 = vadd.f32 0.0, %v1200
        %v1202 = vpop.f32.mrf.mxu0
        %1203 = vmatprep.mubr.bf16.mxu0 0
        %1204 = vmatmul.mubr.bf16.gmra.mxu0 %v1063
        %v1205 = vpop.f32.mrf.mxu0
        %v1206 = vadd.f32 0.0, %v1205
        %v1207 = vpop.f32.mrf.mxu0
        %v1208 = vpop.f32.mrf.mxu0
        %v1209 = vadd.f32 0.0, %v1208
        %v1210 = vpop.f32.mrf.mxu0
        %1211 = vmatprep.mubr.bf16.mxu0 0
        %1212 = vmatmul.mubr.bf16.gmra.mxu0 %v1064
        %v1213 = vpop.f32.mrf.mxu0
        %v1214 = vadd.f32 0.0, %v1213
        %v1215 = vpop.f32.mrf.mxu0
        %v1216 = vpop.f32.mrf.mxu0
        %v1217 = vadd.f32 0.0, %v1216
        %v1218 = vpop.f32.mrf.mxu0
        %1219 = vmatprep.mubr.bf16.mxu0 0
        %1220 = vmatmul.mubr.bf16.gmra.mxu0 %v1065
        %v1221 = vpop.f32.mrf.mxu0
        %v1222 = vadd.f32 0.0, %v1221
        %v1223 = vpop.f32.mrf.mxu0
        %v1224 = vpop.f32.mrf.mxu0
        %v1225 = vadd.f32 0.0, %v1224
        %v1226 = vpop.f32.mrf.mxu0
        %1227 = vmatprep.mubr.bf16.mxu0 0
        %1228 = vmatmul.mubr.bf16.gmra.mxu0 %v1066
        %v1229 = vpop.f32.mrf.mxu0
        %v1230 = vadd.f32 0.0, %v1229
        %v1231 = vpop.f32.mrf.mxu0
        %v1232 = vpop.f32.mrf.mxu0
        %v1233 = vadd.f32 0.0, %v1232
        %v1234 = vpop.f32.mrf.mxu0
        %1235 = vmatprep.mubr.bf16.mxu0 0
        %1236 = vmatmul.mubr.bf16.gmra.mxu0 %v1067
        %v1237 = vpop.f32.mrf.mxu0
        %v1238 = vadd.f32 0.0, %v1237
        %v1239 = vpop.f32.mrf.mxu0
        %v1240 = vpop.f32.mrf.mxu0
        %v1241 = vadd.f32 0.0, %v1240
        %v1242 = vpop.f32.mrf.mxu0
        %1243 = vmatprep.mubr.bf16.mxu0 0
        %1244 = vmatmul.mubr.bf16.gmra.mxu0 %v1068
        %v1245 = vpop.f32.mrf.mxu0
        %v1246 = vadd.f32 0.0, %v1245
        %v1247 = vpop.f32.mrf.mxu0
        %v1248 = vpop.f32.mrf.mxu0
        %v1249 = vadd.f32 0.0, %v1248
        %v1250 = vpop.f32.mrf.mxu0
        %1251 = vmatprep.mubr.bf16.mxu0 0
        %1252 = vmatmul.mubr.bf16.gmra.mxu0 %v1069
        %v1253 = vpop.f32.mrf.mxu0
        %v1254 = vadd.f32 0.0, %v1253
        %v1255 = vpop.f32.mrf.mxu0
        %v1256 = vpop.f32.mrf.mxu0
        %v1257 = vadd.f32 0.0, %v1256
        %v1258 = vpop.f32.mrf.mxu0
        %1259 = vmatprep.mubr.bf16.mxu0 0
        %1260 = vmatmul.mubr.bf16.gmra.mxu0 %v1070
        %v1261 = vpop.f32.mrf.mxu0
        %v1262 = vadd.f32 0.0, %v1261
        %v1263 = vpop.f32.mrf.mxu0
        %v1264 = vpop.f32.mrf.mxu0
        %v1265 = vadd.f32 0.0, %v1264
        %v1266 = vpop.f32.mrf.mxu0
        %1267 = vmatprep.mubr.bf16.mxu0 0
        %1268 = vmatmul.mubr.bf16.gmra.mxu0 %v1071
        %v1269 = vpop.f32.mrf.mxu0
        %v1270 = vadd.f32 0.0, %v1269
        %v1271 = vpop.f32.mrf.mxu0
        %v1272 = vpop.f32.mrf.mxu0
        %v1273 = vadd.f32 0.0, %v1272
        %v1274 = vpop.f32.mrf.mxu0
        %1275 = vmatprep.mubr.bf16.mxu0 0
        %1276 = vmatmul.mubr.bf16.gmra.mxu0 %v1072
        %v1277 = vpop.f32.mrf.mxu0
        %v1278 = vadd.f32 0.0, %v1277
        %v1279 = vpop.f32.mrf.mxu0
        %v1280 = vpop.f32.mrf.mxu0
        %v1281 = vadd.f32 0.0, %v1280
        %v1282 = vpop.f32.mrf.mxu0
        %1283 = vmatprep.mubr.bf16.mxu0 0
        %1284 = vmatmul.mubr.bf16.gmra.mxu0 %v1073
        %v1285 = vpop.f32.mrf.mxu0
        %v1286 = vadd.f32 0.0, %v1285
        %v1287 = vpop.f32.mrf.mxu0
        %v1288 = vpop.f32.mrf.mxu0
        %v1289 = vadd.f32 0.0, %v1288
        %v1290 = vpop.f32.mrf.mxu0
        %1291 = vmatprep.mubr.bf16.mxu0 0
        %1292 = vmatmul.mubr.bf16.gmra.mxu0 %v1074
        %v1293 = vpop.f32.mrf.mxu0
        %v1294 = vadd.f32 0.0, %v1293
        %v1295 = vpop.f32.mrf.mxu0
        %v1296 = vpop.f32.mrf.mxu0
        %v1297 = vadd.f32 0.0, %v1296
        %v1298 = vpop.f32.mrf.mxu0
        %1299 = vdwg.mxu0
        %v1300 = vadd.f32 %v1174, %v1177
        %v1301 = vadd.f32 %v1300, %v1182
        %v1302 = vadd.f32 %v1301, %v1185
        %v1303 = vadd.f32 %v1302, %v1190
        %v1304 = vadd.f32 %v1303, %v1193
        %v1305 = vadd.f32 %v1304, %v1198
        %v1306 = vadd.f32 %v1305, %v1201
        %v1307 = vadd.f32 %v1306, %v1206
        %v1308 = vadd.f32 %v1307, %v1209
        %v1309 = vadd.f32 %v1308, %v1214
        %v1310 = vadd.f32 %v1309, %v1217
        %v1311 = vadd.f32 %v1310, %v1222
        %v1312 = vadd.f32 %v1311, %v1225
        %v1313 = vadd.f32 %v1312, %v1230
        %v1314 = vadd.f32 %v1313, %v1233
        %v1315 = vadd.f32 %v1314, %v1238
        %v1316 = vadd.f32 %v1315, %v1241
        %v1317 = vadd.f32 %v1316, %v1246
        %v1318 = vadd.f32 %v1317, %v1249
        %v1319 = vadd.f32 %v1318, %v1254
        %v1320 = vadd.f32 %v1319, %v1257
        %v1321 = vadd.f32 %v1320, %v1262
        %v1322 = vadd.f32 %v1321, %v1265
        %v1323 = vadd.f32 %v1322, %v1270
        %v1324 = vadd.f32 %v1323, %v1273
        %v1325 = vadd.f32 %v1324, %v1278
        %v1326 = vadd.f32 %v1325, %v1281
        %v1327 = vadd.f32 %v1326, %v1286
        %v1328 = vadd.f32 %v1327, %v1289
        %v1329 = vadd.f32 %v1328, %v1294
        %v1330 = vadd.f32 %v1329, %v1297
        %v1331 = vrot.slane %v1330, 4
        %v1332 = vadd.f32 %v1330, %v1331
        %v1333 = vrot.slane %v1332, 2
        %v1334 = vadd.f32 %v1332, %v1333
        %v1335 = vrot.slane %v1334, 1
        %v1336 = vadd.f32 %v1334, %v1335
        %1337 = vst [vmem:[%s350] sm:$0x1] %v1336
        %v1338 = vmul.f32 %v1174, %v1174
        %v1339 = vmul.f32 %v1177, %v1177
        %v1340 = vmul.f32 %v1182, %v1182
        %v1341 = vmul.f32 %v1185, %v1185
        %v1342 = vmul.f32 %v1190, %v1190
        %v1343 = vmul.f32 %v1193, %v1193
        %v1344 = vmul.f32 %v1198, %v1198
        %v1345 = vmul.f32 %v1201, %v1201
        %v1346 = vmul.f32 %v1206, %v1206
        %v1347 = vmul.f32 %v1209, %v1209
        %v1348 = vmul.f32 %v1214, %v1214
        %v1349 = vmul.f32 %v1217, %v1217
        %v1350 = vmul.f32 %v1222, %v1222
        %v1351 = vmul.f32 %v1225, %v1225
        %v1352 = vmul.f32 %v1230, %v1230
        %v1353 = vmul.f32 %v1233, %v1233
        %v1354 = vmul.f32 %v1238, %v1238
        %v1355 = vmul.f32 %v1241, %v1241
        %v1356 = vmul.f32 %v1246, %v1246
        %v1357 = vmul.f32 %v1249, %v1249
        %v1358 = vmul.f32 %v1254, %v1254
        %v1359 = vmul.f32 %v1257, %v1257
        %v1360 = vmul.f32 %v1262, %v1262
        %v1361 = vmul.f32 %v1265, %v1265
        %v1362 = vmul.f32 %v1270, %v1270
        %v1363 = vmul.f32 %v1273, %v1273
        %v1364 = vmul.f32 %v1278, %v1278
        %v1365 = vmul.f32 %v1281, %v1281
        %v1366 = vmul.f32 %v1286, %v1286
        %v1367 = vmul.f32 %v1289, %v1289
        %v1368 = vmul.f32 %v1294, %v1294
        %v1369 = vmul.f32 %v1297, %v1297
        %v1370 = vadd.f32 %v1338, %v1339
        %v1371 = vadd.f32 %v1370, %v1340
        %v1372 = vadd.f32 %v1371, %v1341
        %v1373 = vadd.f32 %v1372, %v1342
        %v1374 = vadd.f32 %v1373, %v1343
        %v1375 = vadd.f32 %v1374, %v1344
        %v1376 = vadd.f32 %v1375, %v1345
        %v1377 = vadd.f32 %v1376, %v1346
        %v1378 = vadd.f32 %v1377, %v1347
        %v1379 = vadd.f32 %v1378, %v1348
        %v1380 = vadd.f32 %v1379, %v1349
        %v1381 = vadd.f32 %v1380, %v1350
        %v1382 = vadd.f32 %v1381, %v1351
        %v1383 = vadd.f32 %v1382, %v1352
        %v1384 = vadd.f32 %v1383, %v1353
        %v1385 = vadd.f32 %v1384, %v1354
        %v1386 = vadd.f32 %v1385, %v1355
        %v1387 = vadd.f32 %v1386, %v1356
        %v1388 = vadd.f32 %v1387, %v1357
        %v1389 = vadd.f32 %v1388, %v1358
        %v1390 = vadd.f32 %v1389, %v1359
        %v1391 = vadd.f32 %v1390, %v1360
        %v1392 = vadd.f32 %v1391, %v1361
        %v1393 = vadd.f32 %v1392, %v1362
        %v1394 = vadd.f32 %v1393, %v1363
        %v1395 = vadd.f32 %v1394, %v1364
        %v1396 = vadd.f32 %v1395, %v1365
        %v1397 = vadd.f32 %v1396, %v1366
        %v1398 = vadd.f32 %v1397, %v1367
        %v1399 = vadd.f32 %v1398, %v1368
        %v1400 = vadd.f32 %v1399, %v1369
        %v1401 = vrot.slane %v1400, 4
        %v1402 = vadd.f32 %v1400, %v1401
        %v1403 = vrot.slane %v1402, 2
        %v1404 = vadd.f32 %v1402, %v1403
        %v1405 = vrot.slane %v1404, 1
        %v1406 = vadd.f32 %v1404, %v1405
        %1407 = vst [vmem:[%s356] sm:$0x1] %v1406
        %v1408 = vld [vmem:[#allocation2] sm:$0xf]
        %v1409 = vld [vmem:[#allocation2 + $0x4] sm:$0xf]
        %v1410 = vld [vmem:[#allocation2 + $0xc] sm:$0xf]
        %v1411 = vld [vmem:[#allocation2 + $0x10] sm:$0xf]
        %v1412 = vld [vmem:[#allocation2 + $0x18] sm:$0xf]
        %v1413 = vld [vmem:[#allocation2 + $0x1c] sm:$0xf]
        %v1414 = vld [vmem:[#allocation2 + $0x24] sm:$0xf]
        %v1415 = vld [vmem:[#allocation2 + $0x28] sm:$0xf]
        %v1416 = vld [vmem:[#allocation2 + $0x30] sm:$0xf]
        %v1417 = vld [vmem:[#allocation2 + $0x34] sm:$0xf]
        %v1418 = vld [vmem:[#allocation2 + $0x3c] sm:$0xf]
        %v1419 = vld [vmem:[#allocation2 + $0x40] sm:$0xf]
        %v1420 = vld [vmem:[#allocation2 + $0x48] sm:$0xf]
        %v1421 = vld [vmem:[#allocation2 + $0x4c] sm:$0xf]
        %v1422 = vld [vmem:[#allocation2 + $0x54] sm:$0xf]
        %v1423 = vld [vmem:[#allocation2 + $0x58] sm:$0xf]
        %v1424 = vld [vmem:[#allocation2 + $0x60] sm:$0xf]
        %v1425 = vld [vmem:[#allocation2 + $0x64] sm:$0xf]
        %v1426 = vld [vmem:[#allocation2 + $0x6c] sm:$0xf]
        %v1427 = vld [vmem:[#allocation2 + $0x70] sm:$0xf]
        %v1428 = vld [vmem:[#allocation2 + $0x78] sm:$0xf]
        %v1429 = vld [vmem:[#allocation2 + $0x7c] sm:$0xf]
        %v1430 = vld [vmem:[#allocation2 + $0x84] sm:$0xf]
        %v1431 = vld [vmem:[#allocation2 + $0x88] sm:$0xf]
        %v1432 = vld [vmem:[#allocation2 + $0x90] sm:$0xf]
        %v1433 = vld [vmem:[#allocation2 + $0x94] sm:$0xf]
        %v1434 = vld [vmem:[#allocation2 + $0x9c] sm:$0xf]
        %v1435 = vld [vmem:[#allocation2 + $0xa0] sm:$0xf]
        %v1436 = vld [vmem:[#allocation2 + $0xa8] sm:$0xf]
        %v1437 = vld [vmem:[#allocation2 + $0xac] sm:$0xf]
        %v1438 = vld [vmem:[#allocation2 + $0xb4] sm:$0xf]
        %v1439 = vld [vmem:[#allocation2 + $0xb8] sm:$0xf]
        %v1440 = vld [vmem:[#allocation2 + $0x8] sm:$0x1]
        %v1441 = vld [vmem:[#allocation2 + $0x14] sm:$0x1]
        %v1442 = vld [vmem:[#allocation2 + $0x20] sm:$0x1]
        %v1443 = vld [vmem:[#allocation2 + $0x2c] sm:$0x1]
        %v1444 = vld [vmem:[#allocation2 + $0x38] sm:$0x1]
        %v1445 = vld [vmem:[#allocation2 + $0x44] sm:$0x1]
        %v1446 = vld [vmem:[#allocation2 + $0x50] sm:$0x1]
        %v1447 = vld [vmem:[#allocation2 + $0x5c] sm:$0x1]
        %v1448 = vld [vmem:[#allocation2 + $0x68] sm:$0x1]
        %v1449 = vld [vmem:[#allocation2 + $0x74] sm:$0x1]
        %v1450 = vld [vmem:[#allocation2 + $0x80] sm:$0x1]
        %v1451 = vld [vmem:[#allocation2 + $0x8c] sm:$0x1]
        %v1452 = vld [vmem:[#allocation2 + $0x98] sm:$0x1]
        %v1453 = vld [vmem:[#allocation2 + $0xa4] sm:$0x1]
        %v1454 = vld [vmem:[#allocation2 + $0xb0] sm:$0x1]
        %v1455 = vld [vmem:[#allocation2 + $0xbc] sm:$0x1]
        %vm1456 = vsmask.f32 3328
        %vm1457 = vsmask.f32 7440
        %vm1458 = vmor %vm1456, %vm1457
        %v1460 = vshrl.u32 %v1408, 16
        %v1462 = vrot.slane %v1460, 4
        %v1463 = vshll.u32 %v1408, 16
        %v1465 = vrot.slane %v1463, 5
        %v1466 = vor.u32 %v1462, %v1465
        %v1467 = vrot.slane %v1466, 4
        %v1469 = vshll.u32 %v1409, 16
        %v1471 = vrot.slane %v1469, 5
        %v1472 = vsel %vm1458, %v1467, %v1471
        %v1473 = vshrl.u32 %v1409, 16
        %v1475 = vrot.slane %v1473, 4
        %v1476 = vor.u32 %v1475, %v1471
        %v1477 = vrot.slane %v1476, 4
        %v1479 = vshll.u32 %v1440, 16
        %v1481 = vrot.slane %v1479, 5
        %v1482 = vsel %vm1458, %v1477, %v1481
        %v1484 = vshrl.u32 %v1410, 16
        %v1486 = vrot.slane %v1484, 4
        %v1487 = vshll.u32 %v1410, 16
        %v1489 = vrot.slane %v1487, 5
        %v1490 = vor.u32 %v1486, %v1489
        %v1491 = vrot.slane %v1490, 4
        %v1493 = vshll.u32 %v1411, 16
        %v1495 = vrot.slane %v1493, 5
        %v1496 = vsel %vm1458, %v1491, %v1495
        %v1497 = vshrl.u32 %v1411, 16
        %v1499 = vrot.slane %v1497, 4
        %v1500 = vor.u32 %v1499, %v1495
        %v1501 = vrot.slane %v1500, 4
        %v1503 = vshll.u32 %v1441, 16
        %v1505 = vrot.slane %v1503, 5
        %v1506 = vsel %vm1458, %v1501, %v1505
        %v1508 = vshrl.u32 %v1412, 16
        %v1510 = vrot.slane %v1508, 4
        %v1511 = vshll.u32 %v1412, 16
        %v1513 = vrot.slane %v1511, 5
        %v1514 = vor.u32 %v1510, %v1513
        %v1515 = vrot.slane %v1514, 4
        %v1517 = vshll.u32 %v1413, 16
        %v1519 = vrot.slane %v1517, 5
        %v1520 = vsel %vm1458, %v1515, %v1519
        %v1521 = vshrl.u32 %v1413, 16
        %v1523 = vrot.slane %v1521, 4
        %v1524 = vor.u32 %v1523, %v1519
        %v1525 = vrot.slane %v1524, 4
        %v1527 = vshll.u32 %v1442, 16
        %v1529 = vrot.slane %v1527, 5
        %v1530 = vsel %vm1458, %v1525, %v1529
        %v1532 = vshrl.u32 %v1414, 16
        %v1534 = vrot.slane %v1532, 4
        %v1535 = vshll.u32 %v1414, 16
        %v1537 = vrot.slane %v1535, 5
        %v1538 = vor.u32 %v1534, %v1537
        %v1539 = vrot.slane %v1538, 4
        %v1541 = vshll.u32 %v1415, 16
        %v1543 = vrot.slane %v1541, 5
        %v1544 = vsel %vm1458, %v1539, %v1543
        %v1545 = vshrl.u32 %v1415, 16
        %v1547 = vrot.slane %v1545, 4
        %v1548 = vor.u32 %v1547, %v1543
        %v1549 = vrot.slane %v1548, 4
        %v1551 = vshll.u32 %v1443, 16
        %v1553 = vrot.slane %v1551, 5
        %v1554 = vsel %vm1458, %v1549, %v1553
        %v1556 = vshrl.u32 %v1416, 16
        %v1558 = vrot.slane %v1556, 4
        %v1559 = vshll.u32 %v1416, 16
        %v1561 = vrot.slane %v1559, 5
        %v1562 = vor.u32 %v1558, %v1561
        %v1563 = vrot.slane %v1562, 4
        %v1565 = vshll.u32 %v1417, 16
        %v1567 = vrot.slane %v1565, 5
        %v1568 = vsel %vm1458, %v1563, %v1567
        %v1569 = vshrl.u32 %v1417, 16
        %v1571 = vrot.slane %v1569, 4
        %v1572 = vor.u32 %v1571, %v1567
        %v1573 = vrot.slane %v1572, 4
        %v1575 = vshll.u32 %v1444, 16
        %v1577 = vrot.slane %v1575, 5
        %v1578 = vsel %vm1458, %v1573, %v1577
        %v1580 = vshrl.u32 %v1418, 16
        %v1582 = vrot.slane %v1580, 4
        %v1583 = vshll.u32 %v1418, 16
        %v1585 = vrot.slane %v1583, 5
        %v1586 = vor.u32 %v1582, %v1585
        %v1587 = vrot.slane %v1586, 4
        %v1589 = vshll.u32 %v1419, 16
        %v1591 = vrot.slane %v1589, 5
        %v1592 = vsel %vm1458, %v1587, %v1591
        %v1593 = vshrl.u32 %v1419, 16
        %v1595 = vrot.slane %v1593, 4
        %v1596 = vor.u32 %v1595, %v1591
        %v1597 = vrot.slane %v1596, 4
        %v1599 = vshll.u32 %v1445, 16
        %v1601 = vrot.slane %v1599, 5
        %v1602 = vsel %vm1458, %v1597, %v1601
        %v1604 = vshrl.u32 %v1420, 16
        %v1606 = vrot.slane %v1604, 4
        %v1607 = vshll.u32 %v1420, 16
        %v1609 = vrot.slane %v1607, 5
        %v1610 = vor.u32 %v1606, %v1609
        %v1611 = vrot.slane %v1610, 4
        %v1613 = vshll.u32 %v1421, 16
        %v1615 = vrot.slane %v1613, 5
        %v1616 = vsel %vm1458, %v1611, %v1615
        %v1617 = vshrl.u32 %v1421, 16
        %v1619 = vrot.slane %v1617, 4
        %v1620 = vor.u32 %v1619, %v1615
        %v1621 = vrot.slane %v1620, 4
        %v1623 = vshll.u32 %v1446, 16
        %v1625 = vrot.slane %v1623, 5
        %v1626 = vsel %vm1458, %v1621, %v1625
        %v1628 = vshrl.u32 %v1422, 16
        %v1630 = vrot.slane %v1628, 4
        %v1631 = vshll.u32 %v1422, 16
        %v1633 = vrot.slane %v1631, 5
        %v1634 = vor.u32 %v1630, %v1633
        %v1635 = vrot.slane %v1634, 4
        %v1637 = vshll.u32 %v1423, 16
        %v1639 = vrot.slane %v1637, 5
        %v1640 = vsel %vm1458, %v1635, %v1639
        %v1641 = vshrl.u32 %v1423, 16
        %v1643 = vrot.slane %v1641, 4
        %v1644 = vor.u32 %v1643, %v1639
        %v1645 = vrot.slane %v1644, 4
        %v1647 = vshll.u32 %v1447, 16
        %v1649 = vrot.slane %v1647, 5
        %v1650 = vsel %vm1458, %v1645, %v1649
        %v1652 = vshrl.u32 %v1424, 16
        %v1654 = vrot.slane %v1652, 4
        %v1655 = vshll.u32 %v1424, 16
        %v1657 = vrot.slane %v1655, 5
        %v1658 = vor.u32 %v1654, %v1657
        %v1659 = vrot.slane %v1658, 4
        %v1661 = vshll.u32 %v1425, 16
        %v1663 = vrot.slane %v1661, 5
        %v1664 = vsel %vm1458, %v1659, %v1663
        %v1665 = vshrl.u32 %v1425, 16
        %v1667 = vrot.slane %v1665, 4
        %v1668 = vor.u32 %v1667, %v1663
        %v1669 = vrot.slane %v1668, 4
        %v1671 = vshll.u32 %v1448, 16
        %v1673 = vrot.slane %v1671, 5
        %v1674 = vsel %vm1458, %v1669, %v1673
        %v1676 = vshrl.u32 %v1426, 16
        %v1678 = vrot.slane %v1676, 4
        %v1679 = vshll.u32 %v1426, 16
        %v1681 = vrot.slane %v1679, 5
        %v1682 = vor.u32 %v1678, %v1681
        %v1683 = vrot.slane %v1682, 4
        %v1685 = vshll.u32 %v1427, 16
        %v1687 = vrot.slane %v1685, 5
        %v1688 = vsel %vm1458, %v1683, %v1687
        %v1689 = vshrl.u32 %v1427, 16
        %v1691 = vrot.slane %v1689, 4
        %v1692 = vor.u32 %v1691, %v1687
        %v1693 = vrot.slane %v1692, 4
        %v1695 = vshll.u32 %v1449, 16
        %v1697 = vrot.slane %v1695, 5
        %v1698 = vsel %vm1458, %v1693, %v1697
        %v1700 = vshrl.u32 %v1428, 16
        %v1702 = vrot.slane %v1700, 4
        %v1703 = vshll.u32 %v1428, 16
        %v1705 = vrot.slane %v1703, 5
        %v1706 = vor.u32 %v1702, %v1705
        %v1707 = vrot.slane %v1706, 4
        %v1709 = vshll.u32 %v1429, 16
        %v1711 = vrot.slane %v1709, 5
        %v1712 = vsel %vm1458, %v1707, %v1711
        %v1713 = vshrl.u32 %v1429, 16
        %v1715 = vrot.slane %v1713, 4
        %v1716 = vor.u32 %v1715, %v1711
        %v1717 = vrot.slane %v1716, 4
        %v1719 = vshll.u32 %v1450, 16
        %v1721 = vrot.slane %v1719, 5
        %v1722 = vsel %vm1458, %v1717, %v1721
        %v1724 = vshrl.u32 %v1430, 16
        %v1726 = vrot.slane %v1724, 4
        %v1727 = vshll.u32 %v1430, 16
        %v1729 = vrot.slane %v1727, 5
        %v1730 = vor.u32 %v1726, %v1729
        %v1731 = vrot.slane %v1730, 4
        %v1733 = vshll.u32 %v1431, 16
        %v1735 = vrot.slane %v1733, 5
        %v1736 = vsel %vm1458, %v1731, %v1735
        %v1737 = vshrl.u32 %v1431, 16
        %v1739 = vrot.slane %v1737, 4
        %v1740 = vor.u32 %v1739, %v1735
        %v1741 = vrot.slane %v1740, 4
        %v1743 = vshll.u32 %v1451, 16
        %v1745 = vrot.slane %v1743, 5
        %v1746 = vsel %vm1458, %v1741, %v1745
        %v1748 = vshrl.u32 %v1432, 16
        %v1750 = vrot.slane %v1748, 4
        %v1751 = vshll.u32 %v1432, 16
        %v1753 = vrot.slane %v1751, 5
        %v1754 = vor.u32 %v1750, %v1753
        %v1755 = vrot.slane %v1754, 4
        %v1757 = vshll.u32 %v1433, 16
        %v1759 = vrot.slane %v1757, 5
        %v1760 = vsel %vm1458, %v1755, %v1759
        %v1761 = vshrl.u32 %v1433, 16
        %v1763 = vrot.slane %v1761, 4
        %v1764 = vor.u32 %v1763, %v1759
        %v1765 = vrot.slane %v1764, 4
        %v1767 = vshll.u32 %v1452, 16
        %v1769 = vrot.slane %v1767, 5
        %v1770 = vsel %vm1458, %v1765, %v1769
        %v1772 = vshrl.u32 %v1434, 16
        %v1774 = vrot.slane %v1772, 4
        %v1775 = vshll.u32 %v1434, 16
        %v1777 = vrot.slane %v1775, 5
        %v1778 = vor.u32 %v1774, %v1777
        %v1779 = vrot.slane %v1778, 4
        %v1781 = vshll.u32 %v1435, 16
        %v1783 = vrot.slane %v1781, 5
        %v1784 = vsel %vm1458, %v1779, %v1783
        %v1785 = vshrl.u32 %v1435, 16
        %v1787 = vrot.slane %v1785, 4
        %v1788 = vor.u32 %v1787, %v1783
        %v1789 = vrot.slane %v1788, 4
        %v1791 = vshll.u32 %v1453, 16
        %v1793 = vrot.slane %v1791, 5
        %v1794 = vsel %vm1458, %v1789, %v1793
        %v1796 = vshrl.u32 %v1436, 16
        %v1798 = vrot.slane %v1796, 4
        %v1799 = vshll.u32 %v1436, 16
        %v1801 = vrot.slane %v1799, 5
        %v1802 = vor.u32 %v1798, %v1801
        %v1803 = vrot.slane %v1802, 4
        %v1805 = vshll.u32 %v1437, 16
        %v1807 = vrot.slane %v1805, 5
        %v1808 = vsel %vm1458, %v1803, %v1807
        %v1809 = vshrl.u32 %v1437, 16
        %v1811 = vrot.slane %v1809, 4
        %v1812 = vor.u32 %v1811, %v1807
        %v1813 = vrot.slane %v1812, 4
        %v1815 = vshll.u32 %v1454, 16
        %v1817 = vrot.slane %v1815, 5
        %v1818 = vsel %vm1458, %v1813, %v1817
        %v1820 = vshrl.u32 %v1438, 16
        %v1822 = vrot.slane %v1820, 4
        %v1823 = vshll.u32 %v1438, 16
        %v1825 = vrot.slane %v1823, 5
        %v1826 = vor.u32 %v1822, %v1825
        %v1827 = vrot.slane %v1826, 4
        %v1829 = vshll.u32 %v1439, 16
        %v1831 = vrot.slane %v1829, 5
        %v1832 = vsel %vm1458, %v1827, %v1831
        %v1833 = vshrl.u32 %v1439, 16
        %v1835 = vrot.slane %v1833, 4
        %v1836 = vor.u32 %v1835, %v1831
        %v1837 = vrot.slane %v1836, 4
        %v1839 = vshll.u32 %v1455, 16
        %v1841 = vrot.slane %v1839, 5
        %v1842 = vsel %vm1458, %v1837, %v1841
        %v1875 = vunpack.c.l.b16 %v1408
        %v1876 = vunpack.c.l.b16 %v1409
        %v1877 = vunpack.c.l.b16 %v1410
        %v1878 = vunpack.c.l.b16 %v1411
        %v1879 = vunpack.c.l.b16 %v1412
        %v1880 = vunpack.c.l.b16 %v1413
        %v1881 = vunpack.c.l.b16 %v1414
        %v1882 = vunpack.c.l.b16 %v1415
        %v1883 = vunpack.c.l.b16 %v1416
        %v1884 = vunpack.c.l.b16 %v1417
        %v1885 = vunpack.c.l.b16 %v1418
        %v1886 = vunpack.c.l.b16 %v1419
        %v1887 = vunpack.c.l.b16 %v1420
        %v1888 = vunpack.c.l.b16 %v1421
        %v1889 = vunpack.c.l.b16 %v1422
        %v1890 = vunpack.c.l.b16 %v1423
        %v1891 = vunpack.c.l.b16 %v1424
        %v1892 = vunpack.c.l.b16 %v1425
        %v1893 = vunpack.c.l.b16 %v1426
        %v1894 = vunpack.c.l.b16 %v1427
        %v1895 = vunpack.c.l.b16 %v1428
        %v1896 = vunpack.c.l.b16 %v1429
        %v1897 = vunpack.c.l.b16 %v1430
        %v1898 = vunpack.c.l.b16 %v1431
        %v1899 = vunpack.c.l.b16 %v1432
        %v1900 = vunpack.c.l.b16 %v1433
        %v1901 = vunpack.c.l.b16 %v1434
        %v1902 = vunpack.c.l.b16 %v1435
        %v1903 = vunpack.c.l.b16 %v1436
        %v1904 = vunpack.c.l.b16 %v1437
        %v1905 = vunpack.c.l.b16 %v1438
        %v1906 = vunpack.c.l.b16 %v1439
        %v1907 = vpack.c.b16 %v1876, %v1875
        %v1908 = vpack.c.b16 %v1878, %v1877
        %v1909 = vpack.c.b16 %v1880, %v1879
        %v1910 = vpack.c.b16 %v1882, %v1881
        %v1911 = vpack.c.b16 %v1884, %v1883
        %v1912 = vpack.c.b16 %v1886, %v1885
        %v1913 = vpack.c.b16 %v1888, %v1887
        %v1914 = vpack.c.b16 %v1890, %v1889
        %v1915 = vpack.c.b16 %v1892, %v1891
        %v1916 = vpack.c.b16 %v1894, %v1893
        %v1917 = vpack.c.b16 %v1896, %v1895
        %v1918 = vpack.c.b16 %v1898, %v1897
        %v1919 = vpack.c.b16 %v1900, %v1899
        %v1920 = vpack.c.b16 %v1902, %v1901
        %v1921 = vpack.c.b16 %v1904, %v1903
        %v1922 = vpack.c.b16 %v1906, %v1905
        %v1939 = vunpack.c.l.b16 %v1472
        %v1940 = vunpack.c.l.b16 %v1482
        %v1941 = vunpack.c.l.b16 %v1496
        %v1942 = vunpack.c.l.b16 %v1506
        %v1943 = vunpack.c.l.b16 %v1520
        %v1944 = vunpack.c.l.b16 %v1530
        %v1945 = vunpack.c.l.b16 %v1544
        %v1946 = vunpack.c.l.b16 %v1554
        %v1947 = vunpack.c.l.b16 %v1568
        %v1948 = vunpack.c.l.b16 %v1578
        %v1949 = vunpack.c.l.b16 %v1592
        %v1950 = vunpack.c.l.b16 %v1602
        %v1951 = vunpack.c.l.b16 %v1616
        %v1952 = vunpack.c.l.b16 %v1626
        %v1953 = vunpack.c.l.b16 %v1640
        %v1954 = vunpack.c.l.b16 %v1650
        %v1955 = vunpack.c.l.b16 %v1664
        %v1956 = vunpack.c.l.b16 %v1674
        %v1957 = vunpack.c.l.b16 %v1688
        %v1958 = vunpack.c.l.b16 %v1698
        %v1959 = vunpack.c.l.b16 %v1712
        %v1960 = vunpack.c.l.b16 %v1722
        %v1961 = vunpack.c.l.b16 %v1736
        %v1962 = vunpack.c.l.b16 %v1746
        %v1963 = vunpack.c.l.b16 %v1760
        %v1964 = vunpack.c.l.b16 %v1770
        %v1965 = vunpack.c.l.b16 %v1784
        %v1966 = vunpack.c.l.b16 %v1794
        %v1967 = vunpack.c.l.b16 %v1808
        %v1968 = vunpack.c.l.b16 %v1818
        %v1969 = vunpack.c.l.b16 %v1832
        %v1970 = vunpack.c.l.b16 %v1842
        %v1971 = vpack.c.b16 %v1940, %v1939
        %v1972 = vpack.c.b16 %v1942, %v1941
        %v1973 = vpack.c.b16 %v1944, %v1943
        %v1974 = vpack.c.b16 %v1946, %v1945
        %v1975 = vpack.c.b16 %v1948, %v1947
        %v1976 = vpack.c.b16 %v1950, %v1949
        %v1977 = vpack.c.b16 %v1952, %v1951
        %v1978 = vpack.c.b16 %v1954, %v1953
        %v1979 = vpack.c.b16 %v1956, %v1955
        %v1980 = vpack.c.b16 %v1958, %v1957
        %v1981 = vpack.c.b16 %v1960, %v1959
        %v1982 = vpack.c.b16 %v1962, %v1961
        %v1983 = vpack.c.b16 %v1964, %v1963
        %v1984 = vpack.c.b16 %v1966, %v1965
        %v1985 = vpack.c.b16 %v1968, %v1967
        %v1986 = vpack.c.b16 %v1970, %v1969
        %v2003 = vld [vmem:[#allocation6] sm:$0xf]
        %v2004 = vld [vmem:[#allocation6 + $0x4] sm:$0xf]
        %v2005 = vld [vmem:[#allocation6 + $0x8] sm:$0xf]
        %v2006 = vld [vmem:[#allocation6 + $0xc] sm:$0xf]
        %v2007 = vld [vmem:[#allocation6 + $0x10] sm:$0xf]
        %v2008 = vld [vmem:[#allocation6 + $0x14] sm:$0xf]
        %v2009 = vld [vmem:[#allocation6 + $0x18] sm:$0xf]
        %v2010 = vld [vmem:[#allocation6 + $0x1c] sm:$0xf]
        %v2011 = vld [vmem:[#allocation6 + $0x20] sm:$0xf]
        %v2012 = vld [vmem:[#allocation6 + $0x24] sm:$0xf]
        %v2013 = vld [vmem:[#allocation6 + $0x28] sm:$0xf]
        %v2014 = vld [vmem:[#allocation6 + $0x2c] sm:$0xf]
        %v2015 = vld [vmem:[#allocation6 + $0x30] sm:$0xf]
        %v2016 = vld [vmem:[#allocation6 + $0x34] sm:$0xf]
        %v2017 = vld [vmem:[#allocation6 + $0x38] sm:$0xf]
        %v2018 = vld [vmem:[#allocation6 + $0x3c] sm:$0xf]
        %v2019 = vld [vmem:[#allocation6 + $0x40] sm:$0xf]
        %v2020 = vld [vmem:[#allocation6 + $0x44] sm:$0xf]
        %v2021 = vld [vmem:[#allocation6 + $0x48] sm:$0xf]
        %v2022 = vld [vmem:[#allocation6 + $0x4c] sm:$0xf]
        %v2023 = vld [vmem:[#allocation6 + $0x50] sm:$0xf]
        %v2024 = vld [vmem:[#allocation6 + $0x54] sm:$0xf]
        %v2025 = vld [vmem:[#allocation6 + $0x58] sm:$0xf]
        %v2026 = vld [vmem:[#allocation6 + $0x5c] sm:$0xf]
        %v2027 = vld [vmem:[#allocation6 + $0x60] sm:$0xf]
        %v2028 = vld [vmem:[#allocation6 + $0x64] sm:$0xf]
        %v2029 = vld [vmem:[#allocation6 + $0x68] sm:$0xf]
        %v2030 = vld [vmem:[#allocation6 + $0x6c] sm:$0xf]
        %v2031 = vld [vmem:[#allocation6 + $0x70] sm:$0xf]
        %v2032 = vld [vmem:[#allocation6 + $0x74] sm:$0xf]
        %v2033 = vld [vmem:[#allocation6 + $0x78] sm:$0xf]
        %v2034 = vld [vmem:[#allocation6 + $0x7c] sm:$0xf]
        %v2035 = vld [vmem:[#allocation2] sm:$0xe]
        %v2036 = vld [vmem:[#allocation2 + $0xc] sm:$0xe]
        %v2037 = vld [vmem:[#allocation2 + $0x18] sm:$0xe]
        %v2038 = vld [vmem:[#allocation2 + $0x24] sm:$0xe]
        %v2039 = vld [vmem:[#allocation2 + $0x30] sm:$0xe]
        %v2040 = vld [vmem:[#allocation2 + $0x3c] sm:$0xe]
        %v2041 = vld [vmem:[#allocation2 + $0x48] sm:$0xe]
        %v2042 = vld [vmem:[#allocation2 + $0x54] sm:$0xe]
        %v2043 = vld [vmem:[#allocation2 + $0x60] sm:$0xe]
        %v2044 = vld [vmem:[#allocation2 + $0x6c] sm:$0xe]
        %v2045 = vld [vmem:[#allocation2 + $0x78] sm:$0xe]
        %v2046 = vld [vmem:[#allocation2 + $0x84] sm:$0xe]
        %v2047 = vld [vmem:[#allocation2 + $0x90] sm:$0xe]
        %v2048 = vld [vmem:[#allocation2 + $0x9c] sm:$0xe]
        %v2049 = vld [vmem:[#allocation2 + $0xa8] sm:$0xe]
        %v2050 = vld [vmem:[#allocation2 + $0xb4] sm:$0xe]
        %vm2083 = vcmask 1042432
        %vm2084 = vcmask 1046532
        %vm2085 = vmor %vm2083, %vm2084
        %v2086 = vrot.slane %v2035, 5
        %v2087 = vrot.slane %v2086, 4
        %v2088 = vrot.slane %v1409, 5
        %v2089 = vsel %vm2085, %v2087, %v2088
        %v2090 = vrot.slane %v2088, 4
        %v2091 = vrot.slane %v1440, 5
        %v2092 = vsel %vm2085, %v2090, %v2091
        %v2093 = vrot.slane %v2036, 5
        %v2094 = vrot.slane %v2093, 4
        %v2095 = vrot.slane %v1411, 5
        %v2096 = vsel %vm2085, %v2094, %v2095
        %v2097 = vrot.slane %v2095, 4
        %v2098 = vrot.slane %v1441, 5
        %v2099 = vsel %vm2085, %v2097, %v2098
        %v2100 = vrot.slane %v2037, 5
        %v2101 = vrot.slane %v2100, 4
        %v2102 = vrot.slane %v1413, 5
        %v2103 = vsel %vm2085, %v2101, %v2102
        %v2104 = vrot.slane %v2102, 4
        %v2105 = vrot.slane %v1442, 5
        %v2106 = vsel %vm2085, %v2104, %v2105
        %v2107 = vrot.slane %v2038, 5
        %v2108 = vrot.slane %v2107, 4
        %v2109 = vrot.slane %v1415, 5
        %v2110 = vsel %vm2085, %v2108, %v2109
        %v2111 = vrot.slane %v2109, 4
        %v2112 = vrot.slane %v1443, 5
        %v2113 = vsel %vm2085, %v2111, %v2112
        %v2114 = vrot.slane %v2039, 5
        %v2115 = vrot.slane %v2114, 4
        %v2116 = vrot.slane %v1417, 5
        %v2117 = vsel %vm2085, %v2115, %v2116
        %v2118 = vrot.slane %v2116, 4
        %v2119 = vrot.slane %v1444, 5
        %v2120 = vsel %vm2085, %v2118, %v2119
        %v2121 = vrot.slane %v2040, 5
        %v2122 = vrot.slane %v2121, 4
        %v2123 = vrot.slane %v1419, 5
        %v2124 = vsel %vm2085, %v2122, %v2123
        %v2125 = vrot.slane %v2123, 4
        %v2126 = vrot.slane %v1445, 5
        %v2127 = vsel %vm2085, %v2125, %v2126
        %v2128 = vrot.slane %v2041, 5
        %v2129 = vrot.slane %v2128, 4
        %v2130 = vrot.slane %v1421, 5
        %v2131 = vsel %vm2085, %v2129, %v2130
        %v2132 = vrot.slane %v2130, 4
        %v2133 = vrot.slane %v1446, 5
        %v2134 = vsel %vm2085, %v2132, %v2133
        %v2135 = vrot.slane %v2042, 5
        %v2136 = vrot.slane %v2135, 4
        %v2137 = vrot.slane %v1423, 5
        %v2138 = vsel %vm2085, %v2136, %v2137
        %v2139 = vrot.slane %v2137, 4
        %v2140 = vrot.slane %v1447, 5
        %v2141 = vsel %vm2085, %v2139, %v2140
        %v2142 = vrot.slane %v2043, 5
        %v2143 = vrot.slane %v2142, 4
        %v2144 = vrot.slane %v1425, 5
        %v2145 = vsel %vm2085, %v2143, %v2144
        %v2146 = vrot.slane %v2144, 4
        %v2147 = vrot.slane %v1448, 5
        %v2148 = vsel %vm2085, %v2146, %v2147
        %v2149 = vrot.slane %v2044, 5
        %v2150 = vrot.slane %v2149, 4
        %v2151 = vrot.slane %v1427, 5
        %v2152 = vsel %vm2085, %v2150, %v2151
        %v2153 = vrot.slane %v2151, 4
        %v2154 = vrot.slane %v1449, 5
        %v2155 = vsel %vm2085, %v2153, %v2154
        %v2156 = vrot.slane %v2045, 5
        %v2157 = vrot.slane %v2156, 4
        %v2158 = vrot.slane %v1429, 5
        %v2159 = vsel %vm2085, %v2157, %v2158
        %v2160 = vrot.slane %v2158, 4
        %v2161 = vrot.slane %v1450, 5
        %v2162 = vsel %vm2085, %v2160, %v2161
        %v2163 = vrot.slane %v2046, 5
        %v2164 = vrot.slane %v2163, 4
        %v2165 = vrot.slane %v1431, 5
        %v2166 = vsel %vm2085, %v2164, %v2165
        %v2167 = vrot.slane %v2165, 4
        %v2168 = vrot.slane %v1451, 5
        %v2169 = vsel %vm2085, %v2167, %v2168
        %v2170 = vrot.slane %v2047, 5
        %v2171 = vrot.slane %v2170, 4
        %v2172 = vrot.slane %v1433, 5
        %v2173 = vsel %vm2085, %v2171, %v2172
        %v2174 = vrot.slane %v2172, 4
        %v2175 = vrot.slane %v1452, 5
        %v2176 = vsel %vm2085, %v2174, %v2175
        %v2177 = vrot.slane %v2048, 5
        %v2178 = vrot.slane %v2177, 4
        %v2179 = vrot.slane %v1435, 5
        %v2180 = vsel %vm2085, %v2178, %v2179
        %v2181 = vrot.slane %v2179, 4
        %v2182 = vrot.slane %v1453, 5
        %v2183 = vsel %vm2085, %v2181, %v2182
        %v2184 = vrot.slane %v2049, 5
        %v2185 = vrot.slane %v2184, 4
        %v2186 = vrot.slane %v1437, 5
        %v2187 = vsel %vm2085, %v2185, %v2186
        %v2188 = vrot.slane %v2186, 4
        %v2189 = vrot.slane %v1454, 5
        %v2190 = vsel %vm2085, %v2188, %v2189
        %v2191 = vrot.slane %v2050, 5
        %v2192 = vrot.slane %v2191, 4
        %v2193 = vrot.slane %v1439, 5
        %v2194 = vsel %vm2085, %v2192, %v2193
        %v2195 = vrot.slane %v2193, 4
        %v2196 = vrot.slane %v1455, 5
        %v2197 = vsel %vm2085, %v2195, %v2196
        %v2198 = vld [vmem:[%s832] sm:$0xf]
        %v2199 = vld [vmem:[%s832 + $0x4] sm:$0xf]
        %v2200 = vld [vmem:[%s832 + $0xc] sm:$0xf]
        %v2201 = vld [vmem:[%s832 + $0x10] sm:$0xf]
        %v2202 = vld [vmem:[%s832 + $0x18] sm:$0xf]
        %v2203 = vld [vmem:[%s832 + $0x1c] sm:$0xf]
        %v2204 = vld [vmem:[%s832 + $0x24] sm:$0xf]
        %v2205 = vld [vmem:[%s832 + $0x28] sm:$0xf]
        %v2206 = vld [vmem:[%s832 + $0x30] sm:$0xf]
        %v2207 = vld [vmem:[%s832 + $0x34] sm:$0xf]
        %v2208 = vld [vmem:[%s832 + $0x3c] sm:$0xf]
        %v2209 = vld [vmem:[%s832 + $0x40] sm:$0xf]
        %v2210 = vld [vmem:[%s832 + $0x48] sm:$0xf]
        %v2211 = vld [vmem:[%s832 + $0x4c] sm:$0xf]
        %v2212 = vld [vmem:[%s832 + $0x54] sm:$0xf]
        %v2213 = vld [vmem:[%s832 + $0x58] sm:$0xf]
        %v2214 = vld [vmem:[%s832 + $0x60] sm:$0xf]
        %v2215 = vld [vmem:[%s832 + $0x64] sm:$0xf]
        %v2216 = vld [vmem:[%s832 + $0x6c] sm:$0xf]
        %v2217 = vld [vmem:[%s832 + $0x70] sm:$0xf]
        %v2218 = vld [vmem:[%s832 + $0x78] sm:$0xf]
        %v2219 = vld [vmem:[%s832 + $0x7c] sm:$0xf]
        %v2220 = vld [vmem:[%s832 + $0x84] sm:$0xf]
        %v2221 = vld [vmem:[%s832 + $0x88] sm:$0xf]
        %v2222 = vld [vmem:[%s832 + $0x90] sm:$0xf]
        %v2223 = vld [vmem:[%s832 + $0x94] sm:$0xf]
        %v2224 = vld [vmem:[%s832 + $0x9c] sm:$0xf]
        %v2225 = vld [vmem:[%s832 + $0xa0] sm:$0xf]
        %v2226 = vld [vmem:[%s832 + $0xa8] sm:$0xf]
        %v2227 = vld [vmem:[%s832 + $0xac] sm:$0xf]
        %v2228 = vld [vmem:[%s832 + $0xb4] sm:$0xf]
        %v2229 = vld [vmem:[%s832 + $0xb8] sm:$0xf]
        %v2230 = vunpack.c.l.b16 %v2089
        %v2231 = vunpack.c.l.b16 %v2092
        %v2232 = vunpack.c.l.b16 %v2096
        %v2233 = vunpack.c.l.b16 %v2099
        %v2234 = vunpack.c.l.b16 %v2103
        %v2235 = vunpack.c.l.b16 %v2106
        %v2236 = vunpack.c.l.b16 %v2110
        %v2237 = vunpack.c.l.b16 %v2113
        %v2238 = vunpack.c.l.b16 %v2117
        %v2239 = vunpack.c.l.b16 %v2120
        %v2240 = vunpack.c.l.b16 %v2124
        %v2241 = vunpack.c.l.b16 %v2127
        %v2242 = vunpack.c.l.b16 %v2131
        %v2243 = vunpack.c.l.b16 %v2134
        %v2244 = vunpack.c.l.b16 %v2138
        %v2245 = vunpack.c.l.b16 %v2141
        %v2246 = vunpack.c.l.b16 %v2145
        %v2247 = vunpack.c.l.b16 %v2148
        %v2248 = vunpack.c.l.b16 %v2152
        %v2249 = vunpack.c.l.b16 %v2155
        %v2250 = vunpack.c.l.b16 %v2159
        %v2251 = vunpack.c.l.b16 %v2162
        %v2252 = vunpack.c.l.b16 %v2166
        %v2253 = vunpack.c.l.b16 %v2169
        %v2254 = vunpack.c.l.b16 %v2173
        %v2255 = vunpack.c.l.b16 %v2176
        %v2256 = vunpack.c.l.b16 %v2180
        %v2257 = vunpack.c.l.b16 %v2183
        %v2258 = vunpack.c.l.b16 %v2187
        %v2259 = vunpack.c.l.b16 %v2190
        %v2260 = vunpack.c.l.b16 %v2194
        %v2261 = vunpack.c.l.b16 %v2197
        %v2262 = vpack.c.b16 %v2231, %v2230
        %v2263 = vpack.c.b16 %v2233, %v2232
        %v2264 = vpack.c.b16 %v2235, %v2234
        %v2265 = vpack.c.b16 %v2237, %v2236
        %v2266 = vpack.c.b16 %v2239, %v2238
        %v2267 = vpack.c.b16 %v2241, %v2240
        %v2268 = vpack.c.b16 %v2243, %v2242
        %v2269 = vpack.c.b16 %v2245, %v2244
        %v2270 = vpack.c.b16 %v2247, %v2246
        %v2271 = vpack.c.b16 %v2249, %v2248
        %v2272 = vpack.c.b16 %v2251, %v2250
        %v2273 = vpack.c.b16 %v2253, %v2252
        %v2274 = vpack.c.b16 %v2255, %v2254
        %v2275 = vpack.c.b16 %v2257, %v2256
        %v2276 = vpack.c.b16 %v2259, %v2258
        %v2277 = vpack.c.b16 %v2261, %v2260
        %v2326 = vunpack.c.l.b16 %v2198
        %v2327 = vunpack.c.l.b16 %v2199
        %v2328 = vunpack.c.l.b16 %v2200
        %v2329 = vunpack.c.l.b16 %v2201
        %v2330 = vunpack.c.l.b16 %v2202
        %v2331 = vunpack.c.l.b16 %v2203
        %v2332 = vunpack.c.l.b16 %v2204
        %v2333 = vunpack.c.l.b16 %v2205
        %v2334 = vunpack.c.l.b16 %v2206
        %v2335 = vunpack.c.l.b16 %v2207
        %v2336 = vunpack.c.l.b16 %v2208
        %v2337 = vunpack.c.l.b16 %v2209
        %v2338 = vunpack.c.l.b16 %v2210
        %v2339 = vunpack.c.l.b16 %v2211
        %v2340 = vunpack.c.l.b16 %v2212
        %v2341 = vunpack.c.l.b16 %v2213
        %v2342 = vunpack.c.l.b16 %v2214
        %v2343 = vunpack.c.l.b16 %v2215
        %v2344 = vunpack.c.l.b16 %v2216
        %v2345 = vunpack.c.l.b16 %v2217
        %v2346 = vunpack.c.l.b16 %v2218
        %v2347 = vunpack.c.l.b16 %v2219
        %v2348 = vunpack.c.l.b16 %v2220
        %v2349 = vunpack.c.l.b16 %v2221
        %v2350 = vunpack.c.l.b16 %v2222
        %v2351 = vunpack.c.l.b16 %v2223
        %v2352 = vunpack.c.l.b16 %v2224
        %v2353 = vunpack.c.l.b16 %v2225
        %v2354 = vunpack.c.l.b16 %v2226
        %v2355 = vunpack.c.l.b16 %v2227
        %v2356 = vunpack.c.l.b16 %v2228
        %v2357 = vunpack.c.l.b16 %v2229
        %v2358 = vpack.c.b16 %v2327, %v2326
        %v2359 = vpack.c.b16 %v2329, %v2328
        %v2360 = vpack.c.b16 %v2331, %v2330
        %v2361 = vpack.c.b16 %v2333, %v2332
        %v2362 = vpack.c.b16 %v2335, %v2334
        %v2363 = vpack.c.b16 %v2337, %v2336
        %v2364 = vpack.c.b16 %v2339, %v2338
        %v2365 = vpack.c.b16 %v2341, %v2340
        %v2366 = vpack.c.b16 %v2343, %v2342
        %v2367 = vpack.c.b16 %v2345, %v2344
        %v2368 = vpack.c.b16 %v2347, %v2346
        %v2369 = vpack.c.b16 %v2349, %v2348
        %v2370 = vpack.c.b16 %v2351, %v2350
        %v2371 = vpack.c.b16 %v2353, %v2352
        %v2372 = vpack.c.b16 %v2355, %v2354
        %v2373 = vpack.c.b16 %v2357, %v2356
        %v2390 = vld [vmem:[#allocation6 + $0x80] sm:$0xf]
        %v2391 = vld [vmem:[#allocation6 + $0x84] sm:$0xf]
        %v2392 = vld [vmem:[#allocation6 + $0x88] sm:$0xf]
        %v2393 = vld [vmem:[#allocation6 + $0x8c] sm:$0xf]
        %v2394 = vld [vmem:[#allocation6 + $0x90] sm:$0xf]
        %v2395 = vld [vmem:[#allocation6 + $0x94] sm:$0xf]
        %v2396 = vld [vmem:[#allocation6 + $0x98] sm:$0xf]
        %v2397 = vld [vmem:[#allocation6 + $0x9c] sm:$0xf]
        %v2398 = vld [vmem:[#allocation6 + $0xa0] sm:$0xf]
        %v2399 = vld [vmem:[#allocation6 + $0xa4] sm:$0xf]
        %v2400 = vld [vmem:[#allocation6 + $0xa8] sm:$0xf]
        %v2401 = vld [vmem:[#allocation6 + $0xac] sm:$0xf]
        %v2402 = vld [vmem:[#allocation6 + $0xb0] sm:$0xf]
        %v2403 = vld [vmem:[#allocation6 + $0xb4] sm:$0xf]
        %v2404 = vld [vmem:[#allocation6 + $0xb8] sm:$0xf]
        %v2405 = vld [vmem:[#allocation6 + $0xbc] sm:$0xf]
        %v2406 = vld [vmem:[#allocation6 + $0xc0] sm:$0xf]
        %v2407 = vld [vmem:[#allocation6 + $0xc4] sm:$0xf]
        %v2408 = vld [vmem:[#allocation6 + $0xc8] sm:$0xf]
        %v2409 = vld [vmem:[#allocation6 + $0xcc] sm:$0xf]
        %v2410 = vld [vmem:[#allocation6 + $0xd0] sm:$0xf]
        %v2411 = vld [vmem:[#allocation6 + $0xd4] sm:$0xf]
        %v2412 = vld [vmem:[#allocation6 + $0xd8] sm:$0xf]
        %v2413 = vld [vmem:[#allocation6 + $0xdc] sm:$0xf]
        %v2414 = vld [vmem:[#allocation6 + $0xe0] sm:$0xf]
        %v2415 = vld [vmem:[#allocation6 + $0xe4] sm:$0xf]
        %v2416 = vld [vmem:[#allocation6 + $0xe8] sm:$0xf]
        %v2417 = vld [vmem:[#allocation6 + $0xec] sm:$0xf]
        %v2418 = vld [vmem:[#allocation6 + $0xf0] sm:$0xf]
        %v2419 = vld [vmem:[#allocation6 + $0xf4] sm:$0xf]
        %v2420 = vld [vmem:[#allocation6 + $0xf8] sm:$0xf]
        %v2421 = vld [vmem:[#allocation6 + $0xfc] sm:$0xf]
        %v2454 = vunpack.c.l.b16 %v2390
        %v2455 = vunpack.c.l.b16 %v2391
        %v2456 = vunpack.c.l.b16 %v2392
        %v2457 = vunpack.c.l.b16 %v2393
        %v2458 = vunpack.c.l.b16 %v2394
        %v2459 = vunpack.c.l.b16 %v2395
        %v2460 = vunpack.c.l.b16 %v2396
        %v2461 = vunpack.c.l.b16 %v2397
        %v2462 = vunpack.c.l.b16 %v2398
        %v2463 = vunpack.c.l.b16 %v2399
        %v2464 = vunpack.c.l.b16 %v2400
        %v2465 = vunpack.c.l.b16 %v2401
        %v2466 = vunpack.c.l.b16 %v2402
        %v2467 = vunpack.c.l.b16 %v2403
        %v2468 = vunpack.c.l.b16 %v2404
        %v2469 = vunpack.c.l.b16 %v2405
        %v2470 = vunpack.c.l.b16 %v2406
        %v2471 = vunpack.c.l.b16 %v2407
        %v2472 = vunpack.c.l.b16 %v2408
        %v2473 = vunpack.c.l.b16 %v2409
        %v2474 = vunpack.c.l.b16 %v2410
        %v2475 = vunpack.c.l.b16 %v2411
        %v2476 = vunpack.c.l.b16 %v2412
        %v2477 = vunpack.c.l.b16 %v2413
        %v2478 = vunpack.c.l.b16 %v2414
        %v2479 = vunpack.c.l.b16 %v2415
        %v2480 = vunpack.c.l.b16 %v2416
        %v2481 = vunpack.c.l.b16 %v2417
        %v2482 = vunpack.c.l.b16 %v2418
        %v2483 = vunpack.c.l.b16 %v2419
        %v2484 = vunpack.c.l.b16 %v2420
        %v2485 = vunpack.c.l.b16 %v2421
        %v2486 = vpack.c.b16 %v2455, %v2454
        %v2487 = vpack.c.b16 %v2457, %v2456
        %v2488 = vpack.c.b16 %v2459, %v2458
        %v2489 = vpack.c.b16 %v2461, %v2460
        %v2490 = vpack.c.b16 %v2463, %v2462
        %v2491 = vpack.c.b16 %v2465, %v2464
        %v2492 = vpack.c.b16 %v2467, %v2466
        %v2493 = vpack.c.b16 %v2469, %v2468
        %v2494 = vpack.c.b16 %v2471, %v2470
        %v2495 = vpack.c.b16 %v2473, %v2472
        %v2496 = vpack.c.b16 %v2475, %v2474
        %v2497 = vpack.c.b16 %v2477, %v2476
        %v2498 = vpack.c.b16 %v2479, %v2478
        %v2499 = vpack.c.b16 %v2481, %v2480
        %v2500 = vpack.c.b16 %v2483, %v2482
        %v2501 = vpack.c.b16 %v2485, %v2484
        %2518 = vmatprep.subr.bf16.mxu0 0
        %2519 = vmatpush1.bf16.msra.mxu0 %v2493
        %2520 = vmatprep.subr.bf16.mxu0 0
        %2521 = vmatpush1.bf16.msra.mxu0 %v2492
        %2522 = vmatprep.subr.bf16.mxu0 0
        %2523 = vmatpush1.bf16.msra.mxu0 %v2491
        %2524 = vmatprep.subr.bf16.mxu0 0
        %2525 = vmatpush1.bf16.msra.mxu0 %v2490
        %2526 = vmatprep.subr.bf16.mxu0 0
        %2527 = vmatpush1.bf16.msra.mxu0 %v2489
        %2528 = vmatprep.subr.bf16.mxu0 0
        %2529 = vmatpush1.bf16.msra.mxu0 %v2488
        %2530 = vmatprep.subr.bf16.mxu0 0
        %2531 = vmatpush1.bf16.msra.mxu0 %v2487
        %2532 = vmatprep.subr.bf16.mxu0 0
        %2533 = vmatpush1.bf16.msra.mxu0 %v2486
        %2534 = vmatprep.subr.bf16.mxu0 0
        %2535 = vmatpush2.bf16.msra.mxu0 %v2501
        %2536 = vmatprep.subr.bf16.mxu0 0
        %2537 = vmatpush2.bf16.msra.mxu0 %v2500
        %2538 = vmatprep.subr.bf16.mxu0 0
        %2539 = vmatpush2.bf16.msra.mxu0 %v2499
        %2540 = vmatprep.subr.bf16.mxu0 0
        %2541 = vmatpush2.bf16.msra.mxu0 %v2498
        %2542 = vmatprep.subr.bf16.mxu0 0
        %2543 = vmatpush2.bf16.msra.mxu0 %v2497
        %2544 = vmatprep.subr.bf16.mxu0 0
        %2545 = vmatpush2.bf16.msra.mxu0 %v2496
        %2546 = vmatprep.subr.bf16.mxu0 0
        %2547 = vmatpush2.bf16.msra.mxu0 %v2495
        %2548 = vmatprep.subr.bf16.mxu0 0
        %2549 = vmatpush2.bf16.msra.mxu0 %v2494
        %2550 = vmatprep.mubr.bf16.mxu0 %v2358
        %2551 = vmatmul.mubr.bf16.gmra.mxu0 %v2262
        %v2552 = vpop.f32.mrf.mxu0
        %v2553 = vadd.f32 0.0, %v2552
        %v2554 = vpop.f32.mrf.mxu0
        %v2555 = vpop.f32.mrf.mxu0
        %v2556 = vadd.f32 0.0, %v2555
        %v2557 = vpop.f32.mrf.mxu0
        %2558 = vmatprep.mubr.bf16.mxu0 %v2359
        %2559 = vmatmul.mubr.bf16.gmra.mxu0 %v2263
        %v2560 = vpop.f32.mrf.mxu0
        %v2561 = vadd.f32 0.0, %v2560
        %v2562 = vpop.f32.mrf.mxu0
        %v2563 = vpop.f32.mrf.mxu0
        %v2564 = vadd.f32 0.0, %v2563
        %v2565 = vpop.f32.mrf.mxu0
        %2566 = vmatprep.mubr.bf16.mxu0 %v2360
        %2567 = vmatmul.mubr.bf16.gmra.mxu0 %v2264
        %v2568 = vpop.f32.mrf.mxu0
        %v2569 = vadd.f32 0.0, %v2568
        %v2570 = vpop.f32.mrf.mxu0
        %v2571 = vpop.f32.mrf.mxu0
        %v2572 = vadd.f32 0.0, %v2571
        %v2573 = vpop.f32.mrf.mxu0
        %2574 = vmatprep.mubr.bf16.mxu0 %v2361
        %2575 = vmatmul.mubr.bf16.gmra.mxu0 %v2265
        %v2576 = vpop.f32.mrf.mxu0
        %v2577 = vadd.f32 0.0, %v2576
        %v2578 = vpop.f32.mrf.mxu0
        %v2579 = vpop.f32.mrf.mxu0
        %v2580 = vadd.f32 0.0, %v2579
        %v2581 = vpop.f32.mrf.mxu0
        %2582 = vmatprep.mubr.bf16.mxu0 %v2362
        %2583 = vmatmul.mubr.bf16.gmra.mxu0 %v2266
        %v2584 = vpop.f32.mrf.mxu0
        %v2585 = vadd.f32 0.0, %v2584
        %v2586 = vpop.f32.mrf.mxu0
        %v2587 = vpop.f32.mrf.mxu0
        %v2588 = vadd.f32 0.0, %v2587
        %v2589 = vpop.f32.mrf.mxu0
        %2590 = vmatprep.mubr.bf16.mxu0 %v2363
        %2591 = vmatmul.mubr.bf16.gmra.mxu0 %v2267
        %v2592 = vpop.f32.mrf.mxu0
        %v2593 = vadd.f32 0.0, %v2592
        %v2594 = vpop.f32.mrf.mxu0
        %v2595 = vpop.f32.mrf.mxu0
        %v2596 = vadd.f32 0.0, %v2595
        %v2597 = vpop.f32.mrf.mxu0
        %2598 = vmatprep.mubr.bf16.mxu0 %v2364
        %2599 = vmatmul.mubr.bf16.gmra.mxu0 %v2268
        %v2600 = vpop.f32.mrf.mxu0
        %v2601 = vadd.f32 0.0, %v2600
        %v2602 = vpop.f32.mrf.mxu0
        %v2603 = vpop.f32.mrf.mxu0
        %v2604 = vadd.f32 0.0, %v2603
        %v2605 = vpop.f32.mrf.mxu0
        %2606 = vmatprep.mubr.bf16.mxu0 %v2365
        %2607 = vmatmul.mubr.bf16.gmra.mxu0 %v2269
        %v2608 = vpop.f32.mrf.mxu0
        %v2609 = vadd.f32 0.0, %v2608
        %v2610 = vpop.f32.mrf.mxu0
        %v2611 = vpop.f32.mrf.mxu0
        %v2612 = vadd.f32 0.0, %v2611
        %v2613 = vpop.f32.mrf.mxu0
        %2614 = vmatprep.mubr.bf16.mxu0 %v2366
        %2615 = vmatmul.mubr.bf16.gmra.mxu0 %v2270
        %v2616 = vpop.f32.mrf.mxu0
        %v2617 = vadd.f32 0.0, %v2616
        %v2618 = vpop.f32.mrf.mxu0
        %v2619 = vpop.f32.mrf.mxu0
        %v2620 = vadd.f32 0.0, %v2619
        %v2621 = vpop.f32.mrf.mxu0
        %2622 = vmatprep.mubr.bf16.mxu0 %v2367
        %2623 = vmatmul.mubr.bf16.gmra.mxu0 %v2271
        %v2624 = vpop.f32.mrf.mxu0
        %v2625 = vadd.f32 0.0, %v2624
        %v2626 = vpop.f32.mrf.mxu0
        %v2627 = vpop.f32.mrf.mxu0
        %v2628 = vadd.f32 0.0, %v2627
        %v2629 = vpop.f32.mrf.mxu0
        %2630 = vmatprep.mubr.bf16.mxu0 %v2368
        %2631 = vmatmul.mubr.bf16.gmra.mxu0 %v2272
        %v2632 = vpop.f32.mrf.mxu0
        %v2633 = vadd.f32 0.0, %v2632
        %v2634 = vpop.f32.mrf.mxu0
        %v2635 = vpop.f32.mrf.mxu0
        %v2636 = vadd.f32 0.0, %v2635
        %v2637 = vpop.f32.mrf.mxu0
        %2638 = vmatprep.mubr.bf16.mxu0 %v2369
        %2639 = vmatmul.mubr.bf16.gmra.mxu0 %v2273
        %v2640 = vpop.f32.mrf.mxu0
        %v2641 = vadd.f32 0.0, %v2640
        %v2642 = vpop.f32.mrf.mxu0
        %v2643 = vpop.f32.mrf.mxu0
        %v2644 = vadd.f32 0.0, %v2643
        %v2645 = vpop.f32.mrf.mxu0
        %2646 = vmatprep.mubr.bf16.mxu0 %v2370
        %2647 = vmatmul.mubr.bf16.gmra.mxu0 %v2274
        %v2648 = vpop.f32.mrf.mxu0
        %v2649 = vadd.f32 0.0, %v2648
        %v2650 = vpop.f32.mrf.mxu0
        %v2651 = vpop.f32.mrf.mxu0
        %v2652 = vadd.f32 0.0, %v2651
        %v2653 = vpop.f32.mrf.mxu0
        %2654 = vmatprep.mubr.bf16.mxu0 %v2371
        %2655 = vmatmul.mubr.bf16.gmra.mxu0 %v2275
        %v2656 = vpop.f32.mrf.mxu0
        %v2657 = vadd.f32 0.0, %v2656
        %v2658 = vpop.f32.mrf.mxu0
        %v2659 = vpop.f32.mrf.mxu0
        %v2660 = vadd.f32 0.0, %v2659
        %v2661 = vpop.f32.mrf.mxu0
        %2662 = vmatprep.mubr.bf16.mxu0 %v2372
        %2663 = vmatmul.mubr.bf16.gmra.mxu0 %v2276
        %v2664 = vpop.f32.mrf.mxu0
        %v2665 = vadd.f32 0.0, %v2664
        %v2666 = vpop.f32.mrf.mxu0
        %v2667 = vpop.f32.mrf.mxu0
        %v2668 = vadd.f32 0.0, %v2667
        %v2669 = vpop.f32.mrf.mxu0
        %2670 = vmatprep.mubr.bf16.mxu0 %v2373
        %2671 = vmatmul.mubr.bf16.gmra.mxu0 %v2277
        %v2672 = vpop.f32.mrf.mxu0
        %v2673 = vadd.f32 0.0, %v2672
        %v2674 = vpop.f32.mrf.mxu0
        %v2675 = vpop.f32.mrf.mxu0
        %v2676 = vadd.f32 0.0, %v2675
        %v2677 = vpop.f32.mrf.mxu0
        %2678 = vdwg.mxu0
        %v2711 = vunpack.c.l.b16 %v2003
        %v2712 = vunpack.c.l.b16 %v2004
        %v2713 = vunpack.c.l.b16 %v2005
        %v2714 = vunpack.c.l.b16 %v2006
        %v2715 = vunpack.c.l.b16 %v2007
        %v2716 = vunpack.c.l.b16 %v2008
        %v2717 = vunpack.c.l.b16 %v2009
        %v2718 = vunpack.c.l.b16 %v2010
        %v2719 = vunpack.c.l.b16 %v2011
        %v2720 = vunpack.c.l.b16 %v2012
        %v2721 = vunpack.c.l.b16 %v2013
        %v2722 = vunpack.c.l.b16 %v2014
        %v2723 = vunpack.c.l.b16 %v2015
        %v2724 = vunpack.c.l.b16 %v2016
        %v2725 = vunpack.c.l.b16 %v2017
        %v2726 = vunpack.c.l.b16 %v2018
        %v2727 = vunpack.c.l.b16 %v2019
        %v2728 = vunpack.c.l.b16 %v2020
        %v2729 = vunpack.c.l.b16 %v2021
        %v2730 = vunpack.c.l.b16 %v2022
        %v2731 = vunpack.c.l.b16 %v2023
        %v2732 = vunpack.c.l.b16 %v2024
        %v2733 = vunpack.c.l.b16 %v2025
        %v2734 = vunpack.c.l.b16 %v2026
        %v2735 = vunpack.c.l.b16 %v2027
        %v2736 = vunpack.c.l.b16 %v2028
        %v2737 = vunpack.c.l.b16 %v2029
        %v2738 = vunpack.c.l.b16 %v2030
        %v2739 = vunpack.c.l.b16 %v2031
        %v2740 = vunpack.c.l.b16 %v2032
        %v2741 = vunpack.c.l.b16 %v2033
        %v2742 = vunpack.c.l.b16 %v2034
        %v2743 = vpack.c.b16 %v2712, %v2711
        %v2744 = vpack.c.b16 %v2714, %v2713
        %v2745 = vpack.c.b16 %v2716, %v2715
        %v2746 = vpack.c.b16 %v2718, %v2717
        %v2747 = vpack.c.b16 %v2720, %v2719
        %v2748 = vpack.c.b16 %v2722, %v2721
        %v2749 = vpack.c.b16 %v2724, %v2723
        %v2750 = vpack.c.b16 %v2726, %v2725
        %v2751 = vpack.c.b16 %v2728, %v2727
        %v2752 = vpack.c.b16 %v2730, %v2729
        %v2753 = vpack.c.b16 %v2732, %v2731
        %v2754 = vpack.c.b16 %v2734, %v2733
        %v2755 = vpack.c.b16 %v2736, %v2735
        %v2756 = vpack.c.b16 %v2738, %v2737
        %v2757 = vpack.c.b16 %v2740, %v2739
        %v2758 = vpack.c.b16 %v2742, %v2741
        %2775 = vmatprep.subr.bf16.mxu0 0
        %2776 = vmatpush1.bf16.msra.mxu0 %v2750
        %2777 = vmatprep.subr.bf16.mxu0 0
        %2778 = vmatpush1.bf16.msra.mxu0 %v2749
        %2779 = vmatprep.subr.bf16.mxu0 0
        %2780 = vmatpush1.bf16.msra.mxu0 %v2748
        %2781 = vmatprep.subr.bf16.mxu0 0
        %2782 = vmatpush1.bf16.msra.mxu0 %v2747
        %2783 = vmatprep.subr.bf16.mxu0 0
        %2784 = vmatpush1.bf16.msra.mxu0 %v2746
        %2785 = vmatprep.subr.bf16.mxu0 0
        %2786 = vmatpush1.bf16.msra.mxu0 %v2745
        %2787 = vmatprep.subr.bf16.mxu0 0
        %2788 = vmatpush1.bf16.msra.mxu0 %v2744
        %2789 = vmatprep.subr.bf16.mxu0 0
        %2790 = vmatpush1.bf16.msra.mxu0 %v2743
        %2791 = vmatprep.subr.bf16.mxu0 0
        %2792 = vmatpush2.bf16.msra.mxu0 %v2758
        %2793 = vmatprep.subr.bf16.mxu0 0
        %2794 = vmatpush2.bf16.msra.mxu0 %v2757
        %2795 = vmatprep.subr.bf16.mxu0 0
        %2796 = vmatpush2.bf16.msra.mxu0 %v2756
        %2797 = vmatprep.subr.bf16.mxu0 0
        %2798 = vmatpush2.bf16.msra.mxu0 %v2755
        %2799 = vmatprep.subr.bf16.mxu0 0
        %2800 = vmatpush2.bf16.msra.mxu0 %v2754
        %2801 = vmatprep.subr.bf16.mxu0 0
        %2802 = vmatpush2.bf16.msra.mxu0 %v2753
        %2803 = vmatprep.subr.bf16.mxu0 0
        %2804 = vmatpush2.bf16.msra.mxu0 %v2752
        %2805 = vmatprep.subr.bf16.mxu0 0
        %2806 = vmatpush2.bf16.msra.mxu0 %v2751
        %2807 = vmatprep.mubr.bf16.mxu0 %v1971
        %2808 = vmatmul.mubr.bf16.gmra.mxu0 %v1907
        %v2809 = vpop.f32.mrf.mxu0
        %v2810 = vadd.f32 %v2553, %v2809
        %v2811 = vpop.f32.mrf.mxu0
        %v2812 = vpop.f32.mrf.mxu0
        %v2813 = vadd.f32 %v2556, %v2812
        %v2814 = vpop.f32.mrf.mxu0
        %2815 = vmatprep.mubr.bf16.mxu0 %v1972
        %2816 = vmatmul.mubr.bf16.gmra.mxu0 %v1908
        %v2817 = vpop.f32.mrf.mxu0
        %v2818 = vadd.f32 %v2561, %v2817
        %v2819 = vpop.f32.mrf.mxu0
        %v2820 = vpop.f32.mrf.mxu0
        %v2821 = vadd.f32 %v2564, %v2820
        %v2822 = vpop.f32.mrf.mxu0
        %2823 = vmatprep.mubr.bf16.mxu0 %v1973
        %2824 = vmatmul.mubr.bf16.gmra.mxu0 %v1909
        %v2825 = vpop.f32.mrf.mxu0
        %v2826 = vadd.f32 %v2569, %v2825
        %v2827 = vpop.f32.mrf.mxu0
        %v2828 = vpop.f32.mrf.mxu0
        %v2829 = vadd.f32 %v2572, %v2828
        %v2830 = vpop.f32.mrf.mxu0
        %2831 = vmatprep.mubr.bf16.mxu0 %v1974
        %2832 = vmatmul.mubr.bf16.gmra.mxu0 %v1910
        %v2833 = vpop.f32.mrf.mxu0
        %v2834 = vadd.f32 %v2577, %v2833
        %v2835 = vpop.f32.mrf.mxu0
        %v2836 = vpop.f32.mrf.mxu0
        %v2837 = vadd.f32 %v2580, %v2836
        %v2838 = vpop.f32.mrf.mxu0
        %2839 = vmatprep.mubr.bf16.mxu0 %v1975
        %2840 = vmatmul.mubr.bf16.gmra.mxu0 %v1911
        %v2841 = vpop.f32.mrf.mxu0
        %v2842 = vadd.f32 %v2585, %v2841
        %v2843 = vpop.f32.mrf.mxu0
        %v2844 = vpop.f32.mrf.mxu0
        %v2845 = vadd.f32 %v2588, %v2844
        %v2846 = vpop.f32.mrf.mxu0
        %2847 = vmatprep.mubr.bf16.mxu0 %v1976
        %2848 = vmatmul.mubr.bf16.gmra.mxu0 %v1912
        %v2849 = vpop.f32.mrf.mxu0
        %v2850 = vadd.f32 %v2593, %v2849
        %v2851 = vpop.f32.mrf.mxu0
        %v2852 = vpop.f32.mrf.mxu0
        %v2853 = vadd.f32 %v2596, %v2852
        %v2854 = vpop.f32.mrf.mxu0
        %2855 = vmatprep.mubr.bf16.mxu0 %v1977
        %2856 = vmatmul.mubr.bf16.gmra.mxu0 %v1913
        %v2857 = vpop.f32.mrf.mxu0
        %v2858 = vadd.f32 %v2601, %v2857
        %v2859 = vpop.f32.mrf.mxu0
        %v2860 = vpop.f32.mrf.mxu0
        %v2861 = vadd.f32 %v2604, %v2860
        %v2862 = vpop.f32.mrf.mxu0
        %2863 = vmatprep.mubr.bf16.mxu0 %v1978
        %2864 = vmatmul.mubr.bf16.gmra.mxu0 %v1914
        %v2865 = vpop.f32.mrf.mxu0
        %v2866 = vadd.f32 %v2609, %v2865
        %v2867 = vpop.f32.mrf.mxu0
        %v2868 = vpop.f32.mrf.mxu0
        %v2869 = vadd.f32 %v2612, %v2868
        %v2870 = vpop.f32.mrf.mxu0
        %2871 = vmatprep.mubr.bf16.mxu0 %v1979
        %2872 = vmatmul.mubr.bf16.gmra.mxu0 %v1915
        %v2873 = vpop.f32.mrf.mxu0
        %v2874 = vadd.f32 %v2617, %v2873
        %v2875 = vpop.f32.mrf.mxu0
        %v2876 = vpop.f32.mrf.mxu0
        %v2877 = vadd.f32 %v2620, %v2876
        %v2878 = vpop.f32.mrf.mxu0
        %2879 = vmatprep.mubr.bf16.mxu0 %v1980
        %2880 = vmatmul.mubr.bf16.gmra.mxu0 %v1916
        %v2881 = vpop.f32.mrf.mxu0
        %v2882 = vadd.f32 %v2625, %v2881
        %v2883 = vpop.f32.mrf.mxu0
        %v2884 = vpop.f32.mrf.mxu0
        %v2885 = vadd.f32 %v2628, %v2884
        %v2886 = vpop.f32.mrf.mxu0
        %2887 = vmatprep.mubr.bf16.mxu0 %v1981
        %2888 = vmatmul.mubr.bf16.gmra.mxu0 %v1917
        %v2889 = vpop.f32.mrf.mxu0
        %v2890 = vadd.f32 %v2633, %v2889
        %v2891 = vpop.f32.mrf.mxu0
        %v2892 = vpop.f32.mrf.mxu0
        %v2893 = vadd.f32 %v2636, %v2892
        %v2894 = vpop.f32.mrf.mxu0
        %2895 = vmatprep.mubr.bf16.mxu0 %v1982
        %2896 = vmatmul.mubr.bf16.gmra.mxu0 %v1918
        %v2897 = vpop.f32.mrf.mxu0
        %v2898 = vadd.f32 %v2641, %v2897
        %v2899 = vpop.f32.mrf.mxu0
        %v2900 = vpop.f32.mrf.mxu0
        %v2901 = vadd.f32 %v2644, %v2900
        %v2902 = vpop.f32.mrf.mxu0
        %2903 = vmatprep.mubr.bf16.mxu0 %v1983
        %2904 = vmatmul.mubr.bf16.gmra.mxu0 %v1919
        %v2905 = vpop.f32.mrf.mxu0
        %v2906 = vadd.f32 %v2649, %v2905
        %v2907 = vpop.f32.mrf.mxu0
        %v2908 = vpop.f32.mrf.mxu0
        %v2909 = vadd.f32 %v2652, %v2908
        %v2910 = vpop.f32.mrf.mxu0
        %2911 = vmatprep.mubr.bf16.mxu0 %v1984
        %2912 = vmatmul.mubr.bf16.gmra.mxu0 %v1920
        %v2913 = vpop.f32.mrf.mxu0
        %v2914 = vadd.f32 %v2657, %v2913
        %v2915 = vpop.f32.mrf.mxu0
        %v2916 = vpop.f32.mrf.mxu0
        %v2917 = vadd.f32 %v2660, %v2916
        %v2918 = vpop.f32.mrf.mxu0
        %2919 = vmatprep.mubr.bf16.mxu0 %v1985
        %2920 = vmatmul.mubr.bf16.gmra.mxu0 %v1921
        %v2921 = vpop.f32.mrf.mxu0
        %v2922 = vadd.f32 %v2665, %v2921
        %v2923 = vpop.f32.mrf.mxu0
        %v2924 = vpop.f32.mrf.mxu0
        %v2925 = vadd.f32 %v2668, %v2924
        %v2926 = vpop.f32.mrf.mxu0
        %2927 = vmatprep.mubr.bf16.mxu0 %v1986
        %2928 = vmatmul.mubr.bf16.gmra.mxu0 %v1922
        %v2929 = vpop.f32.mrf.mxu0
        %v2930 = vadd.f32 %v2673, %v2929
        %v2931 = vpop.f32.mrf.mxu0
        %v2932 = vpop.f32.mrf.mxu0
        %v2933 = vadd.f32 %v2676, %v2932
        %v2934 = vpop.f32.mrf.mxu0
        %2935 = vdwg.mxu0
        %v2936 = vld [vmem:[%s832] sm:$0xf]
        %v2937 = vld [vmem:[%s832 + $0x4] sm:$0xf]
        %v2938 = vld [vmem:[%s832 + $0x8] sm:$0x1]
        %v2939 = vld [vmem:[%s832 + $0xc] sm:$0xf]
        %v2940 = vld [vmem:[%s832 + $0x10] sm:$0xf]
        %v2941 = vld [vmem:[%s832 + $0x14] sm:$0x1]
        %v2942 = vld [vmem:[%s832 + $0x18] sm:$0xf]
        %v2943 = vld [vmem:[%s832 + $0x1c] sm:$0xf]
        %v2944 = vld [vmem:[%s832 + $0x20] sm:$0x1]
        %v2945 = vld [vmem:[%s832 + $0x24] sm:$0xf]
        %v2946 = vld [vmem:[%s832 + $0x28] sm:$0xf]
        %v2947 = vld [vmem:[%s832 + $0x2c] sm:$0x1]
        %v2948 = vld [vmem:[%s832 + $0x30] sm:$0xf]
        %v2949 = vld [vmem:[%s832 + $0x34] sm:$0xf]
        %v2950 = vld [vmem:[%s832 + $0x38] sm:$0x1]
        %v2951 = vld [vmem:[%s832 + $0x3c] sm:$0xf]
        %v2952 = vld [vmem:[%s832 + $0x40] sm:$0xf]
        %v2953 = vld [vmem:[%s832 + $0x44] sm:$0x1]
        %v2954 = vld [vmem:[%s832 + $0x48] sm:$0xf]
        %v2955 = vld [vmem:[%s832 + $0x4c] sm:$0xf]
        %v2956 = vld [vmem:[%s832 + $0x50] sm:$0x1]
        %v2957 = vld [vmem:[%s832 + $0x54] sm:$0xf]
        %v2958 = vld [vmem:[%s832 + $0x58] sm:$0xf]
        %v2959 = vld [vmem:[%s832 + $0x5c] sm:$0x1]
        %v2960 = vld [vmem:[%s832 + $0x60] sm:$0xf]
        %v2961 = vld [vmem:[%s832 + $0x64] sm:$0xf]
        %v2962 = vld [vmem:[%s832 + $0x68] sm:$0x1]
        %v2963 = vld [vmem:[%s832 + $0x6c] sm:$0xf]
        %v2964 = vld [vmem:[%s832 + $0x70] sm:$0xf]
        %v2965 = vld [vmem:[%s832 + $0x74] sm:$0x1]
        %v2966 = vld [vmem:[%s832 + $0x78] sm:$0xf]
        %v2967 = vld [vmem:[%s832 + $0x7c] sm:$0xf]
        %v2968 = vld [vmem:[%s832 + $0x80] sm:$0x1]
        %v2969 = vld [vmem:[%s832 + $0x84] sm:$0xf]
        %v2970 = vld [vmem:[%s832 + $0x88] sm:$0xf]
        %v2971 = vld [vmem:[%s832 + $0x8c] sm:$0x1]
        %v2972 = vld [vmem:[%s832 + $0x90] sm:$0xf]
        %v2973 = vld [vmem:[%s832 + $0x94] sm:$0xf]
        %v2974 = vld [vmem:[%s832 + $0x98] sm:$0x1]
        %v2975 = vld [vmem:[%s832 + $0x9c] sm:$0xf]
        %v2976 = vld [vmem:[%s832 + $0xa0] sm:$0xf]
        %v2977 = vld [vmem:[%s832 + $0xa4] sm:$0x1]
        %v2978 = vld [vmem:[%s832 + $0xa8] sm:$0xf]
        %v2979 = vld [vmem:[%s832 + $0xac] sm:$0xf]
        %v2980 = vld [vmem:[%s832 + $0xb0] sm:$0x1]
        %v2981 = vld [vmem:[%s832 + $0xb4] sm:$0xf]
        %v2982 = vld [vmem:[%s832 + $0xb8] sm:$0xf]
        %v2983 = vld [vmem:[%s832 + $0xbc] sm:$0x1]
        %v2985 = vshrl.u32 %v2936, 16
        %v2987 = vrot.slane %v2985, 4
        %v2988 = vshll.u32 %v2936, 16
        %v2990 = vrot.slane %v2988, 5
        %v2991 = vor.u32 %v2987, %v2990
        %v2992 = vrot.slane %v2991, 4
        %v2994 = vshll.u32 %v2937, 16
        %v2996 = vrot.slane %v2994, 5
        %v2997 = vsel %vm1458, %v2992, %v2996
        %v2998 = vshrl.u32 %v2937, 16
        %v3000 = vrot.slane %v2998, 4
        %v3001 = vor.u32 %v3000, %v2996
        %v3002 = vrot.slane %v3001, 4
        %v3004 = vshll.u32 %v2938, 16
        %v3006 = vrot.slane %v3004, 5
        %v3007 = vsel %vm1458, %v3002, %v3006
        %v3009 = vshrl.u32 %v2939, 16
        %v3011 = vrot.slane %v3009, 4
        %v3012 = vshll.u32 %v2939, 16
        %v3014 = vrot.slane %v3012, 5
        %v3015 = vor.u32 %v3011, %v3014
        %v3016 = vrot.slane %v3015, 4
        %v3018 = vshll.u32 %v2940, 16
        %v3020 = vrot.slane %v3018, 5
        %v3021 = vsel %vm1458, %v3016, %v3020
        %v3022 = vshrl.u32 %v2940, 16
        %v3024 = vrot.slane %v3022, 4
        %v3025 = vor.u32 %v3024, %v3020
        %v3026 = vrot.slane %v3025, 4
        %v3028 = vshll.u32 %v2941, 16
        %v3030 = vrot.slane %v3028, 5
        %v3031 = vsel %vm1458, %v3026, %v3030
        %v3033 = vshrl.u32 %v2942, 16
        %v3035 = vrot.slane %v3033, 4
        %v3036 = vshll.u32 %v2942, 16
        %v3038 = vrot.slane %v3036, 5
        %v3039 = vor.u32 %v3035, %v3038
        %v3040 = vrot.slane %v3039, 4
        %v3042 = vshll.u32 %v2943, 16
        %v3044 = vrot.slane %v3042, 5
        %v3045 = vsel %vm1458, %v3040, %v3044
        %v3046 = vshrl.u32 %v2943, 16
        %v3048 = vrot.slane %v3046, 4
        %v3049 = vor.u32 %v3048, %v3044
        %v3050 = vrot.slane %v3049, 4
        %v3052 = vshll.u32 %v2944, 16
        %v3054 = vrot.slane %v3052, 5
        %v3055 = vsel %vm1458, %v3050, %v3054
        %v3057 = vshrl.u32 %v2945, 16
        %v3059 = vrot.slane %v3057, 4
        %v3060 = vshll.u32 %v2945, 16
        %v3062 = vrot.slane %v3060, 5
        %v3063 = vor.u32 %v3059, %v3062
        %v3064 = vrot.slane %v3063, 4
        %v3066 = vshll.u32 %v2946, 16
        %v3068 = vrot.slane %v3066, 5
        %v3069 = vsel %vm1458, %v3064, %v3068
        %v3070 = vshrl.u32 %v2946, 16
        %v3072 = vrot.slane %v3070, 4
        %v3073 = vor.u32 %v3072, %v3068
        %v3074 = vrot.slane %v3073, 4
        %v3076 = vshll.u32 %v2947, 16
        %v3078 = vrot.slane %v3076, 5
        %v3079 = vsel %vm1458, %v3074, %v3078
        %v3081 = vshrl.u32 %v2948, 16
        %v3083 = vrot.slane %v3081, 4
        %v3084 = vshll.u32 %v2948, 16
        %v3086 = vrot.slane %v3084, 5
        %v3087 = vor.u32 %v3083, %v3086
        %v3088 = vrot.slane %v3087, 4
        %v3090 = vshll.u32 %v2949, 16
        %v3092 = vrot.slane %v3090, 5
        %v3093 = vsel %vm1458, %v3088, %v3092
        %v3094 = vshrl.u32 %v2949, 16
        %v3096 = vrot.slane %v3094, 4
        %v3097 = vor.u32 %v3096, %v3092
        %v3098 = vrot.slane %v3097, 4
        %v3100 = vshll.u32 %v2950, 16
        %v3102 = vrot.slane %v3100, 5
        %v3103 = vsel %vm1458, %v3098, %v3102
        %v3105 = vshrl.u32 %v2951, 16
        %v3107 = vrot.slane %v3105, 4
        %v3108 = vshll.u32 %v2951, 16
        %v3110 = vrot.slane %v3108, 5
        %v3111 = vor.u32 %v3107, %v3110
        %v3112 = vrot.slane %v3111, 4
        %v3114 = vshll.u32 %v2952, 16
        %v3116 = vrot.slane %v3114, 5
        %v3117 = vsel %vm1458, %v3112, %v3116
        %v3118 = vshrl.u32 %v2952, 16
        %v3120 = vrot.slane %v3118, 4
        %v3121 = vor.u32 %v3120, %v3116
        %v3122 = vrot.slane %v3121, 4
        %v3124 = vshll.u32 %v2953, 16
        %v3126 = vrot.slane %v3124, 5
        %v3127 = vsel %vm1458, %v3122, %v3126
        %v3129 = vshrl.u32 %v2954, 16
        %v3131 = vrot.slane %v3129, 4
        %v3132 = vshll.u32 %v2954, 16
        %v3134 = vrot.slane %v3132, 5
        %v3135 = vor.u32 %v3131, %v3134
        %v3136 = vrot.slane %v3135, 4
        %v3138 = vshll.u32 %v2955, 16
        %v3140 = vrot.slane %v3138, 5
        %v3141 = vsel %vm1458, %v3136, %v3140
        %v3142 = vshrl.u32 %v2955, 16
        %v3144 = vrot.slane %v3142, 4
        %v3145 = vor.u32 %v3144, %v3140
        %v3146 = vrot.slane %v3145, 4
        %v3148 = vshll.u32 %v2956, 16
        %v3150 = vrot.slane %v3148, 5
        %v3151 = vsel %vm1458, %v3146, %v3150
        %v3153 = vshrl.u32 %v2957, 16
        %v3155 = vrot.slane %v3153, 4
        %v3156 = vshll.u32 %v2957, 16
        %v3158 = vrot.slane %v3156, 5
        %v3159 = vor.u32 %v3155, %v3158
        %v3160 = vrot.slane %v3159, 4
        %v3162 = vshll.u32 %v2958, 16
        %v3164 = vrot.slane %v3162, 5
        %v3165 = vsel %vm1458, %v3160, %v3164
        %v3166 = vshrl.u32 %v2958, 16
        %v3168 = vrot.slane %v3166, 4
        %v3169 = vor.u32 %v3168, %v3164
        %v3170 = vrot.slane %v3169, 4
        %v3172 = vshll.u32 %v2959, 16
        %v3174 = vrot.slane %v3172, 5
        %v3175 = vsel %vm1458, %v3170, %v3174
        %v3177 = vshrl.u32 %v2960, 16
        %v3179 = vrot.slane %v3177, 4
        %v3180 = vshll.u32 %v2960, 16
        %v3182 = vrot.slane %v3180, 5
        %v3183 = vor.u32 %v3179, %v3182
        %v3184 = vrot.slane %v3183, 4
        %v3186 = vshll.u32 %v2961, 16
        %v3188 = vrot.slane %v3186, 5
        %v3189 = vsel %vm1458, %v3184, %v3188
        %v3190 = vshrl.u32 %v2961, 16
        %v3192 = vrot.slane %v3190, 4
        %v3193 = vor.u32 %v3192, %v3188
        %v3194 = vrot.slane %v3193, 4
        %v3196 = vshll.u32 %v2962, 16
        %v3198 = vrot.slane %v3196, 5
        %v3199 = vsel %vm1458, %v3194, %v3198
        %v3201 = vshrl.u32 %v2963, 16
        %v3203 = vrot.slane %v3201, 4
        %v3204 = vshll.u32 %v2963, 16
        %v3206 = vrot.slane %v3204, 5
        %v3207 = vor.u32 %v3203, %v3206
        %v3208 = vrot.slane %v3207, 4
        %v3210 = vshll.u32 %v2964, 16
        %v3212 = vrot.slane %v3210, 5
        %v3213 = vsel %vm1458, %v3208, %v3212
        %v3214 = vshrl.u32 %v2964, 16
        %v3216 = vrot.slane %v3214, 4
        %v3217 = vor.u32 %v3216, %v3212
        %v3218 = vrot.slane %v3217, 4
        %v3220 = vshll.u32 %v2965, 16
        %v3222 = vrot.slane %v3220, 5
        %v3223 = vsel %vm1458, %v3218, %v3222
        %v3225 = vshrl.u32 %v2966, 16
        %v3227 = vrot.slane %v3225, 4
        %v3228 = vshll.u32 %v2966, 16
        %v3230 = vrot.slane %v3228, 5
        %v3231 = vor.u32 %v3227, %v3230
        %v3232 = vrot.slane %v3231, 4
        %v3234 = vshll.u32 %v2967, 16
        %v3236 = vrot.slane %v3234, 5
        %v3237 = vsel %vm1458, %v3232, %v3236
        %v3238 = vshrl.u32 %v2967, 16
        %v3240 = vrot.slane %v3238, 4
        %v3241 = vor.u32 %v3240, %v3236
        %v3242 = vrot.slane %v3241, 4
        %v3244 = vshll.u32 %v2968, 16
        %v3246 = vrot.slane %v3244, 5
        %v3247 = vsel %vm1458, %v3242, %v3246
        %v3249 = vshrl.u32 %v2969, 16
        %v3251 = vrot.slane %v3249, 4
        %v3252 = vshll.u32 %v2969, 16
        %v3254 = vrot.slane %v3252, 5
        %v3255 = vor.u32 %v3251, %v3254
        %v3256 = vrot.slane %v3255, 4
        %v3258 = vshll.u32 %v2970, 16
        %v3260 = vrot.slane %v3258, 5
        %v3261 = vsel %vm1458, %v3256, %v3260
        %v3262 = vshrl.u32 %v2970, 16
        %v3264 = vrot.slane %v3262, 4
        %v3265 = vor.u32 %v3264, %v3260
        %v3266 = vrot.slane %v3265, 4
        %v3268 = vshll.u32 %v2971, 16
        %v3270 = vrot.slane %v3268, 5
        %v3271 = vsel %vm1458, %v3266, %v3270
        %v3273 = vshrl.u32 %v2972, 16
        %v3275 = vrot.slane %v3273, 4
        %v3276 = vshll.u32 %v2972, 16
        %v3278 = vrot.slane %v3276, 5
        %v3279 = vor.u32 %v3275, %v3278
        %v3280 = vrot.slane %v3279, 4
        %v3282 = vshll.u32 %v2973, 16
        %v3284 = vrot.slane %v3282, 5
        %v3285 = vsel %vm1458, %v3280, %v3284
        %v3286 = vshrl.u32 %v2973, 16
        %v3288 = vrot.slane %v3286, 4
        %v3289 = vor.u32 %v3288, %v3284
        %v3290 = vrot.slane %v3289, 4
        %v3292 = vshll.u32 %v2974, 16
        %v3294 = vrot.slane %v3292, 5
        %v3295 = vsel %vm1458, %v3290, %v3294
        %v3297 = vshrl.u32 %v2975, 16
        %v3299 = vrot.slane %v3297, 4
        %v3300 = vshll.u32 %v2975, 16
        %v3302 = vrot.slane %v3300, 5
        %v3303 = vor.u32 %v3299, %v3302
        %v3304 = vrot.slane %v3303, 4
        %v3306 = vshll.u32 %v2976, 16
        %v3308 = vrot.slane %v3306, 5
        %v3309 = vsel %vm1458, %v3304, %v3308
        %v3310 = vshrl.u32 %v2976, 16
        %v3312 = vrot.slane %v3310, 4
        %v3313 = vor.u32 %v3312, %v3308
        %v3314 = vrot.slane %v3313, 4
        %v3316 = vshll.u32 %v2977, 16
        %v3318 = vrot.slane %v3316, 5
        %v3319 = vsel %vm1458, %v3314, %v3318
        %v3321 = vshrl.u32 %v2978, 16
        %v3323 = vrot.slane %v3321, 4
        %v3324 = vshll.u32 %v2978, 16
        %v3326 = vrot.slane %v3324, 5
        %v3327 = vor.u32 %v3323, %v3326
        %v3328 = vrot.slane %v3327, 4
        %v3330 = vshll.u32 %v2979, 16
        %v3332 = vrot.slane %v3330, 5
        %v3333 = vsel %vm1458, %v3328, %v3332
        %v3334 = vshrl.u32 %v2979, 16
        %v3336 = vrot.slane %v3334, 4
        %v3337 = vor.u32 %v3336, %v3332
        %v3338 = vrot.slane %v3337, 4
        %v3340 = vshll.u32 %v2980, 16
        %v3342 = vrot.slane %v3340, 5
        %v3343 = vsel %vm1458, %v3338, %v3342
        %v3345 = vshrl.u32 %v2981, 16
        %v3347 = vrot.slane %v3345, 4
        %v3348 = vshll.u32 %v2981, 16
        %v3350 = vrot.slane %v3348, 5
        %v3351 = vor.u32 %v3347, %v3350
        %v3352 = vrot.slane %v3351, 4
        %v3354 = vshll.u32 %v2982, 16
        %v3356 = vrot.slane %v3354, 5
        %v3357 = vsel %vm1458, %v3352, %v3356
        %v3358 = vshrl.u32 %v2982, 16
        %v3360 = vrot.slane %v3358, 4
        %v3361 = vor.u32 %v3360, %v3356
        %v3362 = vrot.slane %v3361, 4
        %v3364 = vshll.u32 %v2983, 16
        %v3366 = vrot.slane %v3364, 5
        %v3367 = vsel %vm1458, %v3362, %v3366
        %v3368 = vld [vmem:[%s832] sm:$0xe]
        %v3369 = vld [vmem:[%s832 + $0xc] sm:$0xe]
        %v3370 = vld [vmem:[%s832 + $0x18] sm:$0xe]
        %v3371 = vld [vmem:[%s832 + $0x24] sm:$0xe]
        %v3372 = vld [vmem:[%s832 + $0x30] sm:$0xe]
        %v3373 = vld [vmem:[%s832 + $0x3c] sm:$0xe]
        %v3374 = vld [vmem:[%s832 + $0x48] sm:$0xe]
        %v3375 = vld [vmem:[%s832 + $0x54] sm:$0xe]
        %v3376 = vld [vmem:[%s832 + $0x60] sm:$0xe]
        %v3377 = vld [vmem:[%s832 + $0x6c] sm:$0xe]
        %v3378 = vld [vmem:[%s832 + $0x78] sm:$0xe]
        %v3379 = vld [vmem:[%s832 + $0x84] sm:$0xe]
        %v3380 = vld [vmem:[%s832 + $0x90] sm:$0xe]
        %v3381 = vld [vmem:[%s832 + $0x9c] sm:$0xe]
        %v3382 = vld [vmem:[%s832 + $0xa8] sm:$0xe]
        %v3383 = vld [vmem:[%s832 + $0xb4] sm:$0xe]
        %v3432 = vrot.slane %v3368, 5
        %v3433 = vrot.slane %v3432, 4
        %v3434 = vrot.slane %v2937, 5
        %v3435 = vsel %vm2085, %v3433, %v3434
        %v3436 = vrot.slane %v3434, 4
        %v3437 = vrot.slane %v2938, 5
        %v3438 = vsel %vm2085, %v3436, %v3437
        %v3439 = vrot.slane %v3369, 5
        %v3440 = vrot.slane %v3439, 4
        %v3441 = vrot.slane %v2940, 5
        %v3442 = vsel %vm2085, %v3440, %v3441
        %v3443 = vrot.slane %v3441, 4
        %v3444 = vrot.slane %v2941, 5
        %v3445 = vsel %vm2085, %v3443, %v3444
        %v3446 = vrot.slane %v3370, 5
        %v3447 = vrot.slane %v3446, 4
        %v3448 = vrot.slane %v2943, 5
        %v3449 = vsel %vm2085, %v3447, %v3448
        %v3450 = vrot.slane %v3448, 4
        %v3451 = vrot.slane %v2944, 5
        %v3452 = vsel %vm2085, %v3450, %v3451
        %v3453 = vrot.slane %v3371, 5
        %v3454 = vrot.slane %v3453, 4
        %v3455 = vrot.slane %v2946, 5
        %v3456 = vsel %vm2085, %v3454, %v3455
        %v3457 = vrot.slane %v3455, 4
        %v3458 = vrot.slane %v2947, 5
        %v3459 = vsel %vm2085, %v3457, %v3458
        %v3460 = vrot.slane %v3372, 5
        %v3461 = vrot.slane %v3460, 4
        %v3462 = vrot.slane %v2949, 5
        %v3463 = vsel %vm2085, %v3461, %v3462
        %v3464 = vrot.slane %v3462, 4
        %v3465 = vrot.slane %v2950, 5
        %v3466 = vsel %vm2085, %v3464, %v3465
        %v3467 = vrot.slane %v3373, 5
        %v3468 = vrot.slane %v3467, 4
        %v3469 = vrot.slane %v2952, 5
        %v3470 = vsel %vm2085, %v3468, %v3469
        %v3471 = vrot.slane %v3469, 4
        %v3472 = vrot.slane %v2953, 5
        %v3473 = vsel %vm2085, %v3471, %v3472
        %v3474 = vrot.slane %v3374, 5
        %v3475 = vrot.slane %v3474, 4
        %v3476 = vrot.slane %v2955, 5
        %v3477 = vsel %vm2085, %v3475, %v3476
        %v3478 = vrot.slane %v3476, 4
        %v3479 = vrot.slane %v2956, 5
        %v3480 = vsel %vm2085, %v3478, %v3479
        %v3481 = vrot.slane %v3375, 5
        %v3482 = vrot.slane %v3481, 4
        %v3483 = vrot.slane %v2958, 5
        %v3484 = vsel %vm2085, %v3482, %v3483
        %v3485 = vrot.slane %v3483, 4
        %v3486 = vrot.slane %v2959, 5
        %v3487 = vsel %vm2085, %v3485, %v3486
        %v3488 = vrot.slane %v3376, 5
        %v3489 = vrot.slane %v3488, 4
        %v3490 = vrot.slane %v2961, 5
        %v3491 = vsel %vm2085, %v3489, %v3490
        %v3492 = vrot.slane %v3490, 4
        %v3493 = vrot.slane %v2962, 5
        %v3494 = vsel %vm2085, %v3492, %v3493
        %v3495 = vrot.slane %v3377, 5
        %v3496 = vrot.slane %v3495, 4
        %v3497 = vrot.slane %v2964, 5
        %v3498 = vsel %vm2085, %v3496, %v3497
        %v3499 = vrot.slane %v3497, 4
        %v3500 = vrot.slane %v2965, 5
        %v3501 = vsel %vm2085, %v3499, %v3500
        %v3502 = vrot.slane %v3378, 5
        %v3503 = vrot.slane %v3502, 4
        %v3504 = vrot.slane %v2967, 5
        %v3505 = vsel %vm2085, %v3503, %v3504
        %v3506 = vrot.slane %v3504, 4
        %v3507 = vrot.slane %v2968, 5
        %v3508 = vsel %vm2085, %v3506, %v3507
        %v3509 = vrot.slane %v3379, 5
        %v3510 = vrot.slane %v3509, 4
        %v3511 = vrot.slane %v2970, 5
        %v3512 = vsel %vm2085, %v3510, %v3511
        %v3513 = vrot.slane %v3511, 4
        %v3514 = vrot.slane %v2971, 5
        %v3515 = vsel %vm2085, %v3513, %v3514
        %v3516 = vrot.slane %v3380, 5
        %v3517 = vrot.slane %v3516, 4
        %v3518 = vrot.slane %v2973, 5
        %v3519 = vsel %vm2085, %v3517, %v3518
        %v3520 = vrot.slane %v3518, 4
        %v3521 = vrot.slane %v2974, 5
        %v3522 = vsel %vm2085, %v3520, %v3521
        %v3523 = vrot.slane %v3381, 5
        %v3524 = vrot.slane %v3523, 4
        %v3525 = vrot.slane %v2976, 5
        %v3526 = vsel %vm2085, %v3524, %v3525
        %v3527 = vrot.slane %v3525, 4
        %v3528 = vrot.slane %v2977, 5
        %v3529 = vsel %vm2085, %v3527, %v3528
        %v3530 = vrot.slane %v3382, 5
        %v3531 = vrot.slane %v3530, 4
        %v3532 = vrot.slane %v2979, 5
        %v3533 = vsel %vm2085, %v3531, %v3532
        %v3534 = vrot.slane %v3532, 4
        %v3535 = vrot.slane %v2980, 5
        %v3536 = vsel %vm2085, %v3534, %v3535
        %v3537 = vrot.slane %v3383, 5
        %v3538 = vrot.slane %v3537, 4
        %v3539 = vrot.slane %v2982, 5
        %v3540 = vsel %vm2085, %v3538, %v3539
        %v3541 = vrot.slane %v3539, 4
        %v3542 = vrot.slane %v2983, 5
        %v3543 = vsel %vm2085, %v3541, %v3542
        %v3544 = vunpack.c.l.b16 %v2997
        %v3545 = vunpack.c.l.b16 %v3007
        %v3546 = vunpack.c.l.b16 %v3021
        %v3547 = vunpack.c.l.b16 %v3031
        %v3548 = vunpack.c.l.b16 %v3045
        %v3549 = vunpack.c.l.b16 %v3055
        %v3550 = vunpack.c.l.b16 %v3069
        %v3551 = vunpack.c.l.b16 %v3079
        %v3552 = vunpack.c.l.b16 %v3093
        %v3553 = vunpack.c.l.b16 %v3103
        %v3554 = vunpack.c.l.b16 %v3117
        %v3555 = vunpack.c.l.b16 %v3127
        %v3556 = vunpack.c.l.b16 %v3141
        %v3557 = vunpack.c.l.b16 %v3151
        %v3558 = vunpack.c.l.b16 %v3165
        %v3559 = vunpack.c.l.b16 %v3175
        %v3560 = vunpack.c.l.b16 %v3189
        %v3561 = vunpack.c.l.b16 %v3199
        %v3562 = vunpack.c.l.b16 %v3213
        %v3563 = vunpack.c.l.b16 %v3223
        %v3564 = vunpack.c.l.b16 %v3237
        %v3565 = vunpack.c.l.b16 %v3247
        %v3566 = vunpack.c.l.b16 %v3261
        %v3567 = vunpack.c.l.b16 %v3271
        %v3568 = vunpack.c.l.b16 %v3285
        %v3569 = vunpack.c.l.b16 %v3295
        %v3570 = vunpack.c.l.b16 %v3309
        %v3571 = vunpack.c.l.b16 %v3319
        %v3572 = vunpack.c.l.b16 %v3333
        %v3573 = vunpack.c.l.b16 %v3343
        %v3574 = vunpack.c.l.b16 %v3357
        %v3575 = vunpack.c.l.b16 %v3367
        %v3576 = vpack.c.b16 %v3545, %v3544
        %v3577 = vpack.c.b16 %v3547, %v3546
        %v3578 = vpack.c.b16 %v3549, %v3548
        %v3579 = vpack.c.b16 %v3551, %v3550
        %v3580 = vpack.c.b16 %v3553, %v3552
        %v3581 = vpack.c.b16 %v3555, %v3554
        %v3582 = vpack.c.b16 %v3557, %v3556
        %v3583 = vpack.c.b16 %v3559, %v3558
        %v3584 = vpack.c.b16 %v3561, %v3560
        %v3585 = vpack.c.b16 %v3563, %v3562
        %v3586 = vpack.c.b16 %v3565, %v3564
        %v3587 = vpack.c.b16 %v3567, %v3566
        %v3588 = vpack.c.b16 %v3569, %v3568
        %v3589 = vpack.c.b16 %v3571, %v3570
        %v3590 = vpack.c.b16 %v3573, %v3572
        %v3591 = vpack.c.b16 %v3575, %v3574
        %v3608 = vunpack.c.l.b16 %v3435
        %v3609 = vunpack.c.l.b16 %v3438
        %v3610 = vunpack.c.l.b16 %v3442
        %v3611 = vunpack.c.l.b16 %v3445
        %v3612 = vunpack.c.l.b16 %v3449
        %v3613 = vunpack.c.l.b16 %v3452
        %v3614 = vunpack.c.l.b16 %v3456
        %v3615 = vunpack.c.l.b16 %v3459
        %v3616 = vunpack.c.l.b16 %v3463
        %v3617 = vunpack.c.l.b16 %v3466
        %v3618 = vunpack.c.l.b16 %v3470
        %v3619 = vunpack.c.l.b16 %v3473
        %v3620 = vunpack.c.l.b16 %v3477
        %v3621 = vunpack.c.l.b16 %v3480
        %v3622 = vunpack.c.l.b16 %v3484
        %v3623 = vunpack.c.l.b16 %v3487
        %v3624 = vunpack.c.l.b16 %v3491
        %v3625 = vunpack.c.l.b16 %v3494
        %v3626 = vunpack.c.l.b16 %v3498
        %v3627 = vunpack.c.l.b16 %v3501
        %v3628 = vunpack.c.l.b16 %v3505
        %v3629 = vunpack.c.l.b16 %v3508
        %v3630 = vunpack.c.l.b16 %v3512
        %v3631 = vunpack.c.l.b16 %v3515
        %v3632 = vunpack.c.l.b16 %v3519
        %v3633 = vunpack.c.l.b16 %v3522
        %v3634 = vunpack.c.l.b16 %v3526
        %v3635 = vunpack.c.l.b16 %v3529
        %v3636 = vunpack.c.l.b16 %v3533
        %v3637 = vunpack.c.l.b16 %v3536
        %v3638 = vunpack.c.l.b16 %v3540
        %v3639 = vunpack.c.l.b16 %v3543
        %v3640 = vpack.c.b16 %v3609, %v3608
        %v3641 = vpack.c.b16 %v3611, %v3610
        %v3642 = vpack.c.b16 %v3613, %v3612
        %v3643 = vpack.c.b16 %v3615, %v3614
        %v3644 = vpack.c.b16 %v3617, %v3616
        %v3645 = vpack.c.b16 %v3619, %v3618
        %v3646 = vpack.c.b16 %v3621, %v3620
        %v3647 = vpack.c.b16 %v3623, %v3622
        %v3648 = vpack.c.b16 %v3625, %v3624
        %v3649 = vpack.c.b16 %v3627, %v3626
        %v3650 = vpack.c.b16 %v3629, %v3628
        %v3651 = vpack.c.b16 %v3631, %v3630
        %v3652 = vpack.c.b16 %v3633, %v3632
        %v3653 = vpack.c.b16 %v3635, %v3634
        %v3654 = vpack.c.b16 %v3637, %v3636
        %v3655 = vpack.c.b16 %v3639, %v3638
        %v3672 = vld [vmem:[#allocation6 + $0x100] sm:$0xf]
        %v3673 = vld [vmem:[#allocation6 + $0x104] sm:$0xf]
        %v3674 = vld [vmem:[#allocation6 + $0x108] sm:$0xf]
        %v3675 = vld [vmem:[#allocation6 + $0x10c] sm:$0xf]
        %v3676 = vld [vmem:[#allocation6 + $0x110] sm:$0xf]
        %v3677 = vld [vmem:[#allocation6 + $0x114] sm:$0xf]
        %v3678 = vld [vmem:[#allocation6 + $0x118] sm:$0xf]
        %v3679 = vld [vmem:[#allocation6 + $0x11c] sm:$0xf]
        %v3680 = vld [vmem:[#allocation6 + $0x120] sm:$0xf]
        %v3681 = vld [vmem:[#allocation6 + $0x124] sm:$0xf]
        %v3682 = vld [vmem:[#allocation6 + $0x128] sm:$0xf]
        %v3683 = vld [vmem:[#allocation6 + $0x12c] sm:$0xf]
        %v3684 = vld [vmem:[#allocation6 + $0x130] sm:$0xf]
        %v3685 = vld [vmem:[#allocation6 + $0x134] sm:$0xf]
        %v3686 = vld [vmem:[#allocation6 + $0x138] sm:$0xf]
        %v3687 = vld [vmem:[#allocation6 + $0x13c] sm:$0xf]
        %v3688 = vld [vmem:[#allocation6 + $0x140] sm:$0xf]
        %v3689 = vld [vmem:[#allocation6 + $0x144] sm:$0xf]
        %v3690 = vld [vmem:[#allocation6 + $0x148] sm:$0xf]
        %v3691 = vld [vmem:[#allocation6 + $0x14c] sm:$0xf]
        %v3692 = vld [vmem:[#allocation6 + $0x150] sm:$0xf]
        %v3693 = vld [vmem:[#allocation6 + $0x154] sm:$0xf]
        %v3694 = vld [vmem:[#allocation6 + $0x158] sm:$0xf]
        %v3695 = vld [vmem:[#allocation6 + $0x15c] sm:$0xf]
        %v3696 = vld [vmem:[#allocation6 + $0x160] sm:$0xf]
        %v3697 = vld [vmem:[#allocation6 + $0x164] sm:$0xf]
        %v3698 = vld [vmem:[#allocation6 + $0x168] sm:$0xf]
        %v3699 = vld [vmem:[#allocation6 + $0x16c] sm:$0xf]
        %v3700 = vld [vmem:[#allocation6 + $0x170] sm:$0xf]
        %v3701 = vld [vmem:[#allocation6 + $0x174] sm:$0xf]
        %v3702 = vld [vmem:[#allocation6 + $0x178] sm:$0xf]
        %v3703 = vld [vmem:[#allocation6 + $0x17c] sm:$0xf]
        %v3736 = vunpack.c.l.b16 %v3672
        %v3737 = vunpack.c.l.b16 %v3673
        %v3738 = vunpack.c.l.b16 %v3674
        %v3739 = vunpack.c.l.b16 %v3675
        %v3740 = vunpack.c.l.b16 %v3676
        %v3741 = vunpack.c.l.b16 %v3677
        %v3742 = vunpack.c.l.b16 %v3678
        %v3743 = vunpack.c.l.b16 %v3679
        %v3744 = vunpack.c.l.b16 %v3680
        %v3745 = vunpack.c.l.b16 %v3681
        %v3746 = vunpack.c.l.b16 %v3682
        %v3747 = vunpack.c.l.b16 %v3683
        %v3748 = vunpack.c.l.b16 %v3684
        %v3749 = vunpack.c.l.b16 %v3685
        %v3750 = vunpack.c.l.b16 %v3686
        %v3751 = vunpack.c.l.b16 %v3687
        %v3752 = vunpack.c.l.b16 %v3688
        %v3753 = vunpack.c.l.b16 %v3689
        %v3754 = vunpack.c.l.b16 %v3690
        %v3755 = vunpack.c.l.b16 %v3691
        %v3756 = vunpack.c.l.b16 %v3692
        %v3757 = vunpack.c.l.b16 %v3693
        %v3758 = vunpack.c.l.b16 %v3694
        %v3759 = vunpack.c.l.b16 %v3695
        %v3760 = vunpack.c.l.b16 %v3696
        %v3761 = vunpack.c.l.b16 %v3697
        %v3762 = vunpack.c.l.b16 %v3698
        %v3763 = vunpack.c.l.b16 %v3699
        %v3764 = vunpack.c.l.b16 %v3700
        %v3765 = vunpack.c.l.b16 %v3701
        %v3766 = vunpack.c.l.b16 %v3702
        %v3767 = vunpack.c.l.b16 %v3703
        %v3768 = vpack.c.b16 %v3737, %v3736
        %v3769 = vpack.c.b16 %v3739, %v3738
        %v3770 = vpack.c.b16 %v3741, %v3740
        %v3771 = vpack.c.b16 %v3743, %v3742
        %v3772 = vpack.c.b16 %v3745, %v3744
        %v3773 = vpack.c.b16 %v3747, %v3746
        %v3774 = vpack.c.b16 %v3749, %v3748
        %v3775 = vpack.c.b16 %v3751, %v3750
        %v3776 = vpack.c.b16 %v3753, %v3752
        %v3777 = vpack.c.b16 %v3755, %v3754
        %v3778 = vpack.c.b16 %v3757, %v3756
        %v3779 = vpack.c.b16 %v3759, %v3758
        %v3780 = vpack.c.b16 %v3761, %v3760
        %v3781 = vpack.c.b16 %v3763, %v3762
        %v3782 = vpack.c.b16 %v3765, %v3764
        %v3783 = vpack.c.b16 %v3767, %v3766
        %3800 = vmatprep.subr.bf16.mxu0 0
        %3801 = vmatpush1.bf16.msra.mxu0 %v3775
        %3802 = vmatprep.subr.bf16.mxu0 0
        %3803 = vmatpush1.bf16.msra.mxu0 %v3774
        %3804 = vmatprep.subr.bf16.mxu0 0
        %3805 = vmatpush1.bf16.msra.mxu0 %v3773
        %3806 = vmatprep.subr.bf16.mxu0 0
        %3807 = vmatpush1.bf16.msra.mxu0 %v3772
        %3808 = vmatprep.subr.bf16.mxu0 0
        %3809 = vmatpush1.bf16.msra.mxu0 %v3771
        %3810 = vmatprep.subr.bf16.mxu0 0
        %3811 = vmatpush1.bf16.msra.mxu0 %v3770
        %3812 = vmatprep.subr.bf16.mxu0 0
        %3813 = vmatpush1.bf16.msra.mxu0 %v3769
        %3814 = vmatprep.subr.bf16.mxu0 0
        %3815 = vmatpush1.bf16.msra.mxu0 %v3768
        %3816 = vmatprep.subr.bf16.mxu0 0
        %3817 = vmatpush2.bf16.msra.mxu0 %v3783
        %3818 = vmatprep.subr.bf16.mxu0 0
        %3819 = vmatpush2.bf16.msra.mxu0 %v3782
        %3820 = vmatprep.subr.bf16.mxu0 0
        %3821 = vmatpush2.bf16.msra.mxu0 %v3781
        %3822 = vmatprep.subr.bf16.mxu0 0
        %3823 = vmatpush2.bf16.msra.mxu0 %v3780
        %3824 = vmatprep.subr.bf16.mxu0 0
        %3825 = vmatpush2.bf16.msra.mxu0 %v3779
        %3826 = vmatprep.subr.bf16.mxu0 0
        %3827 = vmatpush2.bf16.msra.mxu0 %v3778
        %3828 = vmatprep.subr.bf16.mxu0 0
        %3829 = vmatpush2.bf16.msra.mxu0 %v3777
        %3830 = vmatprep.subr.bf16.mxu0 0
        %3831 = vmatpush2.bf16.msra.mxu0 %v3776
        %3832 = vmatprep.mubr.bf16.mxu0 %v3640
        %3833 = vmatmul.mubr.bf16.gmra.mxu0 %v3576
        %v3834 = vpop.f32.mrf.mxu0
        %v3835 = vadd.f32 0.0, %v3834
        %v3836 = vpop.f32.mrf.mxu0
        %v3837 = vpop.f32.mrf.mxu0
        %v3838 = vadd.f32 0.0, %v3837
        %v3839 = vpop.f32.mrf.mxu0
        %3840 = vmatprep.mubr.bf16.mxu0 %v3641
        %3841 = vmatmul.mubr.bf16.gmra.mxu0 %v3577
        %v3842 = vpop.f32.mrf.mxu0
        %v3843 = vadd.f32 0.0, %v3842
        %v3844 = vpop.f32.mrf.mxu0
        %v3845 = vpop.f32.mrf.mxu0
        %v3846 = vadd.f32 0.0, %v3845
        %v3847 = vpop.f32.mrf.mxu0
        %3848 = vmatprep.mubr.bf16.mxu0 %v3642
        %3849 = vmatmul.mubr.bf16.gmra.mxu0 %v3578
        %v3850 = vpop.f32.mrf.mxu0
        %v3851 = vadd.f32 0.0, %v3850
        %v3852 = vpop.f32.mrf.mxu0
        %v3853 = vpop.f32.mrf.mxu0
        %v3854 = vadd.f32 0.0, %v3853
        %v3855 = vpop.f32.mrf.mxu0
        %3856 = vmatprep.mubr.bf16.mxu0 %v3643
        %3857 = vmatmul.mubr.bf16.gmra.mxu0 %v3579
        %v3858 = vpop.f32.mrf.mxu0
        %v3859 = vadd.f32 0.0, %v3858
        %v3860 = vpop.f32.mrf.mxu0
        %v3861 = vpop.f32.mrf.mxu0
        %v3862 = vadd.f32 0.0, %v3861
        %v3863 = vpop.f32.mrf.mxu0
        %3864 = vmatprep.mubr.bf16.mxu0 %v3644
        %3865 = vmatmul.mubr.bf16.gmra.mxu0 %v3580
        %v3866 = vpop.f32.mrf.mxu0
        %v3867 = vadd.f32 0.0, %v3866
        %v3868 = vpop.f32.mrf.mxu0
        %v3869 = vpop.f32.mrf.mxu0
        %v3870 = vadd.f32 0.0, %v3869
        %v3871 = vpop.f32.mrf.mxu0
        %3872 = vmatprep.mubr.bf16.mxu0 %v3645
        %3873 = vmatmul.mubr.bf16.gmra.mxu0 %v3581
        %v3874 = vpop.f32.mrf.mxu0
        %v3875 = vadd.f32 0.0, %v3874
        %v3876 = vpop.f32.mrf.mxu0
        %v3877 = vpop.f32.mrf.mxu0
        %v3878 = vadd.f32 0.0, %v3877
        %v3879 = vpop.f32.mrf.mxu0
        %3880 = vmatprep.mubr.bf16.mxu0 %v3646
        %3881 = vmatmul.mubr.bf16.gmra.mxu0 %v3582
        %v3882 = vpop.f32.mrf.mxu0
        %v3883 = vadd.f32 0.0, %v3882
        %v3884 = vpop.f32.mrf.mxu0
        %v3885 = vpop.f32.mrf.mxu0
        %v3886 = vadd.f32 0.0, %v3885
        %v3887 = vpop.f32.mrf.mxu0
        %3888 = vmatprep.mubr.bf16.mxu0 %v3647
        %3889 = vmatmul.mubr.bf16.gmra.mxu0 %v3583
        %v3890 = vpop.f32.mrf.mxu0
        %v3891 = vadd.f32 0.0, %v3890
        %v3892 = vpop.f32.mrf.mxu0
        %v3893 = vpop.f32.mrf.mxu0
        %v3894 = vadd.f32 0.0, %v3893
        %v3895 = vpop.f32.mrf.mxu0
        %3896 = vmatprep.mubr.bf16.mxu0 %v3648
        %3897 = vmatmul.mubr.bf16.gmra.mxu0 %v3584
        %v3898 = vpop.f32.mrf.mxu0
        %v3899 = vadd.f32 0.0, %v3898
        %v3900 = vpop.f32.mrf.mxu0
        %v3901 = vpop.f32.mrf.mxu0
        %v3902 = vadd.f32 0.0, %v3901
        %v3903 = vpop.f32.mrf.mxu0
        %3904 = vmatprep.mubr.bf16.mxu0 %v3649
        %3905 = vmatmul.mubr.bf16.gmra.mxu0 %v3585
        %v3906 = vpop.f32.mrf.mxu0
        %v3907 = vadd.f32 0.0, %v3906
        %v3908 = vpop.f32.mrf.mxu0
        %v3909 = vpop.f32.mrf.mxu0
        %v3910 = vadd.f32 0.0, %v3909
        %v3911 = vpop.f32.mrf.mxu0
        %3912 = vmatprep.mubr.bf16.mxu0 %v3650
        %3913 = vmatmul.mubr.bf16.gmra.mxu0 %v3586
        %v3914 = vpop.f32.mrf.mxu0
        %v3915 = vadd.f32 0.0, %v3914
        %v3916 = vpop.f32.mrf.mxu0
        %v3917 = vpop.f32.mrf.mxu0
        %v3918 = vadd.f32 0.0, %v3917
        %v3919 = vpop.f32.mrf.mxu0
        %3920 = vmatprep.mubr.bf16.mxu0 %v3651
        %3921 = vmatmul.mubr.bf16.gmra.mxu0 %v3587
        %v3922 = vpop.f32.mrf.mxu0
        %v3923 = vadd.f32 0.0, %v3922
        %v3924 = vpop.f32.mrf.mxu0
        %v3925 = vpop.f32.mrf.mxu0
        %v3926 = vadd.f32 0.0, %v3925
        %v3927 = vpop.f32.mrf.mxu0
        %3928 = vmatprep.mubr.bf16.mxu0 %v3652
        %3929 = vmatmul.mubr.bf16.gmra.mxu0 %v3588
        %v3930 = vpop.f32.mrf.mxu0
        %v3931 = vadd.f32 0.0, %v3930
        %v3932 = vpop.f32.mrf.mxu0
        %v3933 = vpop.f32.mrf.mxu0
        %v3934 = vadd.f32 0.0, %v3933
        %v3935 = vpop.f32.mrf.mxu0
        %3936 = vmatprep.mubr.bf16.mxu0 %v3653
        %3937 = vmatmul.mubr.bf16.gmra.mxu0 %v3589
        %v3938 = vpop.f32.mrf.mxu0
        %v3939 = vadd.f32 0.0, %v3938
        %v3940 = vpop.f32.mrf.mxu0
        %v3941 = vpop.f32.mrf.mxu0
        %v3942 = vadd.f32 0.0, %v3941
        %v3943 = vpop.f32.mrf.mxu0
        %3944 = vmatprep.mubr.bf16.mxu0 %v3654
        %3945 = vmatmul.mubr.bf16.gmra.mxu0 %v3590
        %v3946 = vpop.f32.mrf.mxu0
        %v3947 = vadd.f32 0.0, %v3946
        %v3948 = vpop.f32.mrf.mxu0
        %v3949 = vpop.f32.mrf.mxu0
        %v3950 = vadd.f32 0.0, %v3949
        %v3951 = vpop.f32.mrf.mxu0
        %3952 = vmatprep.mubr.bf16.mxu0 %v3655
        %3953 = vmatmul.mubr.bf16.gmra.mxu0 %v3591
        %v3954 = vpop.f32.mrf.mxu0
        %v3955 = vadd.f32 0.0, %v3954
        %v3956 = vpop.f32.mrf.mxu0
        %v3957 = vpop.f32.mrf.mxu0
        %v3958 = vadd.f32 0.0, %v3957
        %v3959 = vpop.f32.mrf.mxu0
        %3960 = vdwg.mxu0
        %v3961 = vadd.f32 %v2810, %v3835
        %v3962 = vadd.f32 %v2813, %v3838
        %v3963 = vadd.f32 %v2818, %v3843
        %v3964 = vadd.f32 %v2821, %v3846
        %v3965 = vadd.f32 %v2826, %v3851
        %v3966 = vadd.f32 %v2829, %v3854
        %v3967 = vadd.f32 %v2834, %v3859
        %v3968 = vadd.f32 %v2837, %v3862
        %v3969 = vadd.f32 %v2842, %v3867
        %v3970 = vadd.f32 %v2845, %v3870
        %v3971 = vadd.f32 %v2850, %v3875
        %v3972 = vadd.f32 %v2853, %v3878
        %v3973 = vadd.f32 %v2858, %v3883
        %v3974 = vadd.f32 %v2861, %v3886
        %v3975 = vadd.f32 %v2866, %v3891
        %v3976 = vadd.f32 %v2869, %v3894
        %v3977 = vadd.f32 %v2874, %v3899
        %v3978 = vadd.f32 %v2877, %v3902
        %v3979 = vadd.f32 %v2882, %v3907
        %v3980 = vadd.f32 %v2885, %v3910
        %v3981 = vadd.f32 %v2890, %v3915
        %v3982 = vadd.f32 %v2893, %v3918
        %v3983 = vadd.f32 %v2898, %v3923
        %v3984 = vadd.f32 %v2901, %v3926
        %v3985 = vadd.f32 %v2906, %v3931
        %v3986 = vadd.f32 %v2909, %v3934
        %v3987 = vadd.f32 %v2914, %v3939
        %v3988 = vadd.f32 %v2917, %v3942
        %v3989 = vadd.f32 %v2922, %v3947
        %v3990 = vadd.f32 %v2925, %v3950
        %v3991 = vadd.f32 %v2930, %v3955
        %v3992 = vadd.f32 %v2933, %v3958
        %s3993 = scalar_lea.vmem [#allocation2], 24
        %v3994 = vld [vmem:[%s3993] sm:$0xf]
        %v3995 = vld [vmem:[%s3993 + $0x4] sm:$0xf]
        %v3996 = vld [vmem:[%s3993 + $0xc] sm:$0xf]
        %v3997 = vld [vmem:[%s3993 + $0x10] sm:$0xf]
        %v3998 = vld [vmem:[%s3993 + $0x18] sm:$0xf]
        %v3999 = vld [vmem:[%s3993 + $0x1c] sm:$0xf]
        %v4000 = vld [vmem:[%s3993 + $0x24] sm:$0xf]
        %v4001 = vld [vmem:[%s3993 + $0x28] sm:$0xf]
        %v4002 = vld [vmem:[%s3993 + $0x30] sm:$0xf]
        %v4003 = vld [vmem:[%s3993 + $0x34] sm:$0xf]
        %v4004 = vld [vmem:[%s3993 + $0x3c] sm:$0xf]
        %v4005 = vld [vmem:[%s3993 + $0x40] sm:$0xf]
        %v4006 = vld [vmem:[%s3993 + $0x48] sm:$0xf]
        %v4007 = vld [vmem:[%s3993 + $0x4c] sm:$0xf]
        %v4008 = vld [vmem:[%s3993 + $0x54] sm:$0xf]
        %v4009 = vld [vmem:[%s3993 + $0x58] sm:$0xf]
        %v4010 = vld [vmem:[%s3993 + $0x60] sm:$0xf]
        %v4011 = vld [vmem:[%s3993 + $0x64] sm:$0xf]
        %v4012 = vld [vmem:[%s3993 + $0x6c] sm:$0xf]
        %v4013 = vld [vmem:[%s3993 + $0x70] sm:$0xf]
        %v4014 = vld [vmem:[%s3993 + $0x78] sm:$0xf]
        %v4015 = vld [vmem:[%s3993 + $0x7c] sm:$0xf]
        %v4016 = vld [vmem:[%s3993 + $0x84] sm:$0xf]
        %v4017 = vld [vmem:[%s3993 + $0x88] sm:$0xf]
        %v4018 = vld [vmem:[%s3993 + $0x90] sm:$0xf]
        %v4019 = vld [vmem:[%s3993 + $0x94] sm:$0xf]
        %v4020 = vld [vmem:[%s3993 + $0x9c] sm:$0xf]
        %v4021 = vld [vmem:[%s3993 + $0xa0] sm:$0xf]
        %v4022 = vld [vmem:[%s3993 + $0xa8] sm:$0xf]
        %v4023 = vld [vmem:[%s3993 + $0xac] sm:$0xf]
        %v4024 = vld [vmem:[%s3993 + $0xb4] sm:$0xf]
        %v4025 = vld [vmem:[%s3993 + $0xb8] sm:$0xf]
        %v4026 = vld [vmem:[%s3993 + $0x8] sm:$0x1]
        %v4027 = vld [vmem:[%s3993 + $0x14] sm:$0x1]
        %v4028 = vld [vmem:[%s3993 + $0x20] sm:$0x1]
        %v4029 = vld [vmem:[%s3993 + $0x2c] sm:$0x1]
        %v4030 = vld [vmem:[%s3993 + $0x38] sm:$0x1]
        %v4031 = vld [vmem:[%s3993 + $0x44] sm:$0x1]
        %v4032 = vld [vmem:[%s3993 + $0x50] sm:$0x1]
        %v4033 = vld [vmem:[%s3993 + $0x5c] sm:$0x1]
        %v4034 = vld [vmem:[%s3993 + $0x68] sm:$0x1]
        %v4035 = vld [vmem:[%s3993 + $0x74] sm:$0x1]
        %v4036 = vld [vmem:[%s3993 + $0x80] sm:$0x1]
        %v4037 = vld [vmem:[%s3993 + $0x8c] sm:$0x1]
        %v4038 = vld [vmem:[%s3993 + $0x98] sm:$0x1]
        %v4039 = vld [vmem:[%s3993 + $0xa4] sm:$0x1]
        %v4040 = vld [vmem:[%s3993 + $0xb0] sm:$0x1]
        %v4041 = vld [vmem:[%s3993 + $0xbc] sm:$0x1]
        %v4043 = vshrl.u32 %v3994, 16
        %v4045 = vrot.slane %v4043, 4
        %v4046 = vshll.u32 %v3994, 16
        %v4048 = vrot.slane %v4046, 5
        %v4049 = vor.u32 %v4045, %v4048
        %v4050 = vrot.slane %v4049, 4
        %v4052 = vshll.u32 %v3995, 16
        %v4054 = vrot.slane %v4052, 5
        %v4055 = vsel %vm1458, %v4050, %v4054
        %v4056 = vshrl.u32 %v3995, 16
        %v4058 = vrot.slane %v4056, 4
        %v4059 = vor.u32 %v4058, %v4054
        %v4060 = vrot.slane %v4059, 4
        %v4062 = vshll.u32 %v4026, 16
        %v4064 = vrot.slane %v4062, 5
        %v4065 = vsel %vm1458, %v4060, %v4064
        %v4067 = vshrl.u32 %v3996, 16
        %v4069 = vrot.slane %v4067, 4
        %v4070 = vshll.u32 %v3996, 16
        %v4072 = vrot.slane %v4070, 5
        %v4073 = vor.u32 %v4069, %v4072
        %v4074 = vrot.slane %v4073, 4
        %v4076 = vshll.u32 %v3997, 16
        %v4078 = vrot.slane %v4076, 5
        %v4079 = vsel %vm1458, %v4074, %v4078
        %v4080 = vshrl.u32 %v3997, 16
        %v4082 = vrot.slane %v4080, 4
        %v4083 = vor.u32 %v4082, %v4078
        %v4084 = vrot.slane %v4083, 4
        %v4086 = vshll.u32 %v4027, 16
        %v4088 = vrot.slane %v4086, 5
        %v4089 = vsel %vm1458, %v4084, %v4088
        %v4091 = vshrl.u32 %v3998, 16
        %v4093 = vrot.slane %v4091, 4
        %v4094 = vshll.u32 %v3998, 16
        %v4096 = vrot.slane %v4094, 5
        %v4097 = vor.u32 %v4093, %v4096
        %v4098 = vrot.slane %v4097, 4
        %v4100 = vshll.u32 %v3999, 16
        %v4102 = vrot.slane %v4100, 5
        %v4103 = vsel %vm1458, %v4098, %v4102
        %v4104 = vshrl.u32 %v3999, 16
        %v4106 = vrot.slane %v4104, 4
        %v4107 = vor.u32 %v4106, %v4102
        %v4108 = vrot.slane %v4107, 4
        %v4110 = vshll.u32 %v4028, 16
        %v4112 = vrot.slane %v4110, 5
        %v4113 = vsel %vm1458, %v4108, %v4112
        %v4115 = vshrl.u32 %v4000, 16
        %v4117 = vrot.slane %v4115, 4
        %v4118 = vshll.u32 %v4000, 16
        %v4120 = vrot.slane %v4118, 5
        %v4121 = vor.u32 %v4117, %v4120
        %v4122 = vrot.slane %v4121, 4
        %v4124 = vshll.u32 %v4001, 16
        %v4126 = vrot.slane %v4124, 5
        %v4127 = vsel %vm1458, %v4122, %v4126
        %v4128 = vshrl.u32 %v4001, 16
        %v4130 = vrot.slane %v4128, 4
        %v4131 = vor.u32 %v4130, %v4126
        %v4132 = vrot.slane %v4131, 4
        %v4134 = vshll.u32 %v4029, 16
        %v4136 = vrot.slane %v4134, 5
        %v4137 = vsel %vm1458, %v4132, %v4136
        %v4139 = vshrl.u32 %v4002, 16
        %v4141 = vrot.slane %v4139, 4
        %v4142 = vshll.u32 %v4002, 16
        %v4144 = vrot.slane %v4142, 5
        %v4145 = vor.u32 %v4141, %v4144
        %v4146 = vrot.slane %v4145, 4
        %v4148 = vshll.u32 %v4003, 16
        %v4150 = vrot.slane %v4148, 5
        %v4151 = vsel %vm1458, %v4146, %v4150
        %v4152 = vshrl.u32 %v4003, 16
        %v4154 = vrot.slane %v4152, 4
        %v4155 = vor.u32 %v4154, %v4150
        %v4156 = vrot.slane %v4155, 4
        %v4158 = vshll.u32 %v4030, 16
        %v4160 = vrot.slane %v4158, 5
        %v4161 = vsel %vm1458, %v4156, %v4160
        %v4163 = vshrl.u32 %v4004, 16
        %v4165 = vrot.slane %v4163, 4
        %v4166 = vshll.u32 %v4004, 16
        %v4168 = vrot.slane %v4166, 5
        %v4169 = vor.u32 %v4165, %v4168
        %v4170 = vrot.slane %v4169, 4
        %v4172 = vshll.u32 %v4005, 16
        %v4174 = vrot.slane %v4172, 5
        %v4175 = vsel %vm1458, %v4170, %v4174
        %v4176 = vshrl.u32 %v4005, 16
        %v4178 = vrot.slane %v4176, 4
        %v4179 = vor.u32 %v4178, %v4174
        %v4180 = vrot.slane %v4179, 4
        %v4182 = vshll.u32 %v4031, 16
        %v4184 = vrot.slane %v4182, 5
        %v4185 = vsel %vm1458, %v4180, %v4184
        %v4187 = vshrl.u32 %v4006, 16
        %v4189 = vrot.slane %v4187, 4
        %v4190 = vshll.u32 %v4006, 16
        %v4192 = vrot.slane %v4190, 5
        %v4193 = vor.u32 %v4189, %v4192
        %v4194 = vrot.slane %v4193, 4
        %v4196 = vshll.u32 %v4007, 16
        %v4198 = vrot.slane %v4196, 5
        %v4199 = vsel %vm1458, %v4194, %v4198
        %v4200 = vshrl.u32 %v4007, 16
        %v4202 = vrot.slane %v4200, 4
        %v4203 = vor.u32 %v4202, %v4198
        %v4204 = vrot.slane %v4203, 4
        %v4206 = vshll.u32 %v4032, 16
        %v4208 = vrot.slane %v4206, 5
        %v4209 = vsel %vm1458, %v4204, %v4208
        %v4211 = vshrl.u32 %v4008, 16
        %v4213 = vrot.slane %v4211, 4
        %v4214 = vshll.u32 %v4008, 16
        %v4216 = vrot.slane %v4214, 5
        %v4217 = vor.u32 %v4213, %v4216
        %v4218 = vrot.slane %v4217, 4
        %v4220 = vshll.u32 %v4009, 16
        %v4222 = vrot.slane %v4220, 5
        %v4223 = vsel %vm1458, %v4218, %v4222
        %v4224 = vshrl.u32 %v4009, 16
        %v4226 = vrot.slane %v4224, 4
        %v4227 = vor.u32 %v4226, %v4222
        %v4228 = vrot.slane %v4227, 4
        %v4230 = vshll.u32 %v4033, 16
        %v4232 = vrot.slane %v4230, 5
        %v4233 = vsel %vm1458, %v4228, %v4232
        %v4235 = vshrl.u32 %v4010, 16
        %v4237 = vrot.slane %v4235, 4
        %v4238 = vshll.u32 %v4010, 16
        %v4240 = vrot.slane %v4238, 5
        %v4241 = vor.u32 %v4237, %v4240
        %v4242 = vrot.slane %v4241, 4
        %v4244 = vshll.u32 %v4011, 16
        %v4246 = vrot.slane %v4244, 5
        %v4247 = vsel %vm1458, %v4242, %v4246
        %v4248 = vshrl.u32 %v4011, 16
        %v4250 = vrot.slane %v4248, 4
        %v4251 = vor.u32 %v4250, %v4246
        %v4252 = vrot.slane %v4251, 4
        %v4254 = vshll.u32 %v4034, 16
        %v4256 = vrot.slane %v4254, 5
        %v4257 = vsel %vm1458, %v4252, %v4256
        %v4259 = vshrl.u32 %v4012, 16
        %v4261 = vrot.slane %v4259, 4
        %v4262 = vshll.u32 %v4012, 16
        %v4264 = vrot.slane %v4262, 5
        %v4265 = vor.u32 %v4261, %v4264
        %v4266 = vrot.slane %v4265, 4
        %v4268 = vshll.u32 %v4013, 16
        %v4270 = vrot.slane %v4268, 5
        %v4271 = vsel %vm1458, %v4266, %v4270
        %v4272 = vshrl.u32 %v4013, 16
        %v4274 = vrot.slane %v4272, 4
        %v4275 = vor.u32 %v4274, %v4270
        %v4276 = vrot.slane %v4275, 4
        %v4278 = vshll.u32 %v4035, 16
        %v4280 = vrot.slane %v4278, 5
        %v4281 = vsel %vm1458, %v4276, %v4280
        %v4283 = vshrl.u32 %v4014, 16
        %v4285 = vrot.slane %v4283, 4
        %v4286 = vshll.u32 %v4014, 16
        %v4288 = vrot.slane %v4286, 5
        %v4289 = vor.u32 %v4285, %v4288
        %v4290 = vrot.slane %v4289, 4
        %v4292 = vshll.u32 %v4015, 16
        %v4294 = vrot.slane %v4292, 5
        %v4295 = vsel %vm1458, %v4290, %v4294
        %v4296 = vshrl.u32 %v4015, 16
        %v4298 = vrot.slane %v4296, 4
        %v4299 = vor.u32 %v4298, %v4294
        %v4300 = vrot.slane %v4299, 4
        %v4302 = vshll.u32 %v4036, 16
        %v4304 = vrot.slane %v4302, 5
        %v4305 = vsel %vm1458, %v4300, %v4304
        %v4307 = vshrl.u32 %v4016, 16
        %v4309 = vrot.slane %v4307, 4
        %v4310 = vshll.u32 %v4016, 16
        %v4312 = vrot.slane %v4310, 5
        %v4313 = vor.u32 %v4309, %v4312
        %v4314 = vrot.slane %v4313, 4
        %v4316 = vshll.u32 %v4017, 16
        %v4318 = vrot.slane %v4316, 5
        %v4319 = vsel %vm1458, %v4314, %v4318
        %v4320 = vshrl.u32 %v4017, 16
        %v4322 = vrot.slane %v4320, 4
        %v4323 = vor.u32 %v4322, %v4318
        %v4324 = vrot.slane %v4323, 4
        %v4326 = vshll.u32 %v4037, 16
        %v4328 = vrot.slane %v4326, 5
        %v4329 = vsel %vm1458, %v4324, %v4328
        %v4331 = vshrl.u32 %v4018, 16
        %v4333 = vrot.slane %v4331, 4
        %v4334 = vshll.u32 %v4018, 16
        %v4336 = vrot.slane %v4334, 5
        %v4337 = vor.u32 %v4333, %v4336
        %v4338 = vrot.slane %v4337, 4
        %v4340 = vshll.u32 %v4019, 16
        %v4342 = vrot.slane %v4340, 5
        %v4343 = vsel %vm1458, %v4338, %v4342
        %v4344 = vshrl.u32 %v4019, 16
        %v4346 = vrot.slane %v4344, 4
        %v4347 = vor.u32 %v4346, %v4342
        %v4348 = vrot.slane %v4347, 4
        %v4350 = vshll.u32 %v4038, 16
        %v4352 = vrot.slane %v4350, 5
        %v4353 = vsel %vm1458, %v4348, %v4352
        %v4355 = vshrl.u32 %v4020, 16
        %v4357 = vrot.slane %v4355, 4
        %v4358 = vshll.u32 %v4020, 16
        %v4360 = vrot.slane %v4358, 5
        %v4361 = vor.u32 %v4357, %v4360
        %v4362 = vrot.slane %v4361, 4
        %v4364 = vshll.u32 %v4021, 16
        %v4366 = vrot.slane %v4364, 5
        %v4367 = vsel %vm1458, %v4362, %v4366
        %v4368 = vshrl.u32 %v4021, 16
        %v4370 = vrot.slane %v4368, 4
        %v4371 = vor.u32 %v4370, %v4366
        %v4372 = vrot.slane %v4371, 4
        %v4374 = vshll.u32 %v4039, 16
        %v4376 = vrot.slane %v4374, 5
        %v4377 = vsel %vm1458, %v4372, %v4376
        %v4379 = vshrl.u32 %v4022, 16
        %v4381 = vrot.slane %v4379, 4
        %v4382 = vshll.u32 %v4022, 16
        %v4384 = vrot.slane %v4382, 5
        %v4385 = vor.u32 %v4381, %v4384
        %v4386 = vrot.slane %v4385, 4
        %v4388 = vshll.u32 %v4023, 16
        %v4390 = vrot.slane %v4388, 5
        %v4391 = vsel %vm1458, %v4386, %v4390
        %v4392 = vshrl.u32 %v4023, 16
        %v4394 = vrot.slane %v4392, 4
        %v4395 = vor.u32 %v4394, %v4390
        %v4396 = vrot.slane %v4395, 4
        %v4398 = vshll.u32 %v4040, 16
        %v4400 = vrot.slane %v4398, 5
        %v4401 = vsel %vm1458, %v4396, %v4400
        %v4403 = vshrl.u32 %v4024, 16
        %v4405 = vrot.slane %v4403, 4
        %v4406 = vshll.u32 %v4024, 16
        %v4408 = vrot.slane %v4406, 5
        %v4409 = vor.u32 %v4405, %v4408
        %v4410 = vrot.slane %v4409, 4
        %v4412 = vshll.u32 %v4025, 16
        %v4414 = vrot.slane %v4412, 5
        %v4415 = vsel %vm1458, %v4410, %v4414
        %v4416 = vshrl.u32 %v4025, 16
        %v4418 = vrot.slane %v4416, 4
        %v4419 = vor.u32 %v4418, %v4414
        %v4420 = vrot.slane %v4419, 4
        %v4422 = vshll.u32 %v4041, 16
        %v4424 = vrot.slane %v4422, 5
        %v4425 = vsel %vm1458, %v4420, %v4424
        %v4458 = vunpack.c.l.b16 %v3994
        %v4459 = vunpack.c.l.b16 %v3995
        %v4460 = vunpack.c.l.b16 %v3996
        %v4461 = vunpack.c.l.b16 %v3997
        %v4462 = vunpack.c.l.b16 %v3998
        %v4463 = vunpack.c.l.b16 %v3999
        %v4464 = vunpack.c.l.b16 %v4000
        %v4465 = vunpack.c.l.b16 %v4001
        %v4466 = vunpack.c.l.b16 %v4002
        %v4467 = vunpack.c.l.b16 %v4003
        %v4468 = vunpack.c.l.b16 %v4004
        %v4469 = vunpack.c.l.b16 %v4005
        %v4470 = vunpack.c.l.b16 %v4006
        %v4471 = vunpack.c.l.b16 %v4007
        %v4472 = vunpack.c.l.b16 %v4008
        %v4473 = vunpack.c.l.b16 %v4009
        %v4474 = vunpack.c.l.b16 %v4010
        %v4475 = vunpack.c.l.b16 %v4011
        %v4476 = vunpack.c.l.b16 %v4012
        %v4477 = vunpack.c.l.b16 %v4013
        %v4478 = vunpack.c.l.b16 %v4014
        %v4479 = vunpack.c.l.b16 %v4015
        %v4480 = vunpack.c.l.b16 %v4016
        %v4481 = vunpack.c.l.b16 %v4017
        %v4482 = vunpack.c.l.b16 %v4018
        %v4483 = vunpack.c.l.b16 %v4019
        %v4484 = vunpack.c.l.b16 %v4020
        %v4485 = vunpack.c.l.b16 %v4021
        %v4486 = vunpack.c.l.b16 %v4022
        %v4487 = vunpack.c.l.b16 %v4023
        %v4488 = vunpack.c.l.b16 %v4024
        %v4489 = vunpack.c.l.b16 %v4025
        %v4490 = vpack.c.b16 %v4459, %v4458
        %v4491 = vpack.c.b16 %v4461, %v4460
        %v4492 = vpack.c.b16 %v4463, %v4462
        %v4493 = vpack.c.b16 %v4465, %v4464
        %v4494 = vpack.c.b16 %v4467, %v4466
        %v4495 = vpack.c.b16 %v4469, %v4468
        %v4496 = vpack.c.b16 %v4471, %v4470
        %v4497 = vpack.c.b16 %v4473, %v4472
        %v4498 = vpack.c.b16 %v4475, %v4474
        %v4499 = vpack.c.b16 %v4477, %v4476
        %v4500 = vpack.c.b16 %v4479, %v4478
        %v4501 = vpack.c.b16 %v4481, %v4480
        %v4502 = vpack.c.b16 %v4483, %v4482
        %v4503 = vpack.c.b16 %v4485, %v4484
        %v4504 = vpack.c.b16 %v4487, %v4486
        %v4505 = vpack.c.b16 %v4489, %v4488
        %v4522 = vunpack.c.l.b16 %v4055
        %v4523 = vunpack.c.l.b16 %v4065
        %v4524 = vunpack.c.l.b16 %v4079
        %v4525 = vunpack.c.l.b16 %v4089
        %v4526 = vunpack.c.l.b16 %v4103
        %v4527 = vunpack.c.l.b16 %v4113
        %v4528 = vunpack.c.l.b16 %v4127
        %v4529 = vunpack.c.l.b16 %v4137
        %v4530 = vunpack.c.l.b16 %v4151
        %v4531 = vunpack.c.l.b16 %v4161
        %v4532 = vunpack.c.l.b16 %v4175
        %v4533 = vunpack.c.l.b16 %v4185
        %v4534 = vunpack.c.l.b16 %v4199
        %v4535 = vunpack.c.l.b16 %v4209
        %v4536 = vunpack.c.l.b16 %v4223
        %v4537 = vunpack.c.l.b16 %v4233
        %v4538 = vunpack.c.l.b16 %v4247
        %v4539 = vunpack.c.l.b16 %v4257
        %v4540 = vunpack.c.l.b16 %v4271
        %v4541 = vunpack.c.l.b16 %v4281
        %v4542 = vunpack.c.l.b16 %v4295
        %v4543 = vunpack.c.l.b16 %v4305
        %v4544 = vunpack.c.l.b16 %v4319
        %v4545 = vunpack.c.l.b16 %v4329
        %v4546 = vunpack.c.l.b16 %v4343
        %v4547 = vunpack.c.l.b16 %v4353
        %v4548 = vunpack.c.l.b16 %v4367
        %v4549 = vunpack.c.l.b16 %v4377
        %v4550 = vunpack.c.l.b16 %v4391
        %v4551 = vunpack.c.l.b16 %v4401
        %v4552 = vunpack.c.l.b16 %v4415
        %v4553 = vunpack.c.l.b16 %v4425
        %v4554 = vpack.c.b16 %v4523, %v4522
        %v4555 = vpack.c.b16 %v4525, %v4524
        %v4556 = vpack.c.b16 %v4527, %v4526
        %v4557 = vpack.c.b16 %v4529, %v4528
        %v4558 = vpack.c.b16 %v4531, %v4530
        %v4559 = vpack.c.b16 %v4533, %v4532
        %v4560 = vpack.c.b16 %v4535, %v4534
        %v4561 = vpack.c.b16 %v4537, %v4536
        %v4562 = vpack.c.b16 %v4539, %v4538
        %v4563 = vpack.c.b16 %v4541, %v4540
        %v4564 = vpack.c.b16 %v4543, %v4542
        %v4565 = vpack.c.b16 %v4545, %v4544
        %v4566 = vpack.c.b16 %v4547, %v4546
        %v4567 = vpack.c.b16 %v4549, %v4548
        %v4568 = vpack.c.b16 %v4551, %v4550
        %v4569 = vpack.c.b16 %v4553, %v4552
        %v4586 = vld [vmem:[#allocation6 + $0x180] sm:$0xf]
        %v4587 = vld [vmem:[#allocation6 + $0x184] sm:$0xf]
        %v4588 = vld [vmem:[#allocation6 + $0x188] sm:$0xf]
        %v4589 = vld [vmem:[#allocation6 + $0x18c] sm:$0xf]
        %v4590 = vld [vmem:[#allocation6 + $0x190] sm:$0xf]
        %v4591 = vld [vmem:[#allocation6 + $0x194] sm:$0xf]
        %v4592 = vld [vmem:[#allocation6 + $0x198] sm:$0xf]
        %v4593 = vld [vmem:[#allocation6 + $0x19c] sm:$0xf]
        %v4594 = vld [vmem:[#allocation6 + $0x1a0] sm:$0xf]
        %v4595 = vld [vmem:[#allocation6 + $0x1a4] sm:$0xf]
        %v4596 = vld [vmem:[#allocation6 + $0x1a8] sm:$0xf]
        %v4597 = vld [vmem:[#allocation6 + $0x1ac] sm:$0xf]
        %v4598 = vld [vmem:[#allocation6 + $0x1b0] sm:$0xf]
        %v4599 = vld [vmem:[#allocation6 + $0x1b4] sm:$0xf]
        %v4600 = vld [vmem:[#allocation6 + $0x1b8] sm:$0xf]
        %v4601 = vld [vmem:[#allocation6 + $0x1bc] sm:$0xf]
        %v4602 = vld [vmem:[#allocation6 + $0x1c0] sm:$0xf]
        %v4603 = vld [vmem:[#allocation6 + $0x1c4] sm:$0xf]
        %v4604 = vld [vmem:[#allocation6 + $0x1c8] sm:$0xf]
        %v4605 = vld [vmem:[#allocation6 + $0x1cc] sm:$0xf]
        %v4606 = vld [vmem:[#allocation6 + $0x1d0] sm:$0xf]
        %v4607 = vld [vmem:[#allocation6 + $0x1d4] sm:$0xf]
        %v4608 = vld [vmem:[#allocation6 + $0x1d8] sm:$0xf]
        %v4609 = vld [vmem:[#allocation6 + $0x1dc] sm:$0xf]
        %v4610 = vld [vmem:[#allocation6 + $0x1e0] sm:$0xf]
        %v4611 = vld [vmem:[#allocation6 + $0x1e4] sm:$0xf]
        %v4612 = vld [vmem:[#allocation6 + $0x1e8] sm:$0xf]
        %v4613 = vld [vmem:[#allocation6 + $0x1ec] sm:$0xf]
        %v4614 = vld [vmem:[#allocation6 + $0x1f0] sm:$0xf]
        %v4615 = vld [vmem:[#allocation6 + $0x1f4] sm:$0xf]
        %v4616 = vld [vmem:[#allocation6 + $0x1f8] sm:$0xf]
        %v4617 = vld [vmem:[#allocation6 + $0x1fc] sm:$0xf]
        %v4650 = vunpack.c.l.b16 %v4586
        %v4651 = vunpack.c.l.b16 %v4587
        %v4652 = vunpack.c.l.b16 %v4588
        %v4653 = vunpack.c.l.b16 %v4589
        %v4654 = vunpack.c.l.b16 %v4590
        %v4655 = vunpack.c.l.b16 %v4591
        %v4656 = vunpack.c.l.b16 %v4592
        %v4657 = vunpack.c.l.b16 %v4593
        %v4658 = vunpack.c.l.b16 %v4594
        %v4659 = vunpack.c.l.b16 %v4595
        %v4660 = vunpack.c.l.b16 %v4596
        %v4661 = vunpack.c.l.b16 %v4597
        %v4662 = vunpack.c.l.b16 %v4598
        %v4663 = vunpack.c.l.b16 %v4599
        %v4664 = vunpack.c.l.b16 %v4600
        %v4665 = vunpack.c.l.b16 %v4601
        %v4666 = vunpack.c.l.b16 %v4602
        %v4667 = vunpack.c.l.b16 %v4603
        %v4668 = vunpack.c.l.b16 %v4604
        %v4669 = vunpack.c.l.b16 %v4605
        %v4670 = vunpack.c.l.b16 %v4606
        %v4671 = vunpack.c.l.b16 %v4607
        %v4672 = vunpack.c.l.b16 %v4608
        %v4673 = vunpack.c.l.b16 %v4609
        %v4674 = vunpack.c.l.b16 %v4610
        %v4675 = vunpack.c.l.b16 %v4611
        %v4676 = vunpack.c.l.b16 %v4612
        %v4677 = vunpack.c.l.b16 %v4613
        %v4678 = vunpack.c.l.b16 %v4614
        %v4679 = vunpack.c.l.b16 %v4615
        %v4680 = vunpack.c.l.b16 %v4616
        %v4681 = vunpack.c.l.b16 %v4617
        %v4682 = vpack.c.b16 %v4651, %v4650
        %v4683 = vpack.c.b16 %v4653, %v4652
        %v4684 = vpack.c.b16 %v4655, %v4654
        %v4685 = vpack.c.b16 %v4657, %v4656
        %v4686 = vpack.c.b16 %v4659, %v4658
        %v4687 = vpack.c.b16 %v4661, %v4660
        %v4688 = vpack.c.b16 %v4663, %v4662
        %v4689 = vpack.c.b16 %v4665, %v4664
        %v4690 = vpack.c.b16 %v4667, %v4666
        %v4691 = vpack.c.b16 %v4669, %v4668
        %v4692 = vpack.c.b16 %v4671, %v4670
        %v4693 = vpack.c.b16 %v4673, %v4672
        %v4694 = vpack.c.b16 %v4675, %v4674
        %v4695 = vpack.c.b16 %v4677, %v4676
        %v4696 = vpack.c.b16 %v4679, %v4678
        %v4697 = vpack.c.b16 %v4681, %v4680
        %4714 = vmatprep.subr.bf16.mxu0 0
        %4715 = vmatpush1.bf16.msra.mxu0 %v4689
        %4716 = vmatprep.subr.bf16.mxu0 0
        %4717 = vmatpush1.bf16.msra.mxu0 %v4688
        %4718 = vmatprep.subr.bf16.mxu0 0
        %4719 = vmatpush1.bf16.msra.mxu0 %v4687
        %4720 = vmatprep.subr.bf16.mxu0 0
        %4721 = vmatpush1.bf16.msra.mxu0 %v4686
        %4722 = vmatprep.subr.bf16.mxu0 0
        %4723 = vmatpush1.bf16.msra.mxu0 %v4685
        %4724 = vmatprep.subr.bf16.mxu0 0
        %4725 = vmatpush1.bf16.msra.mxu0 %v4684
        %4726 = vmatprep.subr.bf16.mxu0 0
        %4727 = vmatpush1.bf16.msra.mxu0 %v4683
        %4728 = vmatprep.subr.bf16.mxu0 0
        %4729 = vmatpush1.bf16.msra.mxu0 %v4682
        %4730 = vmatprep.subr.bf16.mxu0 0
        %4731 = vmatpush2.bf16.msra.mxu0 %v4697
        %4732 = vmatprep.subr.bf16.mxu0 0
        %4733 = vmatpush2.bf16.msra.mxu0 %v4696
        %4734 = vmatprep.subr.bf16.mxu0 0
        %4735 = vmatpush2.bf16.msra.mxu0 %v4695
        %4736 = vmatprep.subr.bf16.mxu0 0
        %4737 = vmatpush2.bf16.msra.mxu0 %v4694
        %4738 = vmatprep.subr.bf16.mxu0 0
        %4739 = vmatpush2.bf16.msra.mxu0 %v4693
        %4740 = vmatprep.subr.bf16.mxu0 0
        %4741 = vmatpush2.bf16.msra.mxu0 %v4692
        %4742 = vmatprep.subr.bf16.mxu0 0
        %4743 = vmatpush2.bf16.msra.mxu0 %v4691
        %4744 = vmatprep.subr.bf16.mxu0 0
        %4745 = vmatpush2.bf16.msra.mxu0 %v4690
        %4746 = vmatprep.mubr.bf16.mxu0 %v4554
        %4747 = vmatmul.mubr.bf16.gmra.mxu0 %v4490
        %v4748 = vpop.f32.mrf.mxu0
        %v4749 = vadd.f32 0.0, %v4748
        %v4750 = vpop.f32.mrf.mxu0
        %v4751 = vpop.f32.mrf.mxu0
        %v4752 = vadd.f32 0.0, %v4751
        %v4753 = vpop.f32.mrf.mxu0
        %4754 = vmatprep.mubr.bf16.mxu0 %v4555
        %4755 = vmatmul.mubr.bf16.gmra.mxu0 %v4491
        %v4756 = vpop.f32.mrf.mxu0
        %v4757 = vadd.f32 0.0, %v4756
        %v4758 = vpop.f32.mrf.mxu0
        %v4759 = vpop.f32.mrf.mxu0
        %v4760 = vadd.f32 0.0, %v4759
        %v4761 = vpop.f32.mrf.mxu0
        %4762 = vmatprep.mubr.bf16.mxu0 %v4556
        %4763 = vmatmul.mubr.bf16.gmra.mxu0 %v4492
        %v4764 = vpop.f32.mrf.mxu0
        %v4765 = vadd.f32 0.0, %v4764
        %v4766 = vpop.f32.mrf.mxu0
        %v4767 = vpop.f32.mrf.mxu0
        %v4768 = vadd.f32 0.0, %v4767
        %v4769 = vpop.f32.mrf.mxu0
        %4770 = vmatprep.mubr.bf16.mxu0 %v4557
        %4771 = vmatmul.mubr.bf16.gmra.mxu0 %v4493
        %v4772 = vpop.f32.mrf.mxu0
        %v4773 = vadd.f32 0.0, %v4772
        %v4774 = vpop.f32.mrf.mxu0
        %v4775 = vpop.f32.mrf.mxu0
        %v4776 = vadd.f32 0.0, %v4775
        %v4777 = vpop.f32.mrf.mxu0
        %4778 = vmatprep.mubr.bf16.mxu0 %v4558
        %4779 = vmatmul.mubr.bf16.gmra.mxu0 %v4494
        %v4780 = vpop.f32.mrf.mxu0
        %v4781 = vadd.f32 0.0, %v4780
        %v4782 = vpop.f32.mrf.mxu0
        %v4783 = vpop.f32.mrf.mxu0
        %v4784 = vadd.f32 0.0, %v4783
        %v4785 = vpop.f32.mrf.mxu0
        %4786 = vmatprep.mubr.bf16.mxu0 %v4559
        %4787 = vmatmul.mubr.bf16.gmra.mxu0 %v4495
        %v4788 = vpop.f32.mrf.mxu0
        %v4789 = vadd.f32 0.0, %v4788
        %v4790 = vpop.f32.mrf.mxu0
        %v4791 = vpop.f32.mrf.mxu0
        %v4792 = vadd.f32 0.0, %v4791
        %v4793 = vpop.f32.mrf.mxu0
        %4794 = vmatprep.mubr.bf16.mxu0 %v4560
        %4795 = vmatmul.mubr.bf16.gmra.mxu0 %v4496
        %v4796 = vpop.f32.mrf.mxu0
        %v4797 = vadd.f32 0.0, %v4796
        %v4798 = vpop.f32.mrf.mxu0
        %v4799 = vpop.f32.mrf.mxu0
        %v4800 = vadd.f32 0.0, %v4799
        %v4801 = vpop.f32.mrf.mxu0
        %4802 = vmatprep.mubr.bf16.mxu0 %v4561
        %4803 = vmatmul.mubr.bf16.gmra.mxu0 %v4497
        %v4804 = vpop.f32.mrf.mxu0
        %v4805 = vadd.f32 0.0, %v4804
        %v4806 = vpop.f32.mrf.mxu0
        %v4807 = vpop.f32.mrf.mxu0
        %v4808 = vadd.f32 0.0, %v4807
        %v4809 = vpop.f32.mrf.mxu0
        %4810 = vmatprep.mubr.bf16.mxu0 %v4562
        %4811 = vmatmul.mubr.bf16.gmra.mxu0 %v4498
        %v4812 = vpop.f32.mrf.mxu0
        %v4813 = vadd.f32 0.0, %v4812
        %v4814 = vpop.f32.mrf.mxu0
        %v4815 = vpop.f32.mrf.mxu0
        %v4816 = vadd.f32 0.0, %v4815
        %v4817 = vpop.f32.mrf.mxu0
        %4818 = vmatprep.mubr.bf16.mxu0 %v4563
        %4819 = vmatmul.mubr.bf16.gmra.mxu0 %v4499
        %v4820 = vpop.f32.mrf.mxu0
        %v4821 = vadd.f32 0.0, %v4820
        %v4822 = vpop.f32.mrf.mxu0
        %v4823 = vpop.f32.mrf.mxu0
        %v4824 = vadd.f32 0.0, %v4823
        %v4825 = vpop.f32.mrf.mxu0
        %4826 = vmatprep.mubr.bf16.mxu0 %v4564
        %4827 = vmatmul.mubr.bf16.gmra.mxu0 %v4500
        %v4828 = vpop.f32.mrf.mxu0
        %v4829 = vadd.f32 0.0, %v4828
        %v4830 = vpop.f32.mrf.mxu0
        %v4831 = vpop.f32.mrf.mxu0
        %v4832 = vadd.f32 0.0, %v4831
        %v4833 = vpop.f32.mrf.mxu0
        %4834 = vmatprep.mubr.bf16.mxu0 %v4565
        %4835 = vmatmul.mubr.bf16.gmra.mxu0 %v4501
        %v4836 = vpop.f32.mrf.mxu0
        %v4837 = vadd.f32 0.0, %v4836
        %v4838 = vpop.f32.mrf.mxu0
        %v4839 = vpop.f32.mrf.mxu0
        %v4840 = vadd.f32 0.0, %v4839
        %v4841 = vpop.f32.mrf.mxu0
        %4842 = vmatprep.mubr.bf16.mxu0 %v4566
        %4843 = vmatmul.mubr.bf16.gmra.mxu0 %v4502
        %v4844 = vpop.f32.mrf.mxu0
        %v4845 = vadd.f32 0.0, %v4844
        %v4846 = vpop.f32.mrf.mxu0
        %v4847 = vpop.f32.mrf.mxu0
        %v4848 = vadd.f32 0.0, %v4847
        %v4849 = vpop.f32.mrf.mxu0
        %4850 = vmatprep.mubr.bf16.mxu0 %v4567
        %4851 = vmatmul.mubr.bf16.gmra.mxu0 %v4503
        %v4852 = vpop.f32.mrf.mxu0
        %v4853 = vadd.f32 0.0, %v4852
        %v4854 = vpop.f32.mrf.mxu0
        %v4855 = vpop.f32.mrf.mxu0
        %v4856 = vadd.f32 0.0, %v4855
        %v4857 = vpop.f32.mrf.mxu0
        %4858 = vmatprep.mubr.bf16.mxu0 %v4568
        %4859 = vmatmul.mubr.bf16.gmra.mxu0 %v4504
        %v4860 = vpop.f32.mrf.mxu0
        %v4861 = vadd.f32 0.0, %v4860
        %v4862 = vpop.f32.mrf.mxu0
        %v4863 = vpop.f32.mrf.mxu0
        %v4864 = vadd.f32 0.0, %v4863
        %v4865 = vpop.f32.mrf.mxu0
        %4866 = vmatprep.mubr.bf16.mxu0 %v4569
        %4867 = vmatmul.mubr.bf16.gmra.mxu0 %v4505
        %v4868 = vpop.f32.mrf.mxu0
        %v4869 = vadd.f32 0.0, %v4868
        %v4870 = vpop.f32.mrf.mxu0
        %v4871 = vpop.f32.mrf.mxu0
        %v4872 = vadd.f32 0.0, %v4871
        %v4873 = vpop.f32.mrf.mxu0
        %4874 = vdwg.mxu0
        %v4875 = vadd.f32 %v3961, %v4749
        %v4876 = vadd.f32 %v3962, %v4752
        %v4877 = vadd.f32 %v3963, %v4757
        %v4878 = vadd.f32 %v3964, %v4760
        %v4879 = vadd.f32 %v3965, %v4765
        %v4880 = vadd.f32 %v3966, %v4768
        %v4881 = vadd.f32 %v3967, %v4773
        %v4882 = vadd.f32 %v3968, %v4776
        %v4883 = vadd.f32 %v3969, %v4781
        %v4884 = vadd.f32 %v3970, %v4784
        %v4885 = vadd.f32 %v3971, %v4789
        %v4886 = vadd.f32 %v3972, %v4792
        %v4887 = vadd.f32 %v3973, %v4797
        %v4888 = vadd.f32 %v3974, %v4800
        %v4889 = vadd.f32 %v3975, %v4805
        %v4890 = vadd.f32 %v3976, %v4808
        %v4891 = vadd.f32 %v3977, %v4813
        %v4892 = vadd.f32 %v3978, %v4816
        %v4893 = vadd.f32 %v3979, %v4821
        %v4894 = vadd.f32 %v3980, %v4824
        %v4895 = vadd.f32 %v3981, %v4829
        %v4896 = vadd.f32 %v3982, %v4832
        %v4897 = vadd.f32 %v3983, %v4837
        %v4898 = vadd.f32 %v3984, %v4840
        %v4899 = vadd.f32 %v3985, %v4845
        %v4900 = vadd.f32 %v3986, %v4848
        %v4901 = vadd.f32 %v3987, %v4853
        %v4902 = vadd.f32 %v3988, %v4856
        %v4903 = vadd.f32 %v3989, %v4861
        %v4904 = vadd.f32 %v3990, %v4864
        %v4905 = vadd.f32 %v3991, %v4869
        %v4906 = vadd.f32 %v3992, %v4872
        %v4907 = vld [vmem:[%s3993] sm:$0xe]
        %v4908 = vld [vmem:[%s3993 + $0xc] sm:$0xe]
        %v4909 = vld [vmem:[%s3993 + $0x18] sm:$0xe]
        %v4910 = vld [vmem:[%s3993 + $0x24] sm:$0xe]
        %v4911 = vld [vmem:[%s3993 + $0x30] sm:$0xe]
        %v4912 = vld [vmem:[%s3993 + $0x3c] sm:$0xe]
        %v4913 = vld [vmem:[%s3993 + $0x48] sm:$0xe]
        %v4914 = vld [vmem:[%s3993 + $0x54] sm:$0xe]
        %v4915 = vld [vmem:[%s3993 + $0x60] sm:$0xe]
        %v4916 = vld [vmem:[%s3993 + $0x6c] sm:$0xe]
        %v4917 = vld [vmem:[%s3993 + $0x78] sm:$0xe]
        %v4918 = vld [vmem:[%s3993 + $0x84] sm:$0xe]
        %v4919 = vld [vmem:[%s3993 + $0x90] sm:$0xe]
        %v4920 = vld [vmem:[%s3993 + $0x9c] sm:$0xe]
        %v4921 = vld [vmem:[%s3993 + $0xa8] sm:$0xe]
        %v4922 = vld [vmem:[%s3993 + $0xb4] sm:$0xe]
        %v4955 = vrot.slane %v4907, 5
        %v4956 = vrot.slane %v4955, 4
        %v4957 = vrot.slane %v3995, 5
        %v4958 = vsel %vm2085, %v4956, %v4957
        %v4959 = vrot.slane %v4957, 4
        %v4960 = vrot.slane %v4026, 5
        %v4961 = vsel %vm2085, %v4959, %v4960
        %v4962 = vrot.slane %v4908, 5
        %v4963 = vrot.slane %v4962, 4
        %v4964 = vrot.slane %v3997, 5
        %v4965 = vsel %vm2085, %v4963, %v4964
        %v4966 = vrot.slane %v4964, 4
        %v4967 = vrot.slane %v4027, 5
        %v4968 = vsel %vm2085, %v4966, %v4967
        %v4969 = vrot.slane %v4909, 5
        %v4970 = vrot.slane %v4969, 4
        %v4971 = vrot.slane %v3999, 5
        %v4972 = vsel %vm2085, %v4970, %v4971
        %v4973 = vrot.slane %v4971, 4
        %v4974 = vrot.slane %v4028, 5
        %v4975 = vsel %vm2085, %v4973, %v4974
        %v4976 = vrot.slane %v4910, 5
        %v4977 = vrot.slane %v4976, 4
        %v4978 = vrot.slane %v4001, 5
        %v4979 = vsel %vm2085, %v4977, %v4978
        %v4980 = vrot.slane %v4978, 4
        %v4981 = vrot.slane %v4029, 5
        %v4982 = vsel %vm2085, %v4980, %v4981
        %v4983 = vrot.slane %v4911, 5
        %v4984 = vrot.slane %v4983, 4
        %v4985 = vrot.slane %v4003, 5
        %v4986 = vsel %vm2085, %v4984, %v4985
        %v4987 = vrot.slane %v4985, 4
        %v4988 = vrot.slane %v4030, 5
        %v4989 = vsel %vm2085, %v4987, %v4988
        %v4990 = vrot.slane %v4912, 5
        %v4991 = vrot.slane %v4990, 4
        %v4992 = vrot.slane %v4005, 5
        %v4993 = vsel %vm2085, %v4991, %v4992
        %v4994 = vrot.slane %v4992, 4
        %v4995 = vrot.slane %v4031, 5
        %v4996 = vsel %vm2085, %v4994, %v4995
        %v4997 = vrot.slane %v4913, 5
        %v4998 = vrot.slane %v4997, 4
        %v4999 = vrot.slane %v4007, 5
        %v5000 = vsel %vm2085, %v4998, %v4999
        %v5001 = vrot.slane %v4999, 4
        %v5002 = vrot.slane %v4032, 5
        %v5003 = vsel %vm2085, %v5001, %v5002
        %v5004 = vrot.slane %v4914, 5
        %v5005 = vrot.slane %v5004, 4
        %v5006 = vrot.slane %v4009, 5
        %v5007 = vsel %vm2085, %v5005, %v5006
        %v5008 = vrot.slane %v5006, 4
        %v5009 = vrot.slane %v4033, 5
        %v5010 = vsel %vm2085, %v5008, %v5009
        %v5011 = vrot.slane %v4915, 5
        %v5012 = vrot.slane %v5011, 4
        %v5013 = vrot.slane %v4011, 5
        %v5014 = vsel %vm2085, %v5012, %v5013
        %v5015 = vrot.slane %v5013, 4
        %v5016 = vrot.slane %v4034, 5
        %v5017 = vsel %vm2085, %v5015, %v5016
        %v5018 = vrot.slane %v4916, 5
        %v5019 = vrot.slane %v5018, 4
        %v5020 = vrot.slane %v4013, 5
        %v5021 = vsel %vm2085, %v5019, %v5020
        %v5022 = vrot.slane %v5020, 4
        %v5023 = vrot.slane %v4035, 5
        %v5024 = vsel %vm2085, %v5022, %v5023
        %v5025 = vrot.slane %v4917, 5
        %v5026 = vrot.slane %v5025, 4
        %v5027 = vrot.slane %v4015, 5
        %v5028 = vsel %vm2085, %v5026, %v5027
        %v5029 = vrot.slane %v5027, 4
        %v5030 = vrot.slane %v4036, 5
        %v5031 = vsel %vm2085, %v5029, %v5030
        %v5032 = vrot.slane %v4918, 5
        %v5033 = vrot.slane %v5032, 4
        %v5034 = vrot.slane %v4017, 5
        %v5035 = vsel %vm2085, %v5033, %v5034
        %v5036 = vrot.slane %v5034, 4
        %v5037 = vrot.slane %v4037, 5
        %v5038 = vsel %vm2085, %v5036, %v5037
        %v5039 = vrot.slane %v4919, 5
        %v5040 = vrot.slane %v5039, 4
        %v5041 = vrot.slane %v4019, 5
        %v5042 = vsel %vm2085, %v5040, %v5041
        %v5043 = vrot.slane %v5041, 4
        %v5044 = vrot.slane %v4038, 5
        %v5045 = vsel %vm2085, %v5043, %v5044
        %v5046 = vrot.slane %v4920, 5
        %v5047 = vrot.slane %v5046, 4
        %v5048 = vrot.slane %v4021, 5
        %v5049 = vsel %vm2085, %v5047, %v5048
        %v5050 = vrot.slane %v5048, 4
        %v5051 = vrot.slane %v4039, 5
        %v5052 = vsel %vm2085, %v5050, %v5051
        %v5053 = vrot.slane %v4921, 5
        %v5054 = vrot.slane %v5053, 4
        %v5055 = vrot.slane %v4023, 5
        %v5056 = vsel %vm2085, %v5054, %v5055
        %v5057 = vrot.slane %v5055, 4
        %v5058 = vrot.slane %v4040, 5
        %v5059 = vsel %vm2085, %v5057, %v5058
        %v5060 = vrot.slane %v4922, 5
        %v5061 = vrot.slane %v5060, 4
        %v5062 = vrot.slane %v4025, 5
        %v5063 = vsel %vm2085, %v5061, %v5062
        %v5064 = vrot.slane %v5062, 4
        %v5065 = vrot.slane %v4041, 5
        %v5066 = vsel %vm2085, %v5064, %v5065
        %v5067 = vld [vmem:[#allocation6 + $0x200] sm:$0xf]
        %v5068 = vld [vmem:[#allocation6 + $0x204] sm:$0xf]
        %v5069 = vld [vmem:[#allocation6 + $0x208] sm:$0xf]
        %v5070 = vld [vmem:[#allocation6 + $0x20c] sm:$0xf]
        %v5071 = vld [vmem:[#allocation6 + $0x210] sm:$0xf]
        %v5072 = vld [vmem:[#allocation6 + $0x214] sm:$0xf]
        %v5073 = vld [vmem:[#allocation6 + $0x218] sm:$0xf]
        %v5074 = vld [vmem:[#allocation6 + $0x21c] sm:$0xf]
        %v5075 = vld [vmem:[#allocation6 + $0x220] sm:$0xf]
        %v5076 = vld [vmem:[#allocation6 + $0x224] sm:$0xf]
        %v5077 = vld [vmem:[#allocation6 + $0x228] sm:$0xf]
        %v5078 = vld [vmem:[#allocation6 + $0x22c] sm:$0xf]
        %v5079 = vld [vmem:[#allocation6 + $0x230] sm:$0xf]
        %v5080 = vld [vmem:[#allocation6 + $0x234] sm:$0xf]
        %v5081 = vld [vmem:[#allocation6 + $0x238] sm:$0xf]
        %v5082 = vld [vmem:[#allocation6 + $0x23c] sm:$0xf]
        %v5083 = vunpack.c.l.b16 %v4958
        %v5084 = vunpack.c.l.b16 %v4961
        %v5085 = vunpack.c.l.b16 %v4965
        %v5086 = vunpack.c.l.b16 %v4968
        %v5087 = vunpack.c.l.b16 %v4972
        %v5088 = vunpack.c.l.b16 %v4975
        %v5089 = vunpack.c.l.b16 %v4979
        %v5090 = vunpack.c.l.b16 %v4982
        %v5091 = vunpack.c.l.b16 %v4986
        %v5092 = vunpack.c.l.b16 %v4989
        %v5093 = vunpack.c.l.b16 %v4993
        %v5094 = vunpack.c.l.b16 %v4996
        %v5095 = vunpack.c.l.b16 %v5000
        %v5096 = vunpack.c.l.b16 %v5003
        %v5097 = vunpack.c.l.b16 %v5007
        %v5098 = vunpack.c.l.b16 %v5010
        %v5099 = vunpack.c.l.b16 %v5014
        %v5100 = vunpack.c.l.b16 %v5017
        %v5101 = vunpack.c.l.b16 %v5021
        %v5102 = vunpack.c.l.b16 %v5024
        %v5103 = vunpack.c.l.b16 %v5028
        %v5104 = vunpack.c.l.b16 %v5031
        %v5105 = vunpack.c.l.b16 %v5035
        %v5106 = vunpack.c.l.b16 %v5038
        %v5107 = vunpack.c.l.b16 %v5042
        %v5108 = vunpack.c.l.b16 %v5045
        %v5109 = vunpack.c.l.b16 %v5049
        %v5110 = vunpack.c.l.b16 %v5052
        %v5111 = vunpack.c.l.b16 %v5056
        %v5112 = vunpack.c.l.b16 %v5059
        %v5113 = vunpack.c.l.b16 %v5063
        %v5114 = vunpack.c.l.b16 %v5066
        %v5115 = vpack.c.b16 %v5084, %v5083
        %v5116 = vpack.c.b16 %v5086, %v5085
        %v5117 = vpack.c.b16 %v5088, %v5087
        %v5118 = vpack.c.b16 %v5090, %v5089
        %v5119 = vpack.c.b16 %v5092, %v5091
        %v5120 = vpack.c.b16 %v5094, %v5093
        %v5121 = vpack.c.b16 %v5096, %v5095
        %v5122 = vpack.c.b16 %v5098, %v5097
        %v5123 = vpack.c.b16 %v5100, %v5099
        %v5124 = vpack.c.b16 %v5102, %v5101
        %v5125 = vpack.c.b16 %v5104, %v5103
        %v5126 = vpack.c.b16 %v5106, %v5105
        %v5127 = vpack.c.b16 %v5108, %v5107
        %v5128 = vpack.c.b16 %v5110, %v5109
        %v5129 = vpack.c.b16 %v5112, %v5111
        %v5130 = vpack.c.b16 %v5114, %v5113
        %v5163 = vunpack.c.l.b16 %v5067
        %v5164 = vunpack.c.l.b16 %v5068
        %v5165 = vunpack.c.l.b16 %v5069
        %v5166 = vunpack.c.l.b16 %v5070
        %v5167 = vunpack.c.l.b16 %v5071
        %v5168 = vunpack.c.l.b16 %v5072
        %v5169 = vunpack.c.l.b16 %v5073
        %v5170 = vunpack.c.l.b16 %v5074
        %v5171 = vunpack.c.l.b16 %v5075
        %v5172 = vunpack.c.l.b16 %v5076
        %v5173 = vunpack.c.l.b16 %v5077
        %v5174 = vunpack.c.l.b16 %v5078
        %v5175 = vunpack.c.l.b16 %v5079
        %v5176 = vunpack.c.l.b16 %v5080
        %v5177 = vunpack.c.l.b16 %v5081
        %v5178 = vunpack.c.l.b16 %v5082
        %v5179 = vpack.c.b16 %v5164, %v5163
        %v5180 = vpack.c.b16 %v5166, %v5165
        %v5181 = vpack.c.b16 %v5168, %v5167
        %v5182 = vpack.c.b16 %v5170, %v5169
        %v5183 = vpack.c.b16 %v5172, %v5171
        %v5184 = vpack.c.b16 %v5174, %v5173
        %v5185 = vpack.c.b16 %v5176, %v5175
        %v5186 = vpack.c.b16 %v5178, %v5177
        %5195 = vmatprep.subr.bf16.mxu0 0
        %5196 = vmatpush1.bf16.msra.mxu0 %v5186
        %5197 = vmatprep.subr.bf16.mxu0 0
        %5198 = vmatpush1.bf16.msra.mxu0 %v5185
        %5199 = vmatprep.subr.bf16.mxu0 0
        %5200 = vmatpush1.bf16.msra.mxu0 %v5184
        %5201 = vmatprep.subr.bf16.mxu0 0
        %5202 = vmatpush1.bf16.msra.mxu0 %v5183
        %5203 = vmatprep.subr.bf16.mxu0 0
        %5204 = vmatpush1.bf16.msra.mxu0 %v5182
        %5205 = vmatprep.subr.bf16.mxu0 0
        %5206 = vmatpush1.bf16.msra.mxu0 %v5181
        %5207 = vmatprep.subr.bf16.mxu0 0
        %5208 = vmatpush1.bf16.msra.mxu0 %v5180
        %5209 = vmatprep.subr.bf16.mxu0 0
        %5210 = vmatpush1.bf16.msra.mxu0 %v5179
        %5211 = vmatprep.subr.bf16.mxu0 0
        %5212 = vmatpush2.bf16.msra.mxu0 0
        %5213 = vmatprep.subr.bf16.mxu0 0
        %5214 = vmatpush2.bf16.msra.mxu0 0
        %5215 = vmatprep.subr.bf16.mxu0 0
        %5216 = vmatpush2.bf16.msra.mxu0 0
        %5217 = vmatprep.subr.bf16.mxu0 0
        %5218 = vmatpush2.bf16.msra.mxu0 0
        %5219 = vmatprep.subr.bf16.mxu0 0
        %5220 = vmatpush2.bf16.msra.mxu0 0
        %5221 = vmatprep.subr.bf16.mxu0 0
        %5222 = vmatpush2.bf16.msra.mxu0 0
        %5223 = vmatprep.subr.bf16.mxu0 0
        %5224 = vmatpush2.bf16.msra.mxu0 0
        %5225 = vmatprep.subr.bf16.mxu0 0
        %5226 = vmatpush2.bf16.msra.mxu0 0
        %5227 = vmatprep.mubr.bf16.mxu0 0
        %5228 = vmatmul.mubr.bf16.gmra.mxu0 %v5115
        %v5229 = vpop.f32.mrf.mxu0
        %v5230 = vadd.f32 0.0, %v5229
        %v5231 = vpop.f32.mrf.mxu0
        %v5232 = vpop.f32.mrf.mxu0
        %v5233 = vadd.f32 0.0, %v5232
        %v5234 = vpop.f32.mrf.mxu0
        %5235 = vmatprep.mubr.bf16.mxu0 0
        %5236 = vmatmul.mubr.bf16.gmra.mxu0 %v5116
        %v5237 = vpop.f32.mrf.mxu0
        %v5238 = vadd.f32 0.0, %v5237
        %v5239 = vpop.f32.mrf.mxu0
        %v5240 = vpop.f32.mrf.mxu0
        %v5241 = vadd.f32 0.0, %v5240
        %v5242 = vpop.f32.mrf.mxu0
        %5243 = vmatprep.mubr.bf16.mxu0 0
        %5244 = vmatmul.mubr.bf16.gmra.mxu0 %v5117
        %v5245 = vpop.f32.mrf.mxu0
        %v5246 = vadd.f32 0.0, %v5245
        %v5247 = vpop.f32.mrf.mxu0
        %v5248 = vpop.f32.mrf.mxu0
        %v5249 = vadd.f32 0.0, %v5248
        %v5250 = vpop.f32.mrf.mxu0
        %5251 = vmatprep.mubr.bf16.mxu0 0
        %5252 = vmatmul.mubr.bf16.gmra.mxu0 %v5118
        %v5253 = vpop.f32.mrf.mxu0
        %v5254 = vadd.f32 0.0, %v5253
        %v5255 = vpop.f32.mrf.mxu0
        %v5256 = vpop.f32.mrf.mxu0
        %v5257 = vadd.f32 0.0, %v5256
        %v5258 = vpop.f32.mrf.mxu0
        %5259 = vmatprep.mubr.bf16.mxu0 0
        %5260 = vmatmul.mubr.bf16.gmra.mxu0 %v5119
        %v5261 = vpop.f32.mrf.mxu0
        %v5262 = vadd.f32 0.0, %v5261
        %v5263 = vpop.f32.mrf.mxu0
        %v5264 = vpop.f32.mrf.mxu0
        %v5265 = vadd.f32 0.0, %v5264
        %v5266 = vpop.f32.mrf.mxu0
        %5267 = vmatprep.mubr.bf16.mxu0 0
        %5268 = vmatmul.mubr.bf16.gmra.mxu0 %v5120
        %v5269 = vpop.f32.mrf.mxu0
        %v5270 = vadd.f32 0.0, %v5269
        %v5271 = vpop.f32.mrf.mxu0
        %v5272 = vpop.f32.mrf.mxu0
        %v5273 = vadd.f32 0.0, %v5272
        %v5274 = vpop.f32.mrf.mxu0
        %5275 = vmatprep.mubr.bf16.mxu0 0
        %5276 = vmatmul.mubr.bf16.gmra.mxu0 %v5121
        %v5277 = vpop.f32.mrf.mxu0
        %v5278 = vadd.f32 0.0, %v5277
        %v5279 = vpop.f32.mrf.mxu0
        %v5280 = vpop.f32.mrf.mxu0
        %v5281 = vadd.f32 0.0, %v5280
        %v5282 = vpop.f32.mrf.mxu0
        %5283 = vmatprep.mubr.bf16.mxu0 0
        %5284 = vmatmul.mubr.bf16.gmra.mxu0 %v5122
        %v5285 = vpop.f32.mrf.mxu0
        %v5286 = vadd.f32 0.0, %v5285
        %v5287 = vpop.f32.mrf.mxu0
        %v5288 = vpop.f32.mrf.mxu0
        %v5289 = vadd.f32 0.0, %v5288
        %v5290 = vpop.f32.mrf.mxu0
        %5291 = vmatprep.mubr.bf16.mxu0 0
        %5292 = vmatmul.mubr.bf16.gmra.mxu0 %v5123
        %v5293 = vpop.f32.mrf.mxu0
        %v5294 = vadd.f32 0.0, %v5293
        %v5295 = vpop.f32.mrf.mxu0
        %v5296 = vpop.f32.mrf.mxu0
        %v5297 = vadd.f32 0.0, %v5296
        %v5298 = vpop.f32.mrf.mxu0
        %5299 = vmatprep.mubr.bf16.mxu0 0
        %5300 = vmatmul.mubr.bf16.gmra.mxu0 %v5124
        %v5301 = vpop.f32.mrf.mxu0
        %v5302 = vadd.f32 0.0, %v5301
        %v5303 = vpop.f32.mrf.mxu0
        %v5304 = vpop.f32.mrf.mxu0
        %v5305 = vadd.f32 0.0, %v5304
        %v5306 = vpop.f32.mrf.mxu0
        %5307 = vmatprep.mubr.bf16.mxu0 0
        %5308 = vmatmul.mubr.bf16.gmra.mxu0 %v5125
        %v5309 = vpop.f32.mrf.mxu0
        %v5310 = vadd.f32 0.0, %v5309
        %v5311 = vpop.f32.mrf.mxu0
        %v5312 = vpop.f32.mrf.mxu0
        %v5313 = vadd.f32 0.0, %v5312
        %v5314 = vpop.f32.mrf.mxu0
        %5315 = vmatprep.mubr.bf16.mxu0 0
        %5316 = vmatmul.mubr.bf16.gmra.mxu0 %v5126
        %v5317 = vpop.f32.mrf.mxu0
        %v5318 = vadd.f32 0.0, %v5317
        %v5319 = vpop.f32.mrf.mxu0
        %v5320 = vpop.f32.mrf.mxu0
        %v5321 = vadd.f32 0.0, %v5320
        %v5322 = vpop.f32.mrf.mxu0
        %5323 = vmatprep.mubr.bf16.mxu0 0
        %5324 = vmatmul.mubr.bf16.gmra.mxu0 %v5127
        %v5325 = vpop.f32.mrf.mxu0
        %v5326 = vadd.f32 0.0, %v5325
        %v5327 = vpop.f32.mrf.mxu0
        %v5328 = vpop.f32.mrf.mxu0
        %v5329 = vadd.f32 0.0, %v5328
        %v5330 = vpop.f32.mrf.mxu0
        %5331 = vmatprep.mubr.bf16.mxu0 0
        %5332 = vmatmul.mubr.bf16.gmra.mxu0 %v5128
        %v5333 = vpop.f32.mrf.mxu0
        %v5334 = vadd.f32 0.0, %v5333
        %v5335 = vpop.f32.mrf.mxu0
        %v5336 = vpop.f32.mrf.mxu0
        %v5337 = vadd.f32 0.0, %v5336
        %v5338 = vpop.f32.mrf.mxu0
        %5339 = vmatprep.mubr.bf16.mxu0 0
        %5340 = vmatmul.mubr.bf16.gmra.mxu0 %v5129
        %v5341 = vpop.f32.mrf.mxu0
        %v5342 = vadd.f32 0.0, %v5341
        %v5343 = vpop.f32.mrf.mxu0
        %v5344 = vpop.f32.mrf.mxu0
        %v5345 = vadd.f32 0.0, %v5344
        %v5346 = vpop.f32.mrf.mxu0
        %5347 = vmatprep.mubr.bf16.mxu0 0
        %5348 = vmatmul.mubr.bf16.gmra.mxu0 %v5130
        %v5349 = vpop.f32.mrf.mxu0
        %v5350 = vadd.f32 0.0, %v5349
        %v5351 = vpop.f32.mrf.mxu0
        %v5352 = vpop.f32.mrf.mxu0
        %v5353 = vadd.f32 0.0, %v5352
        %v5354 = vpop.f32.mrf.mxu0
        %5355 = vdwg.mxu0
        %v5356 = vadd.f32 %v4875, %v5230
        %v5357 = vadd.f32 %v4876, %v5233
        %v5358 = vadd.f32 %v4877, %v5238
        %v5359 = vadd.f32 %v4878, %v5241
        %v5360 = vadd.f32 %v4879, %v5246
        %v5361 = vadd.f32 %v4880, %v5249
        %v5362 = vadd.f32 %v4881, %v5254
        %v5363 = vadd.f32 %v4882, %v5257
        %v5364 = vadd.f32 %v4883, %v5262
        %v5365 = vadd.f32 %v4884, %v5265
        %v5366 = vadd.f32 %v4885, %v5270
        %v5367 = vadd.f32 %v4886, %v5273
        %v5368 = vadd.f32 %v4887, %v5278
        %v5369 = vadd.f32 %v4888, %v5281
        %v5370 = vadd.f32 %v4889, %v5286
        %v5371 = vadd.f32 %v4890, %v5289
        %v5372 = vadd.f32 %v4891, %v5294
        %v5373 = vadd.f32 %v4892, %v5297
        %v5374 = vadd.f32 %v4893, %v5302
        %v5375 = vadd.f32 %v4894, %v5305
        %v5376 = vadd.f32 %v4895, %v5310
        %v5377 = vadd.f32 %v4896, %v5313
        %v5378 = vadd.f32 %v4897, %v5318
        %v5379 = vadd.f32 %v4898, %v5321
        %v5380 = vadd.f32 %v4899, %v5326
        %v5381 = vadd.f32 %v4900, %v5329
        %v5382 = vadd.f32 %v4901, %v5334
        %v5383 = vadd.f32 %v4902, %v5337
        %v5384 = vadd.f32 %v4903, %v5342
        %v5385 = vadd.f32 %v4904, %v5345
        %v5386 = vadd.f32 %v4905, %v5350
        %v5387 = vadd.f32 %v4906, %v5353
        %v5388 = vadd.f32 %v5356, %v5357
        %v5389 = vadd.f32 %v5388, %v5358
        %v5390 = vadd.f32 %v5389, %v5359
        %v5391 = vadd.f32 %v5390, %v5360
        %v5392 = vadd.f32 %v5391, %v5361
        %v5393 = vadd.f32 %v5392, %v5362
        %v5394 = vadd.f32 %v5393, %v5363
        %v5395 = vadd.f32 %v5394, %v5364
        %v5396 = vadd.f32 %v5395, %v5365
        %v5397 = vadd.f32 %v5396, %v5366
        %v5398 = vadd.f32 %v5397, %v5367
        %v5399 = vadd.f32 %v5398, %v5368
        %v5400 = vadd.f32 %v5399, %v5369
        %v5401 = vadd.f32 %v5400, %v5370
        %v5402 = vadd.f32 %v5401, %v5371
        %v5403 = vadd.f32 %v5402, %v5372
        %v5404 = vadd.f32 %v5403, %v5373
        %v5405 = vadd.f32 %v5404, %v5374
        %v5406 = vadd.f32 %v5405, %v5375
        %v5407 = vadd.f32 %v5406, %v5376
        %v5408 = vadd.f32 %v5407, %v5377
        %v5409 = vadd.f32 %v5408, %v5378
        %v5410 = vadd.f32 %v5409, %v5379
        %v5411 = vadd.f32 %v5410, %v5380
        %v5412 = vadd.f32 %v5411, %v5381
        %v5413 = vadd.f32 %v5412, %v5382
        %v5414 = vadd.f32 %v5413, %v5383
        %v5415 = vadd.f32 %v5414, %v5384
        %v5416 = vadd.f32 %v5415, %v5385
        %v5417 = vadd.f32 %v5416, %v5386
        %v5418 = vadd.f32 %v5417, %v5387
        %v5419 = vrot.slane %v5418, 4
        %v5420 = vadd.f32 %v5418, %v5419
        %v5421 = vrot.slane %v5420, 2
        %v5422 = vadd.f32 %v5420, %v5421
        %v5423 = vrot.slane %v5422, 1
        %v5424 = vadd.f32 %v5422, %v5423
        %5425 = vst [vmem:[%s338] sm:$0x1] %v5424
        %v5426 = vmul.f32 %v5356, %v5356
        %v5427 = vmul.f32 %v5357, %v5357
        %v5428 = vmul.f32 %v5358, %v5358
        %v5429 = vmul.f32 %v5359, %v5359
        %v5430 = vmul.f32 %v5360, %v5360
        %v5431 = vmul.f32 %v5361, %v5361
        %v5432 = vmul.f32 %v5362, %v5362
        %v5433 = vmul.f32 %v5363, %v5363
        %v5434 = vmul.f32 %v5364, %v5364
        %v5435 = vmul.f32 %v5365, %v5365
        %v5436 = vmul.f32 %v5366, %v5366
        %v5437 = vmul.f32 %v5367, %v5367
        %v5438 = vmul.f32 %v5368, %v5368
        %v5439 = vmul.f32 %v5369, %v5369
        %v5440 = vmul.f32 %v5370, %v5370
        %v5441 = vmul.f32 %v5371, %v5371
        %v5442 = vmul.f32 %v5372, %v5372
        %v5443 = vmul.f32 %v5373, %v5373
        %v5444 = vmul.f32 %v5374, %v5374
        %v5445 = vmul.f32 %v5375, %v5375
        %v5446 = vmul.f32 %v5376, %v5376
        %v5447 = vmul.f32 %v5377, %v5377
        %v5448 = vmul.f32 %v5378, %v5378
        %v5449 = vmul.f32 %v5379, %v5379
        %v5450 = vmul.f32 %v5380, %v5380
        %v5451 = vmul.f32 %v5381, %v5381
        %v5452 = vmul.f32 %v5382, %v5382
        %v5453 = vmul.f32 %v5383, %v5383
        %v5454 = vmul.f32 %v5384, %v5384
        %v5455 = vmul.f32 %v5385, %v5385
        %v5456 = vmul.f32 %v5386, %v5386
        %v5457 = vmul.f32 %v5387, %v5387
        %v5458 = vadd.f32 %v5426, %v5427
        %v5459 = vadd.f32 %v5458, %v5428
        %v5460 = vadd.f32 %v5459, %v5429
        %v5461 = vadd.f32 %v5460, %v5430
        %v5462 = vadd.f32 %v5461, %v5431
        %v5463 = vadd.f32 %v5462, %v5432
        %v5464 = vadd.f32 %v5463, %v5433
        %v5465 = vadd.f32 %v5464, %v5434
        %v5466 = vadd.f32 %v5465, %v5435
        %v5467 = vadd.f32 %v5466, %v5436
        %v5468 = vadd.f32 %v5467, %v5437
        %v5469 = vadd.f32 %v5468, %v5438
        %v5470 = vadd.f32 %v5469, %v5439
        %v5471 = vadd.f32 %v5470, %v5440
        %v5472 = vadd.f32 %v5471, %v5441
        %v5473 = vadd.f32 %v5472, %v5442
        %v5474 = vadd.f32 %v5473, %v5443
        %v5475 = vadd.f32 %v5474, %v5444
        %v5476 = vadd.f32 %v5475, %v5445
        %v5477 = vadd.f32 %v5476, %v5446
        %v5478 = vadd.f32 %v5477, %v5447
        %v5479 = vadd.f32 %v5478, %v5448
        %v5480 = vadd.f32 %v5479, %v5449
        %v5481 = vadd.f32 %v5480, %v5450
        %v5482 = vadd.f32 %v5481, %v5451
        %v5483 = vadd.f32 %v5482, %v5452
        %v5484 = vadd.f32 %v5483, %v5453
        %v5485 = vadd.f32 %v5484, %v5454
        %v5486 = vadd.f32 %v5485, %v5455
        %v5487 = vadd.f32 %v5486, %v5456
        %v5488 = vadd.f32 %v5487, %v5457
        %v5489 = vrot.slane %v5488, 4
        %v5490 = vadd.f32 %v5488, %v5489
        %v5491 = vrot.slane %v5490, 2
        %v5492 = vadd.f32 %v5490, %v5491
        %v5493 = vrot.slane %v5492, 1
        %v5494 = vadd.f32 %v5492, %v5493
        %5495 = vst [vmem:[%s344] sm:$0x1] %v5494
        %v5496 = vpack.c.bf16 %v5357, %v5356
        %v5497 = vpack.c.bf16 %v5359, %v5358
        %v5498 = vpack.c.bf16 %v5361, %v5360
        %v5499 = vpack.c.bf16 %v5363, %v5362
        %v5500 = vpack.c.bf16 %v5365, %v5364
        %v5501 = vpack.c.bf16 %v5367, %v5366
        %v5502 = vpack.c.bf16 %v5369, %v5368
        %v5503 = vpack.c.bf16 %v5371, %v5370
        %v5504 = vpack.c.bf16 %v5373, %v5372
        %v5505 = vpack.c.bf16 %v5375, %v5374
        %v5506 = vpack.c.bf16 %v5377, %v5376
        %v5507 = vpack.c.bf16 %v5379, %v5378
        %v5508 = vpack.c.bf16 %v5381, %v5380
        %v5509 = vpack.c.bf16 %v5383, %v5382
        %v5510 = vpack.c.bf16 %v5385, %v5384
        %v5511 = vpack.c.bf16 %v5387, %v5386
        %v5528 = vunpack.c.l.b16 %v5496
        %v5529 = vunpack.c.h.b16 %v5496
        %v5530 = vunpack.c.l.b16 %v5497
        %v5531 = vunpack.c.h.b16 %v5497
        %v5532 = vunpack.c.l.b16 %v5498
        %v5533 = vunpack.c.h.b16 %v5498
        %v5534 = vunpack.c.l.b16 %v5499
        %v5535 = vunpack.c.h.b16 %v5499
        %v5536 = vunpack.c.l.b16 %v5500
        %v5537 = vunpack.c.h.b16 %v5500
        %v5538 = vunpack.c.l.b16 %v5501
        %v5539 = vunpack.c.h.b16 %v5501
        %v5540 = vunpack.c.l.b16 %v5502
        %v5541 = vunpack.c.h.b16 %v5502
        %v5542 = vunpack.c.l.b16 %v5503
        %v5543 = vunpack.c.h.b16 %v5503
        %v5544 = vunpack.c.l.b16 %v5504
        %v5545 = vunpack.c.h.b16 %v5504
        %v5546 = vunpack.c.l.b16 %v5505
        %v5547 = vunpack.c.h.b16 %v5505
        %v5548 = vunpack.c.l.b16 %v5506
        %v5549 = vunpack.c.h.b16 %v5506
        %v5550 = vunpack.c.l.b16 %v5507
        %v5551 = vunpack.c.h.b16 %v5507
        %v5552 = vunpack.c.l.b16 %v5508
        %v5553 = vunpack.c.h.b16 %v5508
        %v5554 = vunpack.c.l.b16 %v5509
        %v5555 = vunpack.c.h.b16 %v5509
        %v5556 = vunpack.c.l.b16 %v5510
        %v5557 = vunpack.c.h.b16 %v5510
        %v5558 = vunpack.c.l.b16 %v5511
        %v5559 = vunpack.c.h.b16 %v5511
        %v5560 = vpack.c.b16 %v5528, %v5528
        %v5561 = vpack.c.b16 %v5529, %v5529
        %v5562 = vpack.c.b16 %v5530, %v5530
        %v5563 = vpack.c.b16 %v5531, %v5531
        %v5564 = vpack.c.b16 %v5532, %v5532
        %v5565 = vpack.c.b16 %v5533, %v5533
        %v5566 = vpack.c.b16 %v5534, %v5534
        %v5567 = vpack.c.b16 %v5535, %v5535
        %v5568 = vpack.c.b16 %v5536, %v5536
        %v5569 = vpack.c.b16 %v5537, %v5537
        %v5570 = vpack.c.b16 %v5538, %v5538
        %v5571 = vpack.c.b16 %v5539, %v5539
        %v5572 = vpack.c.b16 %v5540, %v5540
        %v5573 = vpack.c.b16 %v5541, %v5541
        %v5574 = vpack.c.b16 %v5542, %v5542
        %v5575 = vpack.c.b16 %v5543, %v5543
        %v5576 = vpack.c.b16 %v5544, %v5544
        %v5577 = vpack.c.b16 %v5545, %v5545
        %v5578 = vpack.c.b16 %v5546, %v5546
        %v5579 = vpack.c.b16 %v5547, %v5547
        %v5580 = vpack.c.b16 %v5548, %v5548
        %v5581 = vpack.c.b16 %v5549, %v5549
        %v5582 = vpack.c.b16 %v5550, %v5550
        %v5583 = vpack.c.b16 %v5551, %v5551
        %v5584 = vpack.c.b16 %v5552, %v5552
        %v5585 = vpack.c.b16 %v5553, %v5553
        %v5586 = vpack.c.b16 %v5554, %v5554
        %v5587 = vpack.c.b16 %v5555, %v5555
        %v5588 = vpack.c.b16 %v5556, %v5556
        %v5589 = vpack.c.b16 %v5557, %v5557
        %v5590 = vpack.c.b16 %v5558, %v5558
        %v5591 = vpack.c.b16 %v5559, %v5559
        %5624 = vst [vmem:[%s332] sm:$0xf] %v5560
        %5625 = vst [vmem:[%s332 + $0x4] sm:$0xf] %v5561
        %5626 = vst [vmem:[%s332 + $0x8] sm:$0xf] %v5562
        %5627 = vst [vmem:[%s332 + $0xc] sm:$0xf] %v5563
        %5628 = vst [vmem:[%s332 + $0x10] sm:$0xf] %v5564
        %5629 = vst [vmem:[%s332 + $0x14] sm:$0xf] %v5565
        %5630 = vst [vmem:[%s332 + $0x18] sm:$0xf] %v5566
        %5631 = vst [vmem:[%s332 + $0x1c] sm:$0xf] %v5567
        %5632 = vst [vmem:[%s332 + $0x20] sm:$0xf] %v5568
        %5633 = vst [vmem:[%s332 + $0x24] sm:$0xf] %v5569
        %5634 = vst [vmem:[%s332 + $0x28] sm:$0xf] %v5570
        %5635 = vst [vmem:[%s332 + $0x2c] sm:$0xf] %v5571
        %5636 = vst [vmem:[%s332 + $0x30] sm:$0xf] %v5572
        %5637 = vst [vmem:[%s332 + $0x34] sm:$0xf] %v5573
        %5638 = vst [vmem:[%s332 + $0x38] sm:$0xf] %v5574
        %5639 = vst [vmem:[%s332 + $0x3c] sm:$0xf] %v5575
        %5640 = vst [vmem:[%s332 + $0x40] sm:$0xf] %v5576
        %5641 = vst [vmem:[%s332 + $0x44] sm:$0xf] %v5577
        %5642 = vst [vmem:[%s332 + $0x48] sm:$0xf] %v5578
        %5643 = vst [vmem:[%s332 + $0x4c] sm:$0xf] %v5579
        %5644 = vst [vmem:[%s332 + $0x50] sm:$0xf] %v5580
        %5645 = vst [vmem:[%s332 + $0x54] sm:$0xf] %v5581
        %5646 = vst [vmem:[%s332 + $0x58] sm:$0xf] %v5582
        %5647 = vst [vmem:[%s332 + $0x5c] sm:$0xf] %v5583
        %5648 = vst [vmem:[%s332 + $0x60] sm:$0xf] %v5584
        %5649 = vst [vmem:[%s332 + $0x64] sm:$0xf] %v5585
        %5650 = vst [vmem:[%s332 + $0x68] sm:$0xf] %v5586
        %5651 = vst [vmem:[%s332 + $0x6c] sm:$0xf] %v5587
        %5652 = vst [vmem:[%s332 + $0x70] sm:$0xf] %v5588
        %5653 = vst [vmem:[%s332 + $0x74] sm:$0xf] %v5589
        %5654 = vst [vmem:[%s332 + $0x78] sm:$0xf] %v5590
        %5655 = vst [vmem:[%s332 + $0x7c] sm:$0xf] %v5591
        %s5656 = sand.u32 %s108, 1
        %s5657 = scalar_lea.sflag [#allocation5], %s5656
        %s5658 = sand.u32 %s108, 1
        %s5659 = smul.addr %s5658, 128
        %s5660 = scalar_lea.vmem [#allocation9], %s5659
        %s5661 = sand.u32 %s32, 1
        %s5662 = scalar_lea.sflag [#allocation11], %s5661
        %s5663 = sand.u32 %s134, 1
        %s5664 = scalar_lea.vmem [#allocation10], %s5663
        %s5665 = sand.u32 %s32, 1
        %s5666 = scalar_lea.sflag [#allocation11], %s5665
        %s5667 = sand.u32 %s160, 1
        %s5668 = scalar_lea.vmem [#allocation12], %s5667
        %s5669 = sand.u32 %s32, 1
        %s5670 = scalar_lea.sflag [#allocation14], %s5669
        %s5671 = sand.u32 %s186, 1
        %s5672 = scalar_lea.vmem [#allocation13], %s5671
        %s5673 = sand.u32 %s32, 1
        %s5674 = scalar_lea.sflag [#allocation14], %s5673
        %s5675 = sand.u32 %s212, 1
        %s5676 = scalar_lea.vmem [#allocation15], %s5675
        // Predicated region
        $region45: #{tpu_custom_call.1} parent=31 // pred_check
          %p5677 = pneg %p118
        $region46: #{tpu_custom_call.1} parent=31 // pred_check_branch
          %5679 = sbr.rel (%p5677) target = $region48
        $region47: #{tpu_custom_call.1} parent=31 // pred_region
          %s5681 = ssub.s32 2048, 2048
          %5682 = vsyncadd %s5657, %s5681
          %s5683 = smul.addr %s32, 32
          %s5684 = smul.addr %s5683, 64
          %s5685 = scalar_lea.hbm %s3, %s5684
          %s5686 = sshll.u32 %s5660, 4
          %s5687 = int_to_ptr.vmem [resolvable:$true] %s5686
          %5692 = dma.vmem_to_hbm [thread:$0]  %s5687, 2048, %s5685, %s5657, 64, 64, 4
        $region48: #{tpu_custom_call.1} parent=31 // pred_fallthru
          _
        // Predicated region
        $region49: #{tpu_custom_call.1} parent=31 // pred_check
          %p5693 = pneg %p144
        $region50: #{tpu_custom_call.1} parent=31 // pred_check_branch
          %5695 = sbr.rel (%p5693) target = $region52
        $region51: #{tpu_custom_call.1} parent=31 // pred_region
          %s5697 = ssub.s32 16, 16
          %5698 = vsyncadd %s5662, %s5697
          %s5699 = smul.addr %s32, 16
          %s5700 = scalar_lea.hbm %s4, %s5699
          %s5702 = sshll.u32 %s5664, 4
          %s5703 = int_to_ptr.vmem [resolvable:$true] %s5702
          %5705 = dma.vmem_to_hbm [thread:$0]  %s5703, 16, %s5700, %s5662
        $region52: #{tpu_custom_call.1} parent=31 // pred_fallthru
          _
        // Predicated region
        $region53: #{tpu_custom_call.1} parent=31 // pred_check
          %p5706 = pneg %p170
        $region54: #{tpu_custom_call.1} parent=31 // pred_check_branch
          %5708 = sbr.rel (%p5706) target = $region56
        $region55: #{tpu_custom_call.1} parent=31 // pred_region
          %s5710 = ssub.s32 16, 16
          %5711 = vsyncadd %s5666, %s5710
          %s5712 = smul.addr %s32, 16
          %s5713 = scalar_lea.hbm %s5, %s5712
          %s5715 = sshll.u32 %s5668, 4
          %s5716 = int_to_ptr.vmem [resolvable:$true] %s5715
          %5718 = dma.vmem_to_hbm [thread:$0]  %s5716, 16, %s5713, %s5666
        $region56: #{tpu_custom_call.1} parent=31 // pred_fallthru
          _
        // Predicated region
        $region57: #{tpu_custom_call.1} parent=31 // pred_check
          %p5719 = pneg %p196
        $region58: #{tpu_custom_call.1} parent=31 // pred_check_branch
          %5721 = sbr.rel (%p5719) target = $region60
        $region59: #{tpu_custom_call.1} parent=31 // pred_region
          %s5723 = ssub.s32 16, 16
          %5724 = vsyncadd %s5670, %s5723
          %s5725 = smul.addr %s32, 16
          %s5726 = scalar_lea.hbm %s6, %s5725
          %s5728 = sshll.u32 %s5672, 4
          %s5729 = int_to_ptr.vmem [resolvable:$true] %s5728
          %5731 = dma.vmem_to_hbm [thread:$0]  %s5729, 16, %s5726, %s5670
        $region60: #{tpu_custom_call.1} parent=31 // pred_fallthru
          _
        // Predicated region
        $region61: #{tpu_custom_call.1} parent=31 // pred_check
          %p5732 = pneg %p222
        $region62: #{tpu_custom_call.1} parent=31 // pred_check_branch
          %5734 = sbr.rel (%p5732) target = $region64
        $region63: #{tpu_custom_call.1} parent=31 // pred_region
          %s5736 = ssub.s32 16, 16
          %5737 = vsyncadd %s5674, %s5736
          %s5738 = smul.addr %s32, 16
          %s5739 = scalar_lea.hbm %s7, %s5738
          %s5741 = sshll.u32 %s5676, 4
          %s5742 = int_to_ptr.vmem [resolvable:$true] %s5741
          %5744 = dma.vmem_to_hbm [thread:$0]  %s5742, 16, %s5739, %s5674
        $region64: #{tpu_custom_call.1} parent=31 // pred_fallthru
          _
      $region32: #{tpu_custom_call.1} parent=5 // pred_fallthru
        _
      %p5745 = scmp.le.s32.totalorder 2, %s27
      // Predicated region
      $region65: #{tpu_custom_call.1} parent=5 // pred_check
        %p5746 = pneg %p5745
      $region66: #{tpu_custom_call.1} parent=5 // pred_check_branch
        %5748 = sbr.rel (%p5746) target = $region68
      $region67: #{tpu_custom_call.1} parent=5 // pred_region
        %s5749 = ssub.s32 %s27, 2
        // Predicated region
        $region69: #{tpu_custom_call.1} parent=67 // pred_check
          %p5750 = pneg %p124
        $region70: #{tpu_custom_call.1} parent=67 // pred_check_branch
          %5752 = sbr.rel (%p5750) target = $region72
        $region71: #{tpu_custom_call.1} parent=67 // pred_region
          %s5753 = sand.u32 %s109, 1
          %s5754 = scalar_lea.sflag [#allocation5], %s5753
          %s5755 = sand.u32 %s109, 1
          %s5756 = smul.addr %s5755, 128
          %s5757 = scalar_lea.vmem [#allocation9], %s5756
          %5758 = dma.done %s5754, 2048
        $region72: #{tpu_custom_call.1} parent=67 // pred_fallthru
          _
        // Predicated region
        $region73: #{tpu_custom_call.1} parent=67 // pred_check
          %p5759 = pneg %p150
        $region74: #{tpu_custom_call.1} parent=67 // pred_check_branch
          %5761 = sbr.rel (%p5759) target = $region76
        $region75: #{tpu_custom_call.1} parent=67 // pred_region
          %s5762 = sand.u32 %s33, 1
          %s5763 = scalar_lea.sflag [#allocation11], %s5762
          %s5764 = sand.u32 %s135, 1
          %s5765 = scalar_lea.vmem [#allocation10], %s5764
          %5766 = dma.done %s5763, 16
        $region76: #{tpu_custom_call.1} parent=67 // pred_fallthru
          _
        // Predicated region
        $region77: #{tpu_custom_call.1} parent=67 // pred_check
          %p5767 = pneg %p176
        $region78: #{tpu_custom_call.1} parent=67 // pred_check_branch
          %5769 = sbr.rel (%p5767) target = $region80
        $region79: #{tpu_custom_call.1} parent=67 // pred_region
          %s5770 = sand.u32 %s33, 1
          %s5771 = scalar_lea.sflag [#allocation11], %s5770
          %s5772 = sand.u32 %s161, 1
          %s5773 = scalar_lea.vmem [#allocation12], %s5772
          %5774 = dma.done %s5771, 16
        $region80: #{tpu_custom_call.1} parent=67 // pred_fallthru
          _
        // Predicated region
        $region81: #{tpu_custom_call.1} parent=67 // pred_check
          %p5775 = pneg %p202
        $region82: #{tpu_custom_call.1} parent=67 // pred_check_branch
          %5777 = sbr.rel (%p5775) target = $region84
        $region83: #{tpu_custom_call.1} parent=67 // pred_region
          %s5778 = sand.u32 %s33, 1
          %s5779 = scalar_lea.sflag [#allocation14], %s5778
          %s5780 = sand.u32 %s187, 1
          %s5781 = scalar_lea.vmem [#allocation13], %s5780
          %5782 = dma.done %s5779, 16
        $region84: #{tpu_custom_call.1} parent=67 // pred_fallthru
          _
        // Predicated region
        $region85: #{tpu_custom_call.1} parent=67 // pred_check
          %p5783 = pneg %p228
        $region86: #{tpu_custom_call.1} parent=67 // pred_check_branch
          %5785 = sbr.rel (%p5783) target = $region88
        $region87: #{tpu_custom_call.1} parent=67 // pred_region
          %s5786 = sand.u32 %s33, 1
          %s5787 = scalar_lea.sflag [#allocation14], %s5786
          %s5788 = sand.u32 %s213, 1
          %s5789 = scalar_lea.vmem [#allocation15], %s5788
          %5790 = dma.done %s5787, 16
        $region88: #{tpu_custom_call.1} parent=67 // pred_fallthru
          _
      $region68: #{tpu_custom_call.1} parent=5 // pred_fallthru
        _
    $region6: #{tpu_custom_call.1} parent=1 // loop_footer
      %s31 = sadd.s32 1, %s27
    $region7: #{tpu_custom_call.1} parent=1 // loop_footer_branch
      %26 = sbr.rel target = $region3
    $region8: #{tpu_custom_call.1} parent=1 // loop_exit
      _
    %5791 = vsyncpa [#allocation4], 1
    %s5792 = scalar_lea.sflag [#allocation4], 1
    %5793 = vsyncpa %s5792, 1
    %5794 = vsyncpa [#allocation7], 1
    %5795 = vsyncpa [#allocation5], 1
    %s5796 = scalar_lea.sflag [#allocation5], 1
    %5797 = vsyncpa %s5796, 1
    %5798 = vsyncpa [#allocation11], 1
    %s5799 = scalar_lea.sflag [#allocation11], 1
    %5800 = vsyncpa %s5799, 1
    %5801 = vsyncpa [#allocation14], 1
    %s5802 = scalar_lea.sflag [#allocation14], 1
    %5803 = vsyncpa %s5802, 1

</llo_original>
